<compile_context>
chip_gen: v7x
topology: tpu7x:2x2x1
jax: 0.10.0
libtpu: 0.0.40
codegen_flags: <defaults>
</compile_context>

<pallas_src>
import jax
import jax.numpy as jnp
from jax.experimental import pallas as pl
from jax.experimental.pallas import tpu as pltpu

LANE = 128


# ----------------------------- Pallas kernels --------------------------------
def sage_layer_kernel(a_ref, xn_ref, xr_ref, dinv_ref, wl_ref, wr_ref, b_ref,
                      out_ref, acc_ref):
    """One SAGEConv layer.

    Reduction axis (grid axis 1): acc += C_tile(int8->bf16) @ x_nbr, f32 acc.
    Epilogue (last reduction step): mean = acc * (1/deg); then
    relu(mean @ W_l + x_root @ W_r + b) stored as bf16.
    """
    k = pl.program_id(1)

    @pl.when(k == 0)
    def _():
        acc_ref[...] = jnp.zeros_like(acc_ref)

    acc_ref[...] += jnp.dot(a_ref[...].astype(jnp.bfloat16), xn_ref[...],
                            preferred_element_type=jnp.float32)

    @pl.when(k == pl.num_programs(1) - 1)
    def _():
        m = (acc_ref[...] * dinv_ref[...]).astype(jnp.bfloat16)       # [tm, Fp]
        h = (jnp.dot(m, wl_ref[...], preferred_element_type=jnp.float32)
             + jnp.dot(xr_ref[...], wr_ref[...],
                       preferred_element_type=jnp.float32)
             + b_ref[...])
        out_ref[...] = jnp.maximum(h, 0.0).astype(out_ref.dtype)


def sage_lin_kernel(a_ref, hn_ref, hr_ref, dinv_ref, wl_ref, wr_ref, b_ref,
                    wlin_ref, blin_ref, out_ref, acc_ref):
    """Second SAGEConv layer with the final Linear fused into the epilogue."""
    k = pl.program_id(1)

    @pl.when(k == 0)
    def _():
        acc_ref[...] = jnp.zeros_like(acc_ref)

    acc_ref[...] += jnp.dot(a_ref[...].astype(jnp.bfloat16), hn_ref[...],
                            preferred_element_type=jnp.float32)

    @pl.when(k == pl.num_programs(1) - 1)
    def _():
        m = (acc_ref[...] * dinv_ref[...]).astype(jnp.bfloat16)       # [tm, Hp]
        h2 = jnp.maximum(
            jnp.dot(m, wl_ref[...], preferred_element_type=jnp.float32)
            + jnp.dot(hr_ref[...], wr_ref[...],
                      preferred_element_type=jnp.float32)
            + b_ref[...],
            0.0)
        out_ref[...] = (jnp.dot(h2.astype(jnp.bfloat16), wlin_ref[...],
                                preferred_element_type=jnp.float32)
                        + blin_ref[...]).astype(out_ref.dtype)


# ------------------------------- wrapper --------------------------------------
def _round_up(v, m):
    return ((v + m - 1) // m) * m


def _pad2(arr, rows, cols):
    r, c = arr.shape
    return jnp.pad(arr, ((0, rows - r), (0, cols - c)))


def _pick_tile(npad, candidates):
    for t in candidates:
        if npad % t == 0:
            return t
    return LANE


def graphsage_forward(counts, dinv, x, params, num_classes):
    """Fused GraphSAGE forward pass (two tiled Pallas kernels).

    counts: dense [N, N] edge-count matrix (C[dst, src] = #edges src->dst).
    dinv:   [N, 1] f32 inverse in-degree (0-safe), so mean_aggr = (C @ x) * dinv.
    """
    n, f = x.shape
    h = params["w1_l"].shape[1]

    # Pad N to a multiple of 1024: tm=512 / tk>=1024 always selectable, and the
    # "parallel" row axis has an even (>=2) tile count for v7x's 2 TensorCores.
    n_pad = _round_up(max(n, 1024), 1024)
    f_pad = _round_up(max(f, LANE), LANE)
    h_pad = _round_up(max(h, LANE), LANE)
    c_pad = _round_up(max(num_classes, LANE), LANE)

    # A stream: exact int8 counts (half the bytes of bf16), scaled by 1/deg in
    # the f32 epilogue. TODO(synk): fp8 e4m3 counts would feed v7x's MXU natively.
    a_i8 = jnp.clip(_pad2(counts, n_pad, n_pad), 0, 127).astype(jnp.int8)
    dinv_p = _pad2(dinv, n_pad, 1).astype(jnp.float32)
    x_p = _pad2(x, n_pad, f_pad).astype(jnp.bfloat16)

    # Separate (not stacked) W_l / W_r: epilogue does two summed dots.
    w1_l = _pad2(params["w1_l"], f_pad, h_pad).astype(jnp.bfloat16)
    w1_r = _pad2(params["w1_r"], f_pad, h_pad).astype(jnp.bfloat16)
    b1 = _pad2(params["b1"], 1, h_pad).astype(jnp.float32)
    w2_l = _pad2(params["w2_l"], h_pad, h_pad).astype(jnp.bfloat16)
    w2_r = _pad2(params["w2_r"], h_pad, h_pad).astype(jnp.bfloat16)
    b2 = _pad2(params["b2"], 1, h_pad).astype(jnp.float32)
    wl = _pad2(params["w_lin"], h_pad, c_pad).astype(jnp.bfloat16)
    bl = _pad2(params["b_lin"], 1, c_pad).astype(jnp.float32)

    # Large tiles: per step ~ 2x(tm*tk int8) + 2x(tk*128 bf16) + small extras
    # (~3-6 MiB) -> far under every generation's scoped VMEM while reaching
    # near the HBM roofline and amortizing the ~0.35us per-grid-step overhead.
    tm = _pick_tile(n_pad, (512, 256))
    tk = _pick_tile(n_pad, (2048, 1024, 512))
    grid = (n_pad // tm, n_pad // tk)

    cparams = pltpu.CompilerParams(
        dimension_semantics=("parallel", "arbitrary"),
        # Keep well under v7x's 64 MiB/TC physical VMEM.
        vmem_limit_bytes=48 * 1024 * 1024,
    )

    # ---- layer 1: h1 = relu(mean(A,x) @ W1_l + b1 + x @ W1_r) ----------------
    cost1 = pl.CostEstimate(
        flops=2 * n_pad * n_pad * f_pad + 4 * n_pad * f_pad * h_pad,
        transcendentals=0,
        bytes_accessed=(n_pad * n_pad                          # int8 A
                        + (n_pad // tm) * n_pad * f_pad * 2    # re-streamed x_nbr
                        + n_pad * f_pad * 2                    # x_root
                        + n_pad * h_pad * 2),                  # h1 out (bf16)
    )
    h1 = pl.pallas_call(
        sage_layer_kernel,
        out_shape=jax.ShapeDtypeStruct((n_pad, h_pad), jnp.bfloat16),
        grid_spec=pltpu.PrefetchScalarGridSpec(
            num_scalar_prefetch=0,
            grid=grid,
            in_specs=[
                pl.BlockSpec((tm, tk), lambda i, k: (i, k)),          # counts tile
                pl.BlockSpec((tk, f_pad), lambda i, k: (k, 0)),       # neighbor feats
                pl.BlockSpec((tm, f_pad), lambda i, k: (i, 0)),       # root feats
                pl.BlockSpec((tm, 1), lambda i, k: (i, 0)),           # 1/deg
                pl.BlockSpec((f_pad, h_pad), lambda i, k: (0, 0)),    # W1_l
                pl.BlockSpec((f_pad, h_pad), lambda i, k: (0, 0)),    # W1_r
                pl.BlockSpec((1, h_pad), lambda i, k: (0, 0)),        # b1
            ],
            out_specs=pl.BlockSpec((tm, h_pad), lambda i, k: (i, 0)),
            scratch_shapes=[pltpu.VMEM((tm, f_pad), jnp.float32)],
        ),
        compiler_params=cparams,
        cost_estimate=cost1,
    )(a_i8, x_p, x_p, dinv_p, w1_l, w1_r, b1)
    # F.dropout(p=0.3, training=False) is the identity at inference time.

    # ---- layer 2 + final Linear (fused epilogue) ------------------------------
    cost2 = pl.CostEstimate(
        flops=(2 * n_pad * n_pad * h_pad + 4 * n_pad * h_pad * h_pad
               + 2 * n_pad * h_pad * c_pad),
        transcendentals=0,
        bytes_accessed=(n_pad * n_pad
                        + (n_pad // tm) * n_pad * h_pad * 2
                        + n_pad * h_pad * 2
                        + n_pad * c_pad * 2),
    )
    out_pad = pl.pallas_call(
        sage_lin_kernel,
        out_shape=jax.ShapeDtypeStruct((n_pad, c_pad), jnp.bfloat16),
        grid_spec=pltpu.PrefetchScalarGridSpec(
            num_scalar_prefetch=0,
            grid=grid,
            in_specs=[
                pl.BlockSpec((tm, tk), lambda i, k: (i, k)),          # counts tile
                pl.BlockSpec((tk, h_pad), lambda i, k: (k, 0)),       # neighbor h1
                pl.BlockSpec((tm, h_pad), lambda i, k: (i, 0)),       # root h1
                pl.BlockSpec((tm, 1), lambda i, k: (i, 0)),           # 1/deg
                pl.BlockSpec((h_pad, h_pad), lambda i, k: (0, 0)),    # W2_l
                pl.BlockSpec((h_pad, h_pad), lambda i, k: (0, 0)),    # W2_r
                pl.BlockSpec((1, h_pad), lambda i, k: (0, 0)),        # b2
                pl.BlockSpec((h_pad, c_pad), lambda i, k: (0, 0)),    # W_lin
                pl.BlockSpec((1, c_pad), lambda i, k: (0, 0)),        # b_lin
            ],
            out_specs=pl.BlockSpec((tm, c_pad), lambda i, k: (i, 0)),
            scratch_shapes=[pltpu.VMEM((tm, h_pad), jnp.float32)],
        ),
        compiler_params=cparams,
        cost_estimate=cost2,
    )(a_i8, h1, h1, dinv_p, w2_l, w2_r, b2, wl, bl)

    return out_pad[:n, :num_classes].astype(jnp.float32)


# ------------------------------- glue / setup ---------------------------------
def build_graph_mats(edge_index, num_nodes):
    """Dense edge-count matrix C[dst, src] and per-row inverse in-degree.

    PyG SAGEConv mean aggregation == (C @ x) * dinv (scatter-mean over messages).
    """
    src, dst = edge_index[0], edge_index[1]
    c = jnp.zeros((num_nodes, num_nodes), jnp.float32)
    c = c.at[dst, src].add(1.0)
    deg = jnp.sum(c, axis=1, keepdims=True)
    dinv = 1.0 / jnp.maximum(deg, 1.0)
    return c, dinv


def init_params(key, node_features, hidden_channels, num_classes):
    ks = jax.random.split(key, 8)

    def glorot(k, fan_in, fan_out):
        scale = jnp.sqrt(6.0 / (fan_in + fan_out))
        return jax.random.uniform(k, (fan_in, fan_out), jnp.float32, -scale, scale)

    return {
        # SAGEConv1: lin_l (on aggregated, with bias), lin_r (on root, no bias)
        "w1_l": glorot(ks[0], node_features, hidden_channels),
        "w1_r": glorot(ks[1], node_features, hidden_channels),
        "b1": jax.random.uniform(ks[2], (1, hidden_channels), jnp.float32, -0.1, 0.1),
        # SAGEConv2
        "w2_l": glorot(ks[3], hidden_channels, hidden_channels),
        "w2_r": glorot(ks[4], hidden_channels, hidden_channels),
        "b2": jax.random.uniform(ks[5], (1, hidden_channels), jnp.float32, -0.1, 0.1),
        # final Linear
        "w_lin": glorot(ks[6], hidden_channels, num_classes),
        "b_lin": jax.random.uniform(ks[7], (1, num_classes), jnp.float32, -0.1, 0.1),
    }


def reference_forward(counts, dinv, x, p):
    """Pure-JAX (f32) reference for correctness checking."""
    m1 = (counts @ x) * dinv
    h1 = jnp.maximum(m1 @ p["w1_l"] + p["b1"] + x @ p["w1_r"], 0.0)
    m2 = (counts @ h1) * dinv
    h2 = jnp.maximum(m2 @ p["w2_l"] + p["b2"] + h1 @ p["w2_r"], 0.0)
    return h2 @ p["w_lin"] + p["b_lin"]


if __name__ == "__main__":
    key = jax.random.PRNGKey(0)
    k_param, k_feat, k_edge = jax.random.split(key, 3)

    # Pads to N=3072 -> grid (6 row tiles x 3 reduction steps): exercises the
    # multi-step accumulator path and gives an even parallel split across TCs.
    num_nodes = 3000
    node_features = 16
    hidden_channels = 32
    num_classes = 2
    num_edges = 12000

    x = jax.random.normal(k_feat, (num_nodes, node_features), jnp.float32)
    edge_index = jax.random.randint(k_edge, (2, num_edges), 0, num_nodes, jnp.int32)

    counts, dinv = build_graph_mats(edge_index, num_nodes)
    params = init_params(k_param, node_features, hidden_channels, num_classes)

    out = graphsage_forward(counts, dinv, x, params, num_classes)
    out = jax.block_until_ready(out)

    ref = reference_forward(counts, dinv, x, params)
    assert out.shape == (num_nodes, num_classes)
    # bf16 matmul operands (A itself is exact int8 counts + f32 scale) ->
    # loosened tolerance vs. the f32 reference.
    assert jnp.allclose(out, ref, atol=5e-2, rtol=5e-2), \
        float(jnp.max(jnp.abs(out - ref)))

    print("KERNEL_OK")
</pallas_src>

<mosaic_0001>
module attributes {stable_mosaic.version = 11 : i64} {
  func.func @sage_layer_kernel(%arg0: i32, %arg1: i32, %arg2: memref<512x1024xi8, #tpu.memory_space<vmem>>, %arg3: memref<1024x128xbf16, #tpu.memory_space<vmem>>, %arg4: memref<512x128xbf16, #tpu.memory_space<vmem>>, %arg5: memref<512x1xf32, #tpu.memory_space<vmem>>, %arg6: memref<128x128xbf16, #tpu.memory_space<vmem>>, %arg7: memref<128x128xbf16, #tpu.memory_space<vmem>>, %arg8: memref<1x128xf32, #tpu.memory_space<vmem>>, %arg9: memref<512x128xbf16, #tpu.memory_space<vmem>>, %arg10: memref<512x128xf32, #tpu.memory_space<vmem>>) attributes {dimension_semantics = [#tpu.dimension_semantics<parallel>, #tpu.dimension_semantics<arbitrary>], iteration_bounds = array<i64: 6, 3>, scalar_prefetch = 0 : i64, scratch_operands = 1 : i64, tpu.core_type = #tpu.core_type<tc>, window_params = [{transform_indices = @transform_0, window_bounds = array<i64: 512, 1024>}, {transform_indices = @transform_1, window_bounds = array<i64: 1024, 128>}, {transform_indices = @transform_2, window_bounds = array<i64: 512, 128>}, {transform_indices = @transform_3, window_bounds = array<i64: 512, 1>}, {pipeline_mode = #tpu.pipeline_mode<synchronous>, transform_indices = @transform_4, window_bounds = array<i64: 128, 128>}, {pipeline_mode = #tpu.pipeline_mode<synchronous>, transform_indices = @transform_5, window_bounds = array<i64: 128, 128>}, {pipeline_mode = #tpu.pipeline_mode<synchronous>, transform_indices = @transform_6, window_bounds = array<i64: 1, 128>}, {transform_indices = @transform_7, window_bounds = array<i64: 512, 128>}]} {
    %c0_i32 = arith.constant 0 : i32
    %0 = arith.cmpi eq, %arg1, %c0_i32 : i32
    %1 = arith.extui %0 : i1 to i32
    %c0_i32_0 = arith.constant 0 : i32
    %2 = arith.cmpi ne, %1, %c0_i32_0 : i32
    scf.if %2 {
      %cst_9 = arith.constant 0.000000e+00 : f32
      %13 = vector.broadcast %cst_9 : f32 to vector<512x128xf32>
      %c0_10 = arith.constant 0 : index
      %c0_11 = arith.constant 0 : index
      %14 = vector.load %arg10[%c0_10, %c0_11] : memref<512x128xf32, #tpu.memory_space<vmem>>, vector<512x128xf32>
      tpu.vector_store %arg10[%c0_10, %c0_11], %13 {strides = array<i32>} : memref<512x128xf32, #tpu.memory_space<vmem>>, vector<512x128xf32>,
    } else {
    }
    %c0 = arith.constant 0 : index
    %c0_1 = arith.constant 0 : index
    %3 = vector.load %arg10[%c0, %c0_1] : memref<512x128xf32, #tpu.memory_space<vmem>>, vector<512x128xf32>
    %c0_2 = arith.constant 0 : index
    %c0_3 = arith.constant 0 : index
    %4 = vector.load %arg2[%c0_2, %c0_3] : memref<512x1024xi8, #tpu.memory_space<vmem>>, vector<512x1024xi8>
    %5 = arith.sitofp %4 : vector<512x1024xi8> to vector<512x1024xbf16>
    %c0_4 = arith.constant 0 : index
    %c0_5 = arith.constant 0 : index
    %6 = vector.load %arg3[%c0_4, %c0_5] : memref<1024x128xbf16, #tpu.memory_space<vmem>>, vector<1024x128xbf16>
    %cst = arith.constant dense<0.000000e+00> : vector<512x128xf32>
    %7 = tpu.matmul %5, %6, %cst {dimension_numbers = #tpu.dot_dimension_numbers<[1], [0], [0], [1], [0, 0, 1, 1], [], []>} : vector<512x1024xbf16>, vector<1024x128xbf16>, vector<512x128xf32> -> vector<512x128xf32>
    %8 = arith.addf %3, %7 : vector<512x128xf32>
    %c0_6 = arith.constant 0 : index
    %c0_7 = arith.constant 0 : index
    %9 = vector.load %arg10[%c0_6, %c0_7] : memref<512x128xf32, #tpu.memory_space<vmem>>, vector<512x128xf32>
    tpu.vector_store %arg10[%c0_6, %c0_7], %8 {strides = array<i32>} : memref<512x128xf32, #tpu.memory_space<vmem>>, vector<512x128xf32>,
    %c2_i32 = arith.constant 2 : i32
    %10 = arith.cmpi eq, %arg1, %c2_i32 : i32
    %11 = arith.extui %10 : i1 to i32
    %c0_i32_8 = arith.constant 0 : i32
    %12 = arith.cmpi ne, %11, %c0_i32_8 : i32
    scf.if %12 {
      %c0_9 = arith.constant 0 : index
      %c0_10 = arith.constant 0 : index
      %13 = vector.load %arg10[%c0_9, %c0_10] : memref<512x128xf32, #tpu.memory_space<vmem>>, vector<512x128xf32>
      %c0_11 = arith.constant 0 : index
      %c0_12 = arith.constant 0 : index
      %14 = vector.load %arg5[%c0_11, %c0_12] : memref<512x1xf32, #tpu.memory_space<vmem>>, vector<512x1xf32>
      %15 = vector.broadcast %14 : vector<512x1xf32> to vector<512x128xf32>
      %16 = arith.mulf %13, %15 : vector<512x128xf32>
      %17 = arith.truncf %16 : vector<512x128xf32> to vector<512x128xbf16>
      %c0_13 = arith.constant 0 : index
      %c0_14 = arith.constant 0 : index
      %18 = vector.load %arg6[%c0_13, %c0_14] : memref<128x128xbf16, #tpu.memory_space<vmem>>, vector<128x128xbf16>
      %cst_15 = arith.constant dense<0.000000e+00> : vector<512x128xf32>
      %19 = tpu.matmul %17, %18, %cst_15 {dimension_numbers = #tpu.dot_dimension_numbers<[1], [0], [0], [1], [0, 0, 1, 1], [], []>} : vector<512x128xbf16>, vector<128x128xbf16>, vector<512x128xf32> -> vector<512x128xf32>
      %c0_16 = arith.constant 0 : index
      %c0_17 = arith.constant 0 : index
      %20 = vector.load %arg4[%c0_16, %c0_17] : memref<512x128xbf16, #tpu.memory_space<vmem>>, vector<512x128xbf16>
      %c0_18 = arith.constant 0 : index
      %c0_19 = arith.constant 0 : index
      %21 = vector.load %arg7[%c0_18, %c0_19] : memref<128x128xbf16, #tpu.memory_space<vmem>>, vector<128x128xbf16>
      %cst_20 = arith.constant dense<0.000000e+00> : vector<512x128xf32>
      %22 = tpu.matmul %20, %21, %cst_20 {dimension_numbers = #tpu.dot_dimension_numbers<[1], [0], [0], [1], [0, 0, 1, 1], [], []>} : vector<512x128xbf16>, vector<128x128xbf16>, vector<512x128xf32> -> vector<512x128xf32>
      %23 = arith.addf %19, %22 : vector<512x128xf32>
      %c0_21 = arith.constant 0 : index
      %c0_22 = arith.constant 0 : index
      %24 = vector.load %arg8[%c0_21, %c0_22] : memref<1x128xf32, #tpu.memory_space<vmem>>, vector<1x128xf32>
      %25 = vector.broadcast %24 : vector<1x128xf32> to vector<512x128xf32>
      %26 = arith.addf %23, %25 : vector<512x128xf32>
      %cst_23 = arith.constant 0.000000e+00 : f32
      %27 = vector.broadcast %cst_23 : f32 to vector<512x128xf32>
      %28 = arith.maximumf %26, %27 : vector<512x128xf32>
      %29 = arith.truncf %28 : vector<512x128xf32> to vector<512x128xbf16>
      %c0_24 = arith.constant 0 : index
      %c0_25 = arith.constant 0 : index
      %30 = vector.load %arg9[%c0_24, %c0_25] : memref<512x128xbf16, #tpu.memory_space<vmem>>, vector<512x128xbf16>
      tpu.vector_store %arg9[%c0_24, %c0_25], %29 {strides = array<i32>} : memref<512x128xbf16, #tpu.memory_space<vmem>>, vector<512x128xbf16>,
    } else {
    }
    return
  }
  func.func @transform_0(%arg0: i32, %arg1: i32) -> (i32, i32) {
    %c0_i32 = arith.constant 0 : i32
    return %arg0, %arg1 : i32, i32
  }
  func.func @transform_1(%arg0: i32, %arg1: i32) -> (i32, i32) {
    %c0_i32 = arith.constant 0 : i32
    %c0_i32_0 = arith.constant 0 : i32
    return %arg1, %c0_i32 : i32, i32
  }
  func.func @transform_2(%arg0: i32, %arg1: i32) -> (i32, i32) {
    %c0_i32 = arith.constant 0 : i32
    %c0_i32_0 = arith.constant 0 : i32
    return %arg0, %c0_i32 : i32, i32
  }
  func.func @transform_3(%arg0: i32, %arg1: i32) -> (i32, i32) {
    %c0_i32 = arith.constant 0 : i32
    %c0_i32_0 = arith.constant 0 : i32
    return %arg0, %c0_i32 : i32, i32
  }
  func.func @transform_4(%arg0: i32, %arg1: i32) -> (i32, i32) {
    %c0_i32 = arith.constant 0 : i32
    %c0_i32_0 = arith.constant 0 : i32
    %c0_i32_1 = arith.constant 0 : i32
    return %c0_i32, %c0_i32_0 : i32, i32
  }
  func.func @transform_5(%arg0: i32, %arg1: i32) -> (i32, i32) {
    %c0_i32 = arith.constant 0 : i32
    %c0_i32_0 = arith.constant 0 : i32
    %c0_i32_1 = arith.constant 0 : i32
    return %c0_i32, %c0_i32_0 : i32, i32
  }
  func.func @transform_6(%arg0: i32, %arg1: i32) -> (i32, i32) {
    %c0_i32 = arith.constant 0 : i32
    %c0_i32_0 = arith.constant 0 : i32
    %c0_i32_1 = arith.constant 0 : i32
    return %c0_i32, %c0_i32_0 : i32, i32
  }
  func.func @transform_7(%arg0: i32, %arg1: i32) -> (i32, i32) {
    %c0_i32 = arith.constant 0 : i32
    %c0_i32_0 = arith.constant 0 : i32
    return %arg0, %c0_i32 : i32, i32
  }
}

</mosaic_0001>

<llo_original>
// kernel: tpu_custom_call.1
$region0: #{tpu_custom_call.1}
  #allocation0 [shape = 'u32[]', space=smem, size = 0x4, offset = 0x4, fixed_abs, tag = 'smem constant byte address 0x4 - core index']
  #allocation1 [shape = 'u32[144,128]{1,0:T(1,128)}', space=vmem, size = 0x12000, scoped, tag = 'internal scratch']
  #allocation2 [shape = 'f32[512,128]{1,0:T(8,128)}', space=vmem, size = 0x40000, scoped, tag = 'scratch operand']
  %s0 = inlined_call_operand.hbm [shape: s8[3072,3072], index: 0, kind: input, shape index: {}]
  %s1 = inlined_call_operand.hbm [shape: bf16[3072,128], index: 1, kind: input, shape index: {}]
  %s2 = inlined_call_operand.hbm [shape: bf16[3072,128], index: 2, kind: input, shape index: {}]
  %s3 = inlined_call_operand.vmem [shape: f32[3072,1], index: 3, kind: input, shape index: {}]
  %s4 = inlined_call_operand.hbm [shape: bf16[128,128], index: 4, kind: input, shape index: {}]
  %s5 = inlined_call_operand.hbm [shape: bf16[128,128], index: 5, kind: input, shape index: {}]
  %s6 = inlined_call_operand.hbm [shape: f32[1,128], index: 6, kind: input, shape index: {}]
  %s7 = inlined_call_operand.hbm [shape: bf16[3072,128], index: 7, kind: output, shape index: {}]
  %s8 = sld [smem:[#allocation0]]
  $region93: #{tpu_custom_call.1} parent=0
    _
  %s10 = ssub.s32 1, %s8
  %s11 = scalar_select 0, %s10, %s8
  $region1: #{tpu_custom_call.1} parent=0
    #allocation3 [shape = 'u8[1048576]{0}', space=vmem, size = 0x100000, scoped, tag = 'input window, operand 0']
    #allocation4 [shape = 's32[2]{0}', space=sflag, size = 0x8, scoped, tag = 'scoped memory for tpu_custom_call.1']
    #allocation5 [shape = 's32[2]{0}', space=sflag, size = 0x8, scoped, tag = 'scoped memory for tpu_custom_call.1']
    #allocation6 [shape = 'u8[524288]{0}', space=vmem, size = 0x80000, scoped, tag = 'input window, operand 1']
    #allocation7 [shape = 's32[2]{0}', space=sflag, size = 0x8, scoped, tag = 'scoped memory for tpu_custom_call.1']
    #allocation8 [shape = 'u8[262144]{0}', space=vmem, size = 0x40000, scoped, tag = 'input window, operand 2']
    #allocation9 [shape = 'u8[32768]{0}', space=vmem, size = 0x8000, scoped, tag = 'input window, operand 4, single buffered']
    #allocation10 [shape = 's32[1]{0}', space=sflag, size = 0x4, scoped, tag = 'scoped memory for tpu_custom_call.1']
    #allocation11 [shape = 'u8[32768]{0}', space=vmem, size = 0x8000, scoped, tag = 'input window, operand 5, single buffered']
    #allocation12 [shape = 'u8[512]{0}', space=vmem, size = 0x400, scoped, tag = 'input window, operand 6, single buffered']
    #allocation13 [shape = 's32[1]{0}', space=sflag, size = 0x4, scoped, tag = 'scoped memory for tpu_custom_call.1']
    #allocation14 [shape = 'u8[262144]{0}', space=vmem, size = 0x40000, scoped, tag = 'output window, operand 0']
    %12 = vsyncpa [#allocation4], 0
    %s13 = scalar_lea.sflag [#allocation4], 1
    %14 = vsyncpa %s13, 0
    %15 = vsyncpa [#allocation7], 0
    %s16 = scalar_lea.sflag [#allocation7], 1
    %17 = vsyncpa %s16, 0
    %18 = vsyncpa [#allocation10], 0
    %19 = vsyncpa [#allocation13], 0
    %20 = vsyncpa [#allocation5], 0
    %s21 = scalar_lea.sflag [#allocation5], 1
    %22 = vsyncpa %s21, 0
    loop: start=0, step=1, limit=20
    $region2: #{tpu_custom_call.1} parent=1 // loop_pre_header
      _
    $region3: #{tpu_custom_call.1} parent=1 // loop_header
      %s24 = sphi 0, %s28
      %p25 = scmp.ge.s32.totalorder %s24, 20
      %s31 = sphi 0, %s43
      %s32 = sphi 0, %s39
      %s33 = sphi 0, %s31
      %s34 = sphi 0, %s32
      %s35 = sphi 0, %s33
      %s36 = sphi 0, %s34
      %s48 = sphi 0, %s50
      %s51 = sphi 0, %s48
      %s52 = sphi 0, %s51
      %s68 = sphi 0, %s52
      %s74 = sphi 0, %s76
      %s77 = sphi 0, %s74
      %s78 = sphi 0, %s77
      %s94 = sphi 0, %s78
      %s100 = sphi 0, %s102
      %s103 = sphi 0, %s100
      %s104 = sphi 0, %s103
      %s120 = sphi 0, %s104
      %s126 = sphi 0, %s128
      %s129 = sphi 0, %s126
      %s130 = sphi 0, %s129
      %s146 = sphi 0, %s130
      %s150 = sphi 0, %s150
      %s152 = sphi 0, %s150
      %s153 = sphi 0, %s152
      %s167 = sphi 0, %s153
      %s171 = sphi 0, %s171
      %s173 = sphi 0, %s171
      %s174 = sphi 0, %s173
      %s188 = sphi 0, %s174
      %s192 = sphi 0, %s192
      %s194 = sphi 0, %s192
      %s195 = sphi 0, %s194
      %s209 = sphi 0, %s195
      %s215 = sphi 0, %s217
      %s218 = sphi 0, %s215
      %s219 = sphi 0, %s218
      %s235 = sphi 0, %s219
    $region4: #{tpu_custom_call.1} parent=1 // loop_header_branch
      %27 = sbr.rel (%p25) target = $region8
    $region5: #{tpu_custom_call.1} parent=1 // loop_body
      %s29 = ssub.s32 %s24, 1
      %s30 = ssub.s32 %s24, 2
      %s37 = sadd.s32 1, %s32
      %p38 = scmp.ge.s32.totalorder %s37, 3
      %s39 = scalar_select %p38, 0, %s37
      %s40 = sadd.s32 1, %s31
      %s41 = scalar_select %p38, %s40, %s31
      %p42 = scmp.ge.s32.totalorder %s41, 6
      %s43 = scalar_select %p42, 0, %s41
      %s44 = ssub.s32 %s31, %s43
      %s45 = ssub.s32 %s32, %s39
      %s46 = sor.u32 %s44, %s45
      %p47 = scmp.eq.s32.totalorder %s46, 0
      %s49 = sadd.s32 %s48, 1
      %s50 = scalar_select %p47, %s48, %s49
      %p53 = pneg %p47
      %p54 = scmp.eq.s32.totalorder %s24, 17
      %p55 = por %p53, %p54
      %p56 = scmp.ne.s32.totalorder %s48, %s51
      %p57 = scmp.eq.s32.totalorder %s24, 0
      %p58 = por %p56, %p57
      %p59 = scmp.ne.s32.totalorder %s48, %s51
      %p60 = scmp.eq.s32.totalorder %s29, 17
      %p61 = por %p59, %p60
      %p62 = scmp.ne.s32.totalorder %s51, %s52
      %p63 = scmp.eq.s32.totalorder %s29, 0
      %p64 = por %p62, %p63
      %p65 = scmp.ne.s32.totalorder %s51, %s52
      %p66 = scmp.eq.s32.totalorder %s30, 17
      %p67 = por %p65, %p66
      %p69 = scmp.ne.s32.totalorder %s52, %s68
      %p70 = scmp.eq.s32.totalorder %s30, 0
      %p71 = por %p69, %p70
      %s72 = ssub.s32 %s32, %s39
      %p73 = scmp.eq.s32.totalorder %s72, 0
      %s75 = sadd.s32 %s74, 1
      %s76 = scalar_select %p73, %s74, %s75
      %p79 = pneg %p73
      %p80 = scmp.eq.s32.totalorder %s24, 17
      %p81 = por %p79, %p80
      %p82 = scmp.ne.s32.totalorder %s74, %s77
      %p83 = scmp.eq.s32.totalorder %s24, 0
      %p84 = por %p82, %p83
      %p85 = scmp.ne.s32.totalorder %s74, %s77
      %p86 = scmp.eq.s32.totalorder %s29, 17
      %p87 = por %p85, %p86
      %p88 = scmp.ne.s32.totalorder %s77, %s78
      %p89 = scmp.eq.s32.totalorder %s29, 0
      %p90 = por %p88, %p89
      %p91 = scmp.ne.s32.totalorder %s77, %s78
      %p92 = scmp.eq.s32.totalorder %s30, 17
      %p93 = por %p91, %p92
      %p95 = scmp.ne.s32.totalorder %s78, %s94
      %p96 = scmp.eq.s32.totalorder %s30, 0
      %p97 = por %p95, %p96
      %s98 = ssub.s32 %s31, %s43
      %p99 = scmp.eq.s32.totalorder %s98, 0
      %s101 = sadd.s32 %s100, 1
      %s102 = scalar_select %p99, %s100, %s101
      %p105 = pneg %p99
      %p106 = scmp.eq.s32.totalorder %s24, 17
      %p107 = por %p105, %p106
      %p108 = scmp.ne.s32.totalorder %s100, %s103
      %p109 = scmp.eq.s32.totalorder %s24, 0
      %p110 = por %p108, %p109
      %p111 = scmp.ne.s32.totalorder %s100, %s103
      %p112 = scmp.eq.s32.totalorder %s29, 17
      %p113 = por %p111, %p112
      %p114 = scmp.ne.s32.totalorder %s103, %s104
      %p115 = scmp.eq.s32.totalorder %s29, 0
      %p116 = por %p114, %p115
      %p117 = scmp.ne.s32.totalorder %s103, %s104
      %p118 = scmp.eq.s32.totalorder %s30, 17
      %p119 = por %p117, %p118
      %p121 = scmp.ne.s32.totalorder %s104, %s120
      %p122 = scmp.eq.s32.totalorder %s30, 0
      %p123 = por %p121, %p122
      %s124 = ssub.s32 %s31, %s43
      %p125 = scmp.eq.s32.totalorder %s124, 0
      %s127 = sadd.s32 %s126, 1
      %s128 = scalar_select %p125, %s126, %s127
      %p131 = pneg %p125
      %p132 = scmp.eq.s32.totalorder %s24, 17
      %p133 = por %p131, %p132
      %p134 = scmp.ne.s32.totalorder %s126, %s129
      %p135 = scmp.eq.s32.totalorder %s24, 0
      %p136 = por %p134, %p135
      %p137 = scmp.ne.s32.totalorder %s126, %s129
      %p138 = scmp.eq.s32.totalorder %s29, 17
      %p139 = por %p137, %p138
      %p140 = scmp.ne.s32.totalorder %s129, %s130
      %p141 = scmp.eq.s32.totalorder %s29, 0
      %p142 = por %p140, %p141
      %p143 = scmp.ne.s32.totalorder %s129, %s130
      %p144 = scmp.eq.s32.totalorder %s30, 17
      %p145 = por %p143, %p144
      %p147 = scmp.ne.s32.totalorder %s130, %s146
      %p148 = scmp.eq.s32.totalorder %s30, 0
      %p149 = por %p147, %p148
      %s151 = sadd.s32 %s150, 1
      %p154 = scmp.eq.s32.totalorder %s24, 17
      %p155 = scmp.ne.s32.totalorder %s150, %s152
      %p156 = scmp.eq.s32.totalorder %s24, 0
      %p157 = por %p155, %p156
      %p158 = scmp.ne.s32.totalorder %s150, %s152
      %p159 = scmp.eq.s32.totalorder %s29, 17
      %p160 = por %p158, %p159
      %p161 = scmp.ne.s32.totalorder %s152, %s153
      %p162 = scmp.eq.s32.totalorder %s29, 0
      %p163 = por %p161, %p162
      %p164 = scmp.ne.s32.totalorder %s152, %s153
      %p165 = scmp.eq.s32.totalorder %s30, 17
      %p166 = por %p164, %p165
      %p168 = scmp.ne.s32.totalorder %s153, %s167
      %p169 = scmp.eq.s32.totalorder %s30, 0
      %p170 = por %p168, %p169
      %s172 = sadd.s32 %s171, 1
      %p175 = scmp.eq.s32.totalorder %s24, 17
      %p176 = scmp.ne.s32.totalorder %s171, %s173
      %p177 = scmp.eq.s32.totalorder %s24, 0
      %p178 = por %p176, %p177
      %p179 = scmp.ne.s32.totalorder %s171, %s173
      %p180 = scmp.eq.s32.totalorder %s29, 17
      %p181 = por %p179, %p180
      %p182 = scmp.ne.s32.totalorder %s173, %s174
      %p183 = scmp.eq.s32.totalorder %s29, 0
      %p184 = por %p182, %p183
      %p185 = scmp.ne.s32.totalorder %s173, %s174
      %p186 = scmp.eq.s32.totalorder %s30, 17
      %p187 = por %p185, %p186
      %p189 = scmp.ne.s32.totalorder %s174, %s188
      %p190 = scmp.eq.s32.totalorder %s30, 0
      %p191 = por %p189, %p190
      %s193 = sadd.s32 %s192, 1
      %p196 = scmp.eq.s32.totalorder %s24, 17
      %p197 = scmp.ne.s32.totalorder %s192, %s194
      %p198 = scmp.eq.s32.totalorder %s24, 0
      %p199 = por %p197, %p198
      %p200 = scmp.ne.s32.totalorder %s192, %s194
      %p201 = scmp.eq.s32.totalorder %s29, 17
      %p202 = por %p200, %p201
      %p203 = scmp.ne.s32.totalorder %s194, %s195
      %p204 = scmp.eq.s32.totalorder %s29, 0
      %p205 = por %p203, %p204
      %p206 = scmp.ne.s32.totalorder %s194, %s195
      %p207 = scmp.eq.s32.totalorder %s30, 17
      %p208 = por %p206, %p207
      %p210 = scmp.ne.s32.totalorder %s195, %s209
      %p211 = scmp.eq.s32.totalorder %s30, 0
      %p212 = por %p210, %p211
      %s213 = ssub.s32 %s31, %s43
      %p214 = scmp.eq.s32.totalorder %s213, 0
      %s216 = sadd.s32 %s215, 1
      %s217 = scalar_select %p214, %s215, %s216
      %p220 = pneg %p214
      %p221 = scmp.eq.s32.totalorder %s24, 17
      %p222 = por %p220, %p221
      %p223 = scmp.ne.s32.totalorder %s215, %s218
      %p224 = scmp.eq.s32.totalorder %s24, 0
      %p225 = por %p223, %p224
      %p226 = scmp.ne.s32.totalorder %s215, %s218
      %p227 = scmp.eq.s32.totalorder %s29, 17
      %p228 = por %p226, %p227
      %p229 = scmp.ne.s32.totalorder %s218, %s219
      %p230 = scmp.eq.s32.totalorder %s29, 0
      %p231 = por %p229, %p230
      %p232 = scmp.ne.s32.totalorder %s218, %s219
      %p233 = scmp.eq.s32.totalorder %s30, 17
      %p234 = por %p232, %p233
      %p236 = scmp.ne.s32.totalorder %s219, %s235
      %p237 = scmp.eq.s32.totalorder %s30, 0
      %p238 = por %p236, %p237
      %p239 = scmp.le.s32.totalorder 1, %s24
      %p240 = scmp.lt.s32.totalorder %s24, 19
      %p241 = pnand %p239, %p240
      %p242 = pneg %p241
      // Predicated region
      $region9: #{tpu_custom_call.1} parent=5 // pred_check
        _
      $region10: #{tpu_custom_call.1} parent=5 // pred_check_branch
        %244 = sbr.rel (%p241) target = $region12
      $region11: #{tpu_custom_call.1} parent=5 // pred_region
        %s245 = ssub.s32 %s24, 1
        // Predicated region
        $region13: #{tpu_custom_call.1} parent=11 // pred_check
          %p246 = pneg %p163
        $region14: #{tpu_custom_call.1} parent=11 // pred_check_branch
          %248 = sbr.rel (%p246) target = $region16
        $region15: #{tpu_custom_call.1} parent=11 // pred_region
          %s250 = ssub.s32 1024, 1024
          %251 = vsyncadd [#allocation10], %s250
          %s252 = sshll.u32 [#allocation9], 4
          %s253 = int_to_ptr.vmem [resolvable:$true] %s252
          %258 = dma.hbm_to_vmem [thread:$0]  %s4, 1024, %s253, [#allocation10], 64, 64, 4
        $region16: #{tpu_custom_call.1} parent=11 // pred_fallthru
          _
        // Predicated region
        $region17: #{tpu_custom_call.1} parent=11 // pred_check
          %p259 = pneg %p184
        $region18: #{tpu_custom_call.1} parent=11 // pred_check_branch
          %261 = sbr.rel (%p259) target = $region20
        $region19: #{tpu_custom_call.1} parent=11 // pred_region
          %s263 = ssub.s32 1024, 1024
          %264 = vsyncadd [#allocation10], %s263
          %s265 = sshll.u32 [#allocation11], 4
          %s266 = int_to_ptr.vmem [resolvable:$true] %s265
          %271 = dma.hbm_to_vmem [thread:$0]  %s5, 1024, %s266, [#allocation10], 64, 64, 4
        $region20: #{tpu_custom_call.1} parent=11 // pred_fallthru
          _
        // Predicated region
        $region21: #{tpu_custom_call.1} parent=11 // pred_check
          %p272 = pneg %p205
        $region22: #{tpu_custom_call.1} parent=11 // pred_check_branch
          %274 = sbr.rel (%p272) target = $region24
        $region23: #{tpu_custom_call.1} parent=11 // pred_region
          %s276 = ssub.s32 16, 16
          %277 = vsyncadd [#allocation13], %s276
          %s279 = sshll.u32 [#allocation12], 4
          %s280 = int_to_ptr.vmem [resolvable:$true] %s279
          %282 = dma.hbm_to_vmem [thread:$0]  %s6, 16, %s280, [#allocation13]
        $region24: #{tpu_custom_call.1} parent=11 // pred_fallthru
          _
      $region12: #{tpu_custom_call.1} parent=5 // pred_fallthru
        _
      %p283 = scmp.lt.s32.totalorder %s24, 18
      // Predicated region
      $region25: #{tpu_custom_call.1} parent=5 // pred_check
        %p284 = pneg %p283
      $region26: #{tpu_custom_call.1} parent=5 // pred_check_branch
        %286 = sbr.rel (%p284) target = $region28
      $region27: #{tpu_custom_call.1} parent=5 // pred_region
        // Predicated region
        $region29: #{tpu_custom_call.1} parent=27 // pred_check
          %p287 = pneg %p58
        $region30: #{tpu_custom_call.1} parent=27 // pred_check_branch
          %289 = sbr.rel (%p287) target = $region32
        $region31: #{tpu_custom_call.1} parent=27 // pred_region
          %s290 = sand.u32 %s48, 1
          %s291 = scalar_lea.sflag [#allocation4], %s290
          %s292 = sand.u32 %s48, 1
          %s293 = smul.addr %s292, 1024
          %s294 = scalar_lea.vmem [#allocation3], %s293
          %s295 = smul.u32 16, %s31
          %s296 = smul.u32 8, %s32
          %s298 = ssub.s32 16384, 16384
          %299 = vsyncadd %s291, %s298
          %s300 = smul.addr %s295, 24
          %s301 = sadd.s32 %s296, %s300
          %s302 = smul.addr %s301, 128
          %s303 = scalar_lea.hbm %s0, %s302
          %s304 = sshll.u32 %s294, 4
          %s305 = int_to_ptr.vmem [resolvable:$true] %s304
          %310 = dma.hbm_to_vmem [thread:$0]  %s303, 16384, %s305, %s291, 3072, 1024, 64
        $region32: #{tpu_custom_call.1} parent=27 // pred_fallthru
          _
        // Predicated region
        $region33: #{tpu_custom_call.1} parent=27 // pred_check
          %p311 = pneg %p84
        $region34: #{tpu_custom_call.1} parent=27 // pred_check_branch
          %313 = sbr.rel (%p311) target = $region36
        $region35: #{tpu_custom_call.1} parent=27 // pred_region
          %s314 = sand.u32 %s24, 1
          %s315 = scalar_lea.sflag [#allocation7], %s314
          %s316 = sand.u32 %s74, 1
          %s317 = smul.addr %s316, 512
          %s318 = scalar_lea.vmem [#allocation6], %s317
          %s319 = smul.u32 128, %s32
          %s321 = ssub.s32 8192, 8192
          %322 = vsyncadd %s315, %s321
          %s323 = smul.addr %s319, 64
          %s324 = scalar_lea.hbm %s1, %s323
          %s325 = sshll.u32 %s318, 4
          %s326 = int_to_ptr.vmem [resolvable:$true] %s325
          %331 = dma.hbm_to_vmem [thread:$0]  %s324, 8192, %s326, %s315, 64, 64, 4
        $region36: #{tpu_custom_call.1} parent=27 // pred_fallthru
          _
        // Predicated region
        $region37: #{tpu_custom_call.1} parent=27 // pred_check
          %p332 = pneg %p110
        $region38: #{tpu_custom_call.1} parent=27 // pred_check_branch
          %334 = sbr.rel (%p332) target = $region40
        $region39: #{tpu_custom_call.1} parent=27 // pred_region
          %s335 = sand.u32 %s24, 1
          %s336 = scalar_lea.sflag [#allocation7], %s335
          %s337 = sand.u32 %s100, 1
          %s338 = smul.addr %s337, 256
          %s339 = scalar_lea.vmem [#allocation8], %s338
          %s340 = smul.u32 64, %s31
          %s342 = ssub.s32 4096, 4096
          %343 = vsyncadd %s336, %s342
          %s344 = smul.addr %s340, 64
          %s345 = scalar_lea.hbm %s2, %s344
          %s346 = sshll.u32 %s339, 4
          %s347 = int_to_ptr.vmem [resolvable:$true] %s346
          %352 = dma.hbm_to_vmem [thread:$0]  %s345, 4096, %s347, %s336, 64, 64, 4
        $region40: #{tpu_custom_call.1} parent=27 // pred_fallthru
          _
        // Predicated region
        $region41: #{tpu_custom_call.1} parent=27 // pred_check
          %p353 = pneg %p136
        $region42: #{tpu_custom_call.1} parent=27 // pred_check_branch
          %355 = sbr.rel (%p353) target = $region44
        $region43: #{tpu_custom_call.1} parent=27 // pred_region
          %s356 = smul.u32 64, %s31
          %p357 = scmp.lt.s32.totalorder %s356, 383
          %s358 = scalar_select %p357, %s356, 383
          %s359 = smul.addr %s358, 8
          %s360 = scalar_lea.vmem %s3, %s359
          %s361 = smul.u32 64, %s31
        $region44: #{tpu_custom_call.1} parent=27 // pred_fallthru
          _
      $region28: #{tpu_custom_call.1} parent=5 // pred_fallthru
        _
      %p362 = scmp.le.s32.totalorder 1, %s24
      %p363 = scmp.lt.s32.totalorder %s24, 19
      %p364 = pnand %p362, %p363
      %p365 = pneg %p364
      // Predicated region
      $region45: #{tpu_custom_call.1} parent=5 // pred_check
        _
      $region46: #{tpu_custom_call.1} parent=5 // pred_check_branch
        %367 = sbr.rel (%p364) target = $region48
      $region47: #{tpu_custom_call.1} parent=5 // pred_region
        %s368 = ssub.s32 %s24, 1
        %s369 = sand.u32 %s51, 1
        %s370 = scalar_lea.sflag [#allocation4], %s369
        %s371 = sand.u32 %s51, 1
        %s372 = smul.addr %s371, 1024
        %s373 = scalar_lea.vmem [#allocation3], %s372
        // Predicated region
        $region49: #{tpu_custom_call.1} parent=47 // pred_check
          %p374 = pneg %p64
        $region50: #{tpu_custom_call.1} parent=47 // pred_check_branch
          %376 = sbr.rel (%p374) target = $region52
        $region51: #{tpu_custom_call.1} parent=47 // pred_region
          %377 = dma.done %s370, 16384
        $region52: #{tpu_custom_call.1} parent=47 // pred_fallthru
          _
        %s378 = sand.u32 %s29, 1
        %s379 = scalar_lea.sflag [#allocation7], %s378
        %s380 = sand.u32 %s77, 1
        %s381 = smul.addr %s380, 512
        %s382 = scalar_lea.vmem [#allocation6], %s381
        // Predicated region
        $region53: #{tpu_custom_call.1} parent=47 // pred_check
          %p383 = pneg %p90
        $region54: #{tpu_custom_call.1} parent=47 // pred_check_branch
          %385 = sbr.rel (%p383) target = $region56
        $region55: #{tpu_custom_call.1} parent=47 // pred_region
          %386 = dma.done %s379, 8192
        $region56: #{tpu_custom_call.1} parent=47 // pred_fallthru
          _
        %s387 = sand.u32 %s29, 1
        %s388 = scalar_lea.sflag [#allocation7], %s387
        %s389 = sand.u32 %s103, 1
        %s390 = smul.addr %s389, 256
        %s391 = scalar_lea.vmem [#allocation8], %s390
        // Predicated region
        $region57: #{tpu_custom_call.1} parent=47 // pred_check
          %p392 = pneg %p116
        $region58: #{tpu_custom_call.1} parent=47 // pred_check_branch
          %394 = sbr.rel (%p392) target = $region60
        $region59: #{tpu_custom_call.1} parent=47 // pred_region
          %395 = dma.done %s388, 4096
        $region60: #{tpu_custom_call.1} parent=47 // pred_fallthru
          _
        // Predicated region
        $region61: #{tpu_custom_call.1} parent=47 // pred_check
          %p396 = pneg %p163
        $region62: #{tpu_custom_call.1} parent=47 // pred_check_branch
          %398 = sbr.rel (%p396) target = $region64
        $region63: #{tpu_custom_call.1} parent=47 // pred_region
          %399 = dma.done [#allocation10], 1024
        $region64: #{tpu_custom_call.1} parent=47 // pred_fallthru
          _
        // Predicated region
        $region65: #{tpu_custom_call.1} parent=47 // pred_check
          %p400 = pneg %p184
        $region66: #{tpu_custom_call.1} parent=47 // pred_check_branch
          %402 = sbr.rel (%p400) target = $region68
        $region67: #{tpu_custom_call.1} parent=47 // pred_region
          %403 = dma.done [#allocation10], 1024
        $region68: #{tpu_custom_call.1} parent=47 // pred_fallthru
          _
        // Predicated region
        $region69: #{tpu_custom_call.1} parent=47 // pred_check
          %p404 = pneg %p205
        $region70: #{tpu_custom_call.1} parent=47 // pred_check_branch
          %406 = sbr.rel (%p404) target = $region72
        $region71: #{tpu_custom_call.1} parent=47 // pred_region
          %407 = dma.done [#allocation13], 16
        $region72: #{tpu_custom_call.1} parent=47 // pred_fallthru
          _
        %s408 = sand.u32 %s51, 1
        %s409 = scalar_lea.sflag [#allocation4], %s408
        %s410 = sand.u32 %s51, 1
        %s411 = smul.addr %s410, 1024
        %s412 = scalar_lea.vmem [#allocation3], %s411
        %p413 = pneg %p64
        %p414 = pneg %p61
        %s415 = sand.u32 %s29, 1
        %s416 = scalar_lea.sflag [#allocation7], %s415
        %s417 = sand.u32 %s77, 1
        %s418 = smul.addr %s417, 512
        %s419 = scalar_lea.vmem [#allocation6], %s418
        %p420 = pneg %p90
        %p421 = pneg %p87
        %s422 = sand.u32 %s29, 1
        %s423 = scalar_lea.sflag [#allocation7], %s422
        %s424 = sand.u32 %s103, 1
        %s425 = smul.addr %s424, 256
        %s426 = scalar_lea.vmem [#allocation8], %s425
        %p427 = pneg %p116
        %p428 = pneg %p113
        %s429 = smul.u32 64, %s33
        %p430 = scmp.lt.s32.totalorder %s429, 383
        %s431 = scalar_select %p430, %s429, 383
        %s432 = smul.addr %s431, 8
        %s433 = scalar_lea.vmem %s3, %s432
        %p434 = pneg %p142
        %p435 = pneg %p139
        %p436 = pneg %p163
        %p437 = pneg %p160
        %p438 = pneg %p184
        %p439 = pneg %p181
        %p440 = pneg %p205
        %p441 = pneg %p202
        %p442 = pneg %p231
        %p443 = pneg %p228
        %s444 = sand.u32 %s218, 1
        %s445 = scalar_lea.sflag [#allocation5], %s444
        %s446 = sand.u32 %s218, 1
        %s447 = smul.addr %s446, 256
        %s448 = scalar_lea.vmem [#allocation14], %s447
        %s449 = smul.u32 16, %s33
        %s450 = smul.u32 8, %s34
        %s451 = smul.u32 128, %s34
        %s452 = smul.u32 64, %s33
        %s453 = smul.u32 64, %s33
        %p454 = scmp.lt.s32.totalorder %s453, 383
        %s455 = scalar_select %p454, %s453, 383
        %s456 = smul.addr %s455, 8
        %s457 = scalar_lea.vmem %s3, %s456
        %s458 = smul.u32 64, %s33
        %s459 = smul.u32 64, %s33
        %p461 = scmp.eq.s32.totalorder %s34, 0
        // Predicated region
        $region73: #{tpu_custom_call.1} parent=47 // pred_check
          %p462 = pneg %p461
        $region74: #{tpu_custom_call.1} parent=47 // pred_check_branch
          %464 = sbr.rel (%p462) target = $region76
        $region75: #{tpu_custom_call.1} parent=47 // pred_region
          %465 = vst [vmem:[#allocation2] sm:$0xff] 0.0
          %466 = vst [vmem:[#allocation2 + $0x8] sm:$0xff] 0.0
          %467 = vst [vmem:[#allocation2 + $0x10] sm:$0xff] 0.0
          %468 = vst [vmem:[#allocation2 + $0x18] sm:$0xff] 0.0
          %469 = vst [vmem:[#allocation2 + $0x20] sm:$0xff] 0.0
          %470 = vst [vmem:[#allocation2 + $0x28] sm:$0xff] 0.0
          %471 = vst [vmem:[#allocation2 + $0x30] sm:$0xff] 0.0
          %472 = vst [vmem:[#allocation2 + $0x38] sm:$0xff] 0.0
          %473 = vst [vmem:[#allocation2 + $0x40] sm:$0xff] 0.0
          %474 = vst [vmem:[#allocation2 + $0x48] sm:$0xff] 0.0
          %475 = vst [vmem:[#allocation2 + $0x50] sm:$0xff] 0.0
          %476 = vst [vmem:[#allocation2 + $0x58] sm:$0xff] 0.0
          %477 = vst [vmem:[#allocation2 + $0x60] sm:$0xff] 0.0
          %478 = vst [vmem:[#allocation2 + $0x68] sm:$0xff] 0.0
          %479 = vst [vmem:[#allocation2 + $0x70] sm:$0xff] 0.0
          %480 = vst [vmem:[#allocation2 + $0x78] sm:$0xff] 0.0
          %481 = vst [vmem:[#allocation2 + $0x80] sm:$0xff] 0.0
          %482 = vst [vmem:[#allocation2 + $0x88] sm:$0xff] 0.0
          %483 = vst [vmem:[#allocation2 + $0x90] sm:$0xff] 0.0
          %484 = vst [vmem:[#allocation2 + $0x98] sm:$0xff] 0.0
          %485 = vst [vmem:[#allocation2 + $0xa0] sm:$0xff] 0.0
          %486 = vst [vmem:[#allocation2 + $0xa8] sm:$0xff] 0.0
          %487 = vst [vmem:[#allocation2 + $0xb0] sm:$0xff] 0.0
          %488 = vst [vmem:[#allocation2 + $0xb8] sm:$0xff] 0.0
          %489 = vst [vmem:[#allocation2 + $0xc0] sm:$0xff] 0.0
          %490 = vst [vmem:[#allocation2 + $0xc8] sm:$0xff] 0.0
          %491 = vst [vmem:[#allocation2 + $0xd0] sm:$0xff] 0.0
          %492 = vst [vmem:[#allocation2 + $0xd8] sm:$0xff] 0.0
          %493 = vst [vmem:[#allocation2 + $0xe0] sm:$0xff] 0.0
          %494 = vst [vmem:[#allocation2 + $0xe8] sm:$0xff] 0.0
          %495 = vst [vmem:[#allocation2 + $0xf0] sm:$0xff] 0.0
          %496 = vst [vmem:[#allocation2 + $0xf8] sm:$0xff] 0.0
          %497 = vst [vmem:[#allocation2 + $0x100] sm:$0xff] 0.0
          %498 = vst [vmem:[#allocation2 + $0x108] sm:$0xff] 0.0
          %499 = vst [vmem:[#allocation2 + $0x110] sm:$0xff] 0.0
          %500 = vst [vmem:[#allocation2 + $0x118] sm:$0xff] 0.0
          %501 = vst [vmem:[#allocation2 + $0x120] sm:$0xff] 0.0
          %502 = vst [vmem:[#allocation2 + $0x128] sm:$0xff] 0.0
          %503 = vst [vmem:[#allocation2 + $0x130] sm:$0xff] 0.0
          %504 = vst [vmem:[#allocation2 + $0x138] sm:$0xff] 0.0
          %505 = vst [vmem:[#allocation2 + $0x140] sm:$0xff] 0.0
          %506 = vst [vmem:[#allocation2 + $0x148] sm:$0xff] 0.0
          %507 = vst [vmem:[#allocation2 + $0x150] sm:$0xff] 0.0
          %508 = vst [vmem:[#allocation2 + $0x158] sm:$0xff] 0.0
          %509 = vst [vmem:[#allocation2 + $0x160] sm:$0xff] 0.0
          %510 = vst [vmem:[#allocation2 + $0x168] sm:$0xff] 0.0
          %511 = vst [vmem:[#allocation2 + $0x170] sm:$0xff] 0.0
          %512 = vst [vmem:[#allocation2 + $0x178] sm:$0xff] 0.0
          %513 = vst [vmem:[#allocation2 + $0x180] sm:$0xff] 0.0
          %514 = vst [vmem:[#allocation2 + $0x188] sm:$0xff] 0.0
          %515 = vst [vmem:[#allocation2 + $0x190] sm:$0xff] 0.0
          %516 = vst [vmem:[#allocation2 + $0x198] sm:$0xff] 0.0
          %517 = vst [vmem:[#allocation2 + $0x1a0] sm:$0xff] 0.0
          %518 = vst [vmem:[#allocation2 + $0x1a8] sm:$0xff] 0.0
          %519 = vst [vmem:[#allocation2 + $0x1b0] sm:$0xff] 0.0
          %520 = vst [vmem:[#allocation2 + $0x1b8] sm:$0xff] 0.0
          %521 = vst [vmem:[#allocation2 + $0x1c0] sm:$0xff] 0.0
          %522 = vst [vmem:[#allocation2 + $0x1c8] sm:$0xff] 0.0
          %523 = vst [vmem:[#allocation2 + $0x1d0] sm:$0xff] 0.0
          %524 = vst [vmem:[#allocation2 + $0x1d8] sm:$0xff] 0.0
          %525 = vst [vmem:[#allocation2 + $0x1e0] sm:$0xff] 0.0
          %526 = vst [vmem:[#allocation2 + $0x1e8] sm:$0xff] 0.0
          %527 = vst [vmem:[#allocation2 + $0x1f0] sm:$0xff] 0.0
          %528 = vst [vmem:[#allocation2 + $0x1f8] sm:$0xff] 0.0
        $region76: #{tpu_custom_call.1} parent=47 // pred_fallthru
          _
        %v529 = vld [vmem:[#allocation2] sm:$0xff]
        %v530 = vld [vmem:[#allocation2 + $0x8] sm:$0xff]
        %v531 = vld [vmem:[#allocation2 + $0x10] sm:$0xff]
        %v532 = vld [vmem:[#allocation2 + $0x18] sm:$0xff]
        %v533 = vld [vmem:[#allocation2 + $0x20] sm:$0xff]
        %v534 = vld [vmem:[#allocation2 + $0x28] sm:$0xff]
        %v535 = vld [vmem:[#allocation2 + $0x30] sm:$0xff]
        %v536 = vld [vmem:[#allocation2 + $0x38] sm:$0xff]
        %v537 = vld [vmem:[#allocation2 + $0x40] sm:$0xff]
        %v538 = vld [vmem:[#allocation2 + $0x48] sm:$0xff]
        %v539 = vld [vmem:[#allocation2 + $0x50] sm:$0xff]
        %v540 = vld [vmem:[#allocation2 + $0x58] sm:$0xff]
        %v541 = vld [vmem:[#allocation2 + $0x60] sm:$0xff]
        %v542 = vld [vmem:[#allocation2 + $0x68] sm:$0xff]
        %v543 = vld [vmem:[#allocation2 + $0x70] sm:$0xff]
        %v544 = vld [vmem:[#allocation2 + $0x78] sm:$0xff]
        %v545 = vld [vmem:[#allocation2 + $0x80] sm:$0xff]
        %v546 = vld [vmem:[#allocation2 + $0x88] sm:$0xff]
        %v547 = vld [vmem:[#allocation2 + $0x90] sm:$0xff]
        %v548 = vld [vmem:[#allocation2 + $0x98] sm:$0xff]
        %v549 = vld [vmem:[#allocation2 + $0xa0] sm:$0xff]
        %v550 = vld [vmem:[#allocation2 + $0xa8] sm:$0xff]
        %v551 = vld [vmem:[#allocation2 + $0xb0] sm:$0xff]
        %v552 = vld [vmem:[#allocation2 + $0xb8] sm:$0xff]
        %v553 = vld [vmem:[#allocation2 + $0xc0] sm:$0xff]
        %v554 = vld [vmem:[#allocation2 + $0xc8] sm:$0xff]
        %v555 = vld [vmem:[#allocation2 + $0xd0] sm:$0xff]
        %v556 = vld [vmem:[#allocation2 + $0xd8] sm:$0xff]
        %v557 = vld [vmem:[#allocation2 + $0xe0] sm:$0xff]
        %v558 = vld [vmem:[#allocation2 + $0xe8] sm:$0xff]
        %v559 = vld [vmem:[#allocation2 + $0xf0] sm:$0xff]
        %v560 = vld [vmem:[#allocation2 + $0xf8] sm:$0xff]
        %v561 = vld [vmem:[#allocation2 + $0x100] sm:$0xff]
        %v562 = vld [vmem:[#allocation2 + $0x108] sm:$0xff]
        %v563 = vld [vmem:[#allocation2 + $0x110] sm:$0xff]
        %v564 = vld [vmem:[#allocation2 + $0x118] sm:$0xff]
        %v565 = vld [vmem:[#allocation2 + $0x120] sm:$0xff]
        %v566 = vld [vmem:[#allocation2 + $0x128] sm:$0xff]
        %v567 = vld [vmem:[#allocation2 + $0x130] sm:$0xff]
        %v568 = vld [vmem:[#allocation2 + $0x138] sm:$0xff]
        %v569 = vld [vmem:[#allocation2 + $0x140] sm:$0xff]
        %v570 = vld [vmem:[#allocation2 + $0x148] sm:$0xff]
        %v571 = vld [vmem:[#allocation2 + $0x150] sm:$0xff]
        %v572 = vld [vmem:[#allocation2 + $0x158] sm:$0xff]
        %v573 = vld [vmem:[#allocation2 + $0x160] sm:$0xff]
        %v574 = vld [vmem:[#allocation2 + $0x168] sm:$0xff]
        %v575 = vld [vmem:[#allocation2 + $0x170] sm:$0xff]
        %v576 = vld [vmem:[#allocation2 + $0x178] sm:$0xff]
        %v577 = vld [vmem:[#allocation2 + $0x180] sm:$0xff]
        %v578 = vld [vmem:[#allocation2 + $0x188] sm:$0xff]
        %v579 = vld [vmem:[#allocation2 + $0x190] sm:$0xff]
        %v580 = vld [vmem:[#allocation2 + $0x198] sm:$0xff]
        %v581 = vld [vmem:[#allocation2 + $0x1a0] sm:$0xff]
        %v582 = vld [vmem:[#allocation2 + $0x1a8] sm:$0xff]
        %v583 = vld [vmem:[#allocation2 + $0x1b0] sm:$0xff]
        %v584 = vld [vmem:[#allocation2 + $0x1b8] sm:$0xff]
        %v585 = vld [vmem:[#allocation2 + $0x1c0] sm:$0xff]
        %v586 = vld [vmem:[#allocation2 + $0x1c8] sm:$0xff]
        %v587 = vld [vmem:[#allocation2 + $0x1d0] sm:$0xff]
        %v588 = vld [vmem:[#allocation2 + $0x1d8] sm:$0xff]
        %v589 = vld [vmem:[#allocation2 + $0x1e0] sm:$0xff]
        %v590 = vld [vmem:[#allocation2 + $0x1e8] sm:$0xff]
        %v591 = vld [vmem:[#allocation2 + $0x1f0] sm:$0xff]
        %v592 = vld [vmem:[#allocation2 + $0x1f8] sm:$0xff]
        %v593 = vld [vmem:[%s373] sm:$0xff]
        %v594 = vld [vmem:[%s373 + $0x8] sm:$0xff]
        %v595 = vld [vmem:[%s373 + $0x10] sm:$0xff]
        %v596 = vld [vmem:[%s373 + $0x18] sm:$0xff]
        %v597 = vld [vmem:[%s373 + $0x20] sm:$0xff]
        %v598 = vld [vmem:[%s373 + $0x28] sm:$0xff]
        %v599 = vld [vmem:[%s373 + $0x30] sm:$0xff]
        %v600 = vld [vmem:[%s373 + $0x38] sm:$0xff]
        %v601 = vld [vmem:[%s373 + $0x40] sm:$0xff]
        %v602 = vld [vmem:[%s373 + $0x48] sm:$0xff]
        %v603 = vld [vmem:[%s373 + $0x50] sm:$0xff]
        %v604 = vld [vmem:[%s373 + $0x58] sm:$0xff]
        %v605 = vld [vmem:[%s373 + $0x60] sm:$0xff]
        %v606 = vld [vmem:[%s373 + $0x68] sm:$0xff]
        %v607 = vld [vmem:[%s373 + $0x70] sm:$0xff]
        %v608 = vld [vmem:[%s373 + $0x78] sm:$0xff]
        %v609 = vld [vmem:[%s373 + $0x80] sm:$0xff]
        %v610 = vld [vmem:[%s373 + $0x88] sm:$0xff]
        %v611 = vld [vmem:[%s373 + $0x90] sm:$0xff]
        %v612 = vld [vmem:[%s373 + $0x98] sm:$0xff]
        %v613 = vld [vmem:[%s373 + $0xa0] sm:$0xff]
        %v614 = vld [vmem:[%s373 + $0xa8] sm:$0xff]
        %v615 = vld [vmem:[%s373 + $0xb0] sm:$0xff]
        %v616 = vld [vmem:[%s373 + $0xb8] sm:$0xff]
        %v617 = vld [vmem:[%s373 + $0xc0] sm:$0xff]
        %v618 = vld [vmem:[%s373 + $0xc8] sm:$0xff]
        %v619 = vld [vmem:[%s373 + $0xd0] sm:$0xff]
        %v620 = vld [vmem:[%s373 + $0xd8] sm:$0xff]
        %v621 = vld [vmem:[%s373 + $0xe0] sm:$0xff]
        %v622 = vld [vmem:[%s373 + $0xe8] sm:$0xff]
        %v623 = vld [vmem:[%s373 + $0xf0] sm:$0xff]
        %v624 = vld [vmem:[%s373 + $0xf8] sm:$0xff]
        %v625 = vld [vmem:[%s373 + $0x100] sm:$0xff]
        %v626 = vld [vmem:[%s373 + $0x108] sm:$0xff]
        %v627 = vld [vmem:[%s373 + $0x110] sm:$0xff]
        %v628 = vld [vmem:[%s373 + $0x118] sm:$0xff]
        %v629 = vld [vmem:[%s373 + $0x120] sm:$0xff]
        %v630 = vld [vmem:[%s373 + $0x128] sm:$0xff]
        %v631 = vld [vmem:[%s373 + $0x130] sm:$0xff]
        %v632 = vld [vmem:[%s373 + $0x138] sm:$0xff]
        %v633 = vld [vmem:[%s373 + $0x140] sm:$0xff]
        %v634 = vld [vmem:[%s373 + $0x148] sm:$0xff]
        %v635 = vld [vmem:[%s373 + $0x150] sm:$0xff]
        %v636 = vld [vmem:[%s373 + $0x158] sm:$0xff]
        %v637 = vld [vmem:[%s373 + $0x160] sm:$0xff]
        %v638 = vld [vmem:[%s373 + $0x168] sm:$0xff]
        %v639 = vld [vmem:[%s373 + $0x170] sm:$0xff]
        %v640 = vld [vmem:[%s373 + $0x178] sm:$0xff]
        %v641 = vld [vmem:[%s373 + $0x180] sm:$0xff]
        %v642 = vld [vmem:[%s373 + $0x188] sm:$0xff]
        %v643 = vld [vmem:[%s373 + $0x190] sm:$0xff]
        %v644 = vld [vmem:[%s373 + $0x198] sm:$0xff]
        %v645 = vld [vmem:[%s373 + $0x1a0] sm:$0xff]
        %v646 = vld [vmem:[%s373 + $0x1a8] sm:$0xff]
        %v647 = vld [vmem:[%s373 + $0x1b0] sm:$0xff]
        %v648 = vld [vmem:[%s373 + $0x1b8] sm:$0xff]
        %v649 = vld [vmem:[%s373 + $0x1c0] sm:$0xff]
        %v650 = vld [vmem:[%s373 + $0x1c8] sm:$0xff]
        %v651 = vld [vmem:[%s373 + $0x1d0] sm:$0xff]
        %v652 = vld [vmem:[%s373 + $0x1d8] sm:$0xff]
        %v653 = vld [vmem:[%s373 + $0x1e0] sm:$0xff]
        %v654 = vld [vmem:[%s373 + $0x1e8] sm:$0xff]
        %v655 = vld [vmem:[%s373 + $0x1f0] sm:$0xff]
        %v656 = vld [vmem:[%s373 + $0x1f8] sm:$0xff]
        %v657 = vld [vmem:[%s373 + $0x200] sm:$0xff]
        %v658 = vld [vmem:[%s373 + $0x208] sm:$0xff]
        %v659 = vld [vmem:[%s373 + $0x210] sm:$0xff]
        %v660 = vld [vmem:[%s373 + $0x218] sm:$0xff]
        %v661 = vld [vmem:[%s373 + $0x220] sm:$0xff]
        %v662 = vld [vmem:[%s373 + $0x228] sm:$0xff]
        %v663 = vld [vmem:[%s373 + $0x230] sm:$0xff]
        %v664 = vld [vmem:[%s373 + $0x238] sm:$0xff]
        %v665 = vld [vmem:[%s373 + $0x240] sm:$0xff]
        %v666 = vld [vmem:[%s373 + $0x248] sm:$0xff]
        %v667 = vld [vmem:[%s373 + $0x250] sm:$0xff]
        %v668 = vld [vmem:[%s373 + $0x258] sm:$0xff]
        %v669 = vld [vmem:[%s373 + $0x260] sm:$0xff]
        %v670 = vld [vmem:[%s373 + $0x268] sm:$0xff]
        %v671 = vld [vmem:[%s373 + $0x270] sm:$0xff]
        %v672 = vld [vmem:[%s373 + $0x278] sm:$0xff]
        %v673 = vld [vmem:[%s373 + $0x280] sm:$0xff]
        %v674 = vld [vmem:[%s373 + $0x288] sm:$0xff]
        %v675 = vld [vmem:[%s373 + $0x290] sm:$0xff]
        %v676 = vld [vmem:[%s373 + $0x298] sm:$0xff]
        %v677 = vld [vmem:[%s373 + $0x2a0] sm:$0xff]
        %v678 = vld [vmem:[%s373 + $0x2a8] sm:$0xff]
        %v679 = vld [vmem:[%s373 + $0x2b0] sm:$0xff]
        %v680 = vld [vmem:[%s373 + $0x2b8] sm:$0xff]
        %v681 = vld [vmem:[%s373 + $0x2c0] sm:$0xff]
        %v682 = vld [vmem:[%s373 + $0x2c8] sm:$0xff]
        %v683 = vld [vmem:[%s373 + $0x2d0] sm:$0xff]
        %v684 = vld [vmem:[%s373 + $0x2d8] sm:$0xff]
        %v685 = vld [vmem:[%s373 + $0x2e0] sm:$0xff]
        %v686 = vld [vmem:[%s373 + $0x2e8] sm:$0xff]
        %v687 = vld [vmem:[%s373 + $0x2f0] sm:$0xff]
        %v688 = vld [vmem:[%s373 + $0x2f8] sm:$0xff]
        %v689 = vld [vmem:[%s373 + $0x300] sm:$0xff]
        %v690 = vld [vmem:[%s373 + $0x308] sm:$0xff]
        %v691 = vld [vmem:[%s373 + $0x310] sm:$0xff]
        %v692 = vld [vmem:[%s373 + $0x318] sm:$0xff]
        %v693 = vld [vmem:[%s373 + $0x320] sm:$0xff]
        %v694 = vld [vmem:[%s373 + $0x328] sm:$0xff]
        %v695 = vld [vmem:[%s373 + $0x330] sm:$0xff]
        %v696 = vld [vmem:[%s373 + $0x338] sm:$0xff]
        %v697 = vld [vmem:[%s373 + $0x340] sm:$0xff]
        %v698 = vld [vmem:[%s373 + $0x348] sm:$0xff]
        %v699 = vld [vmem:[%s373 + $0x350] sm:$0xff]
        %v700 = vld [vmem:[%s373 + $0x358] sm:$0xff]
        %v701 = vld [vmem:[%s373 + $0x360] sm:$0xff]
        %v702 = vld [vmem:[%s373 + $0x368] sm:$0xff]
        %v703 = vld [vmem:[%s373 + $0x370] sm:$0xff]
        %v704 = vld [vmem:[%s373 + $0x378] sm:$0xff]
        %v705 = vld [vmem:[%s373 + $0x380] sm:$0xff]
        %v706 = vld [vmem:[%s373 + $0x388] sm:$0xff]
        %v707 = vld [vmem:[%s373 + $0x390] sm:$0xff]
        %v708 = vld [vmem:[%s373 + $0x398] sm:$0xff]
        %v709 = vld [vmem:[%s373 + $0x3a0] sm:$0xff]
        %v710 = vld [vmem:[%s373 + $0x3a8] sm:$0xff]
        %v711 = vld [vmem:[%s373 + $0x3b0] sm:$0xff]
        %v712 = vld [vmem:[%s373 + $0x3b8] sm:$0xff]
        %v713 = vld [vmem:[%s373 + $0x3c0] sm:$0xff]
        %v714 = vld [vmem:[%s373 + $0x3c8] sm:$0xff]
        %v715 = vld [vmem:[%s373 + $0x3d0] sm:$0xff]
        %v716 = vld [vmem:[%s373 + $0x3d8] sm:$0xff]
        %v717 = vld [vmem:[%s373 + $0x3e0] sm:$0xff]
        %v718 = vld [vmem:[%s373 + $0x3e8] sm:$0xff]
        %v719 = vld [vmem:[%s373 + $0x3f0] sm:$0xff]
        %v720 = vld [vmem:[%s373 + $0x3f8] sm:$0xff]
        %v721 = vunpack.c.l.s8.bf16 %v593
        %v722 = vunpack.c.l.s8.bf16 %v594
        %v723 = vunpack.c.l.s8.bf16 %v595
        %v724 = vunpack.c.l.s8.bf16 %v596
        %v725 = vunpack.c.l.s8.bf16 %v597
        %v726 = vunpack.c.l.s8.bf16 %v598
        %v727 = vunpack.c.l.s8.bf16 %v599
        %v728 = vunpack.c.l.s8.bf16 %v600
        %v729 = vunpack.c.h.s8.bf16 %v593
        %v730 = vunpack.c.h.s8.bf16 %v594
        %v731 = vunpack.c.h.s8.bf16 %v595
        %v732 = vunpack.c.h.s8.bf16 %v596
        %v733 = vunpack.c.h.s8.bf16 %v597
        %v734 = vunpack.c.h.s8.bf16 %v598
        %v735 = vunpack.c.h.s8.bf16 %v599
        %v736 = vunpack.c.h.s8.bf16 %v600
        %v737 = vunpack.c.l.s8.bf16 %v601
        %v738 = vunpack.c.l.s8.bf16 %v602
        %v739 = vunpack.c.l.s8.bf16 %v603
        %v740 = vunpack.c.l.s8.bf16 %v604
        %v741 = vunpack.c.l.s8.bf16 %v605
        %v742 = vunpack.c.l.s8.bf16 %v606
        %v743 = vunpack.c.l.s8.bf16 %v607
        %v744 = vunpack.c.l.s8.bf16 %v608
        %v745 = vunpack.c.h.s8.bf16 %v601
        %v746 = vunpack.c.h.s8.bf16 %v602
        %v747 = vunpack.c.h.s8.bf16 %v603
        %v748 = vunpack.c.h.s8.bf16 %v604
        %v749 = vunpack.c.h.s8.bf16 %v605
        %v750 = vunpack.c.h.s8.bf16 %v606
        %v751 = vunpack.c.h.s8.bf16 %v607
        %v752 = vunpack.c.h.s8.bf16 %v608
        %v753 = vunpack.c.l.s8.bf16 %v609
        %v754 = vunpack.c.l.s8.bf16 %v610
        %v755 = vunpack.c.l.s8.bf16 %v611
        %v756 = vunpack.c.l.s8.bf16 %v612
        %v757 = vunpack.c.l.s8.bf16 %v613
        %v758 = vunpack.c.l.s8.bf16 %v614
        %v759 = vunpack.c.l.s8.bf16 %v615
        %v760 = vunpack.c.l.s8.bf16 %v616
        %v761 = vunpack.c.h.s8.bf16 %v609
        %v762 = vunpack.c.h.s8.bf16 %v610
        %v763 = vunpack.c.h.s8.bf16 %v611
        %v764 = vunpack.c.h.s8.bf16 %v612
        %v765 = vunpack.c.h.s8.bf16 %v613
        %v766 = vunpack.c.h.s8.bf16 %v614
        %v767 = vunpack.c.h.s8.bf16 %v615
        %v768 = vunpack.c.h.s8.bf16 %v616
        %v769 = vunpack.c.l.s8.bf16 %v617
        %v770 = vunpack.c.l.s8.bf16 %v618
        %v771 = vunpack.c.l.s8.bf16 %v619
        %v772 = vunpack.c.l.s8.bf16 %v620
        %v773 = vunpack.c.l.s8.bf16 %v621
        %v774 = vunpack.c.l.s8.bf16 %v622
        %v775 = vunpack.c.l.s8.bf16 %v623
        %v776 = vunpack.c.l.s8.bf16 %v624
        %v777 = vunpack.c.h.s8.bf16 %v617
        %v778 = vunpack.c.h.s8.bf16 %v618
        %v779 = vunpack.c.h.s8.bf16 %v619
        %v780 = vunpack.c.h.s8.bf16 %v620
        %v781 = vunpack.c.h.s8.bf16 %v621
        %v782 = vunpack.c.h.s8.bf16 %v622
        %v783 = vunpack.c.h.s8.bf16 %v623
        %v784 = vunpack.c.h.s8.bf16 %v624
        %v785 = vunpack.c.l.s8.bf16 %v625
        %v786 = vunpack.c.l.s8.bf16 %v626
        %v787 = vunpack.c.l.s8.bf16 %v627
        %v788 = vunpack.c.l.s8.bf16 %v628
        %v789 = vunpack.c.l.s8.bf16 %v629
        %v790 = vunpack.c.l.s8.bf16 %v630
        %v791 = vunpack.c.l.s8.bf16 %v631
        %v792 = vunpack.c.l.s8.bf16 %v632
        %v793 = vunpack.c.h.s8.bf16 %v625
        %v794 = vunpack.c.h.s8.bf16 %v626
        %v795 = vunpack.c.h.s8.bf16 %v627
        %v796 = vunpack.c.h.s8.bf16 %v628
        %v797 = vunpack.c.h.s8.bf16 %v629
        %v798 = vunpack.c.h.s8.bf16 %v630
        %v799 = vunpack.c.h.s8.bf16 %v631
        %v800 = vunpack.c.h.s8.bf16 %v632
        %v801 = vunpack.c.l.s8.bf16 %v633
        %v802 = vunpack.c.l.s8.bf16 %v634
        %v803 = vunpack.c.l.s8.bf16 %v635
        %v804 = vunpack.c.l.s8.bf16 %v636
        %v805 = vunpack.c.l.s8.bf16 %v637
        %v806 = vunpack.c.l.s8.bf16 %v638
        %v807 = vunpack.c.l.s8.bf16 %v639
        %v808 = vunpack.c.l.s8.bf16 %v640
        %v809 = vunpack.c.h.s8.bf16 %v633
        %v810 = vunpack.c.h.s8.bf16 %v634
        %v811 = vunpack.c.h.s8.bf16 %v635
        %v812 = vunpack.c.h.s8.bf16 %v636
        %v813 = vunpack.c.h.s8.bf16 %v637
        %v814 = vunpack.c.h.s8.bf16 %v638
        %v815 = vunpack.c.h.s8.bf16 %v639
        %v816 = vunpack.c.h.s8.bf16 %v640
        %v817 = vunpack.c.l.s8.bf16 %v641
        %v818 = vunpack.c.l.s8.bf16 %v642
        %v819 = vunpack.c.l.s8.bf16 %v643
        %v820 = vunpack.c.l.s8.bf16 %v644
        %v821 = vunpack.c.l.s8.bf16 %v645
        %v822 = vunpack.c.l.s8.bf16 %v646
        %v823 = vunpack.c.l.s8.bf16 %v647
        %v824 = vunpack.c.l.s8.bf16 %v648
        %v825 = vunpack.c.h.s8.bf16 %v641
        %v826 = vunpack.c.h.s8.bf16 %v642
        %v827 = vunpack.c.h.s8.bf16 %v643
        %v828 = vunpack.c.h.s8.bf16 %v644
        %v829 = vunpack.c.h.s8.bf16 %v645
        %v830 = vunpack.c.h.s8.bf16 %v646
        %v831 = vunpack.c.h.s8.bf16 %v647
        %v832 = vunpack.c.h.s8.bf16 %v648
        %v833 = vunpack.c.l.s8.bf16 %v649
        %v834 = vunpack.c.l.s8.bf16 %v650
        %v835 = vunpack.c.l.s8.bf16 %v651
        %v836 = vunpack.c.l.s8.bf16 %v652
        %v837 = vunpack.c.l.s8.bf16 %v653
        %v838 = vunpack.c.l.s8.bf16 %v654
        %v839 = vunpack.c.l.s8.bf16 %v655
        %v840 = vunpack.c.l.s8.bf16 %v656
        %v841 = vunpack.c.h.s8.bf16 %v649
        %v842 = vunpack.c.h.s8.bf16 %v650
        %v843 = vunpack.c.h.s8.bf16 %v651
        %v844 = vunpack.c.h.s8.bf16 %v652
        %v845 = vunpack.c.h.s8.bf16 %v653
        %v846 = vunpack.c.h.s8.bf16 %v654
        %v847 = vunpack.c.h.s8.bf16 %v655
        %v848 = vunpack.c.h.s8.bf16 %v656
        %v849 = vunpack.c.l.s8.bf16 %v657
        %v850 = vunpack.c.l.s8.bf16 %v658
        %v851 = vunpack.c.l.s8.bf16 %v659
        %v852 = vunpack.c.l.s8.bf16 %v660
        %v853 = vunpack.c.l.s8.bf16 %v661
        %v854 = vunpack.c.l.s8.bf16 %v662
        %v855 = vunpack.c.l.s8.bf16 %v663
        %v856 = vunpack.c.l.s8.bf16 %v664
        %v857 = vunpack.c.h.s8.bf16 %v657
        %v858 = vunpack.c.h.s8.bf16 %v658
        %v859 = vunpack.c.h.s8.bf16 %v659
        %v860 = vunpack.c.h.s8.bf16 %v660
        %v861 = vunpack.c.h.s8.bf16 %v661
        %v862 = vunpack.c.h.s8.bf16 %v662
        %v863 = vunpack.c.h.s8.bf16 %v663
        %v864 = vunpack.c.h.s8.bf16 %v664
        %v865 = vunpack.c.l.s8.bf16 %v665
        %v866 = vunpack.c.l.s8.bf16 %v666
        %v867 = vunpack.c.l.s8.bf16 %v667
        %v868 = vunpack.c.l.s8.bf16 %v668
        %v869 = vunpack.c.l.s8.bf16 %v669
        %v870 = vunpack.c.l.s8.bf16 %v670
        %v871 = vunpack.c.l.s8.bf16 %v671
        %v872 = vunpack.c.l.s8.bf16 %v672
        %v873 = vunpack.c.h.s8.bf16 %v665
        %v874 = vunpack.c.h.s8.bf16 %v666
        %v875 = vunpack.c.h.s8.bf16 %v667
        %v876 = vunpack.c.h.s8.bf16 %v668
        %v877 = vunpack.c.h.s8.bf16 %v669
        %v878 = vunpack.c.h.s8.bf16 %v670
        %v879 = vunpack.c.h.s8.bf16 %v671
        %v880 = vunpack.c.h.s8.bf16 %v672
        %v881 = vunpack.c.l.s8.bf16 %v673
        %v882 = vunpack.c.l.s8.bf16 %v674
        %v883 = vunpack.c.l.s8.bf16 %v675
        %v884 = vunpack.c.l.s8.bf16 %v676
        %v885 = vunpack.c.l.s8.bf16 %v677
        %v886 = vunpack.c.l.s8.bf16 %v678
        %v887 = vunpack.c.l.s8.bf16 %v679
        %v888 = vunpack.c.l.s8.bf16 %v680
        %v889 = vunpack.c.h.s8.bf16 %v673
        %v890 = vunpack.c.h.s8.bf16 %v674
        %v891 = vunpack.c.h.s8.bf16 %v675
        %v892 = vunpack.c.h.s8.bf16 %v676
        %v893 = vunpack.c.h.s8.bf16 %v677
        %v894 = vunpack.c.h.s8.bf16 %v678
        %v895 = vunpack.c.h.s8.bf16 %v679
        %v896 = vunpack.c.h.s8.bf16 %v680
        %v897 = vunpack.c.l.s8.bf16 %v681
        %v898 = vunpack.c.l.s8.bf16 %v682
        %v899 = vunpack.c.l.s8.bf16 %v683
        %v900 = vunpack.c.l.s8.bf16 %v684
        %v901 = vunpack.c.l.s8.bf16 %v685
        %v902 = vunpack.c.l.s8.bf16 %v686
        %v903 = vunpack.c.l.s8.bf16 %v687
        %v904 = vunpack.c.l.s8.bf16 %v688
        %v905 = vunpack.c.h.s8.bf16 %v681
        %v906 = vunpack.c.h.s8.bf16 %v682
        %v907 = vunpack.c.h.s8.bf16 %v683
        %v908 = vunpack.c.h.s8.bf16 %v684
        %v909 = vunpack.c.h.s8.bf16 %v685
        %v910 = vunpack.c.h.s8.bf16 %v686
        %v911 = vunpack.c.h.s8.bf16 %v687
        %v912 = vunpack.c.h.s8.bf16 %v688
        %v913 = vunpack.c.l.s8.bf16 %v689
        %v914 = vunpack.c.l.s8.bf16 %v690
        %v915 = vunpack.c.l.s8.bf16 %v691
        %v916 = vunpack.c.l.s8.bf16 %v692
        %v917 = vunpack.c.l.s8.bf16 %v693
        %v918 = vunpack.c.l.s8.bf16 %v694
        %v919 = vunpack.c.l.s8.bf16 %v695
        %v920 = vunpack.c.l.s8.bf16 %v696
        %v921 = vunpack.c.h.s8.bf16 %v689
        %v922 = vunpack.c.h.s8.bf16 %v690
        %v923 = vunpack.c.h.s8.bf16 %v691
        %v924 = vunpack.c.h.s8.bf16 %v692
        %v925 = vunpack.c.h.s8.bf16 %v693
        %v926 = vunpack.c.h.s8.bf16 %v694
        %v927 = vunpack.c.h.s8.bf16 %v695
        %v928 = vunpack.c.h.s8.bf16 %v696
        %v929 = vunpack.c.l.s8.bf16 %v697
        %v930 = vunpack.c.l.s8.bf16 %v698
        %v931 = vunpack.c.l.s8.bf16 %v699
        %v932 = vunpack.c.l.s8.bf16 %v700
        %v933 = vunpack.c.l.s8.bf16 %v701
        %v934 = vunpack.c.l.s8.bf16 %v702
        %v935 = vunpack.c.l.s8.bf16 %v703
        %v936 = vunpack.c.l.s8.bf16 %v704
        %v937 = vunpack.c.h.s8.bf16 %v697
        %v938 = vunpack.c.h.s8.bf16 %v698
        %v939 = vunpack.c.h.s8.bf16 %v699
        %v940 = vunpack.c.h.s8.bf16 %v700
        %v941 = vunpack.c.h.s8.bf16 %v701
        %v942 = vunpack.c.h.s8.bf16 %v702
        %v943 = vunpack.c.h.s8.bf16 %v703
        %v944 = vunpack.c.h.s8.bf16 %v704
        %v945 = vunpack.c.l.s8.bf16 %v705
        %v946 = vunpack.c.l.s8.bf16 %v706
        %v947 = vunpack.c.l.s8.bf16 %v707
        %v948 = vunpack.c.l.s8.bf16 %v708
        %v949 = vunpack.c.l.s8.bf16 %v709
        %v950 = vunpack.c.l.s8.bf16 %v710
        %v951 = vunpack.c.l.s8.bf16 %v711
        %v952 = vunpack.c.l.s8.bf16 %v712
        %v953 = vunpack.c.h.s8.bf16 %v705
        %v954 = vunpack.c.h.s8.bf16 %v706
        %v955 = vunpack.c.h.s8.bf16 %v707
        %v956 = vunpack.c.h.s8.bf16 %v708
        %v957 = vunpack.c.h.s8.bf16 %v709
        %v958 = vunpack.c.h.s8.bf16 %v710
        %v959 = vunpack.c.h.s8.bf16 %v711
        %v960 = vunpack.c.h.s8.bf16 %v712
        %v961 = vunpack.c.l.s8.bf16 %v713
        %v962 = vunpack.c.l.s8.bf16 %v714
        %v963 = vunpack.c.l.s8.bf16 %v715
        %v964 = vunpack.c.l.s8.bf16 %v716
        %v965 = vunpack.c.l.s8.bf16 %v717
        %v966 = vunpack.c.l.s8.bf16 %v718
        %v967 = vunpack.c.l.s8.bf16 %v719
        %v968 = vunpack.c.l.s8.bf16 %v720
        %v969 = vunpack.c.h.s8.bf16 %v713
        %v970 = vunpack.c.h.s8.bf16 %v714
        %v971 = vunpack.c.h.s8.bf16 %v715
        %v972 = vunpack.c.h.s8.bf16 %v716
        %v973 = vunpack.c.h.s8.bf16 %v717
        %v974 = vunpack.c.h.s8.bf16 %v718
        %v975 = vunpack.c.h.s8.bf16 %v719
        %v976 = vunpack.c.h.s8.bf16 %v720
        %v977 = vld [vmem:[%s382] sm:$0xf]
        %v978 = vld [vmem:[%s382 + $0x4] sm:$0xf]
        %v979 = vld [vmem:[%s382 + $0x8] sm:$0xf]
        %v980 = vld [vmem:[%s382 + $0xc] sm:$0xf]
        %v981 = vld [vmem:[%s382 + $0x10] sm:$0xf]
        %v982 = vld [vmem:[%s382 + $0x14] sm:$0xf]
        %v983 = vld [vmem:[%s382 + $0x18] sm:$0xf]
        %v984 = vld [vmem:[%s382 + $0x1c] sm:$0xf]
        %v985 = vld [vmem:[%s382 + $0x20] sm:$0xf]
        %v986 = vld [vmem:[%s382 + $0x24] sm:$0xf]
        %v987 = vld [vmem:[%s382 + $0x28] sm:$0xf]
        %v988 = vld [vmem:[%s382 + $0x2c] sm:$0xf]
        %v989 = vld [vmem:[%s382 + $0x30] sm:$0xf]
        %v990 = vld [vmem:[%s382 + $0x34] sm:$0xf]
        %v991 = vld [vmem:[%s382 + $0x38] sm:$0xf]
        %v992 = vld [vmem:[%s382 + $0x3c] sm:$0xf]
        %v993 = vld [vmem:[%s382 + $0x40] sm:$0xf]
        %v994 = vld [vmem:[%s382 + $0x44] sm:$0xf]
        %v995 = vld [vmem:[%s382 + $0x48] sm:$0xf]
        %v996 = vld [vmem:[%s382 + $0x4c] sm:$0xf]
        %v997 = vld [vmem:[%s382 + $0x50] sm:$0xf]
        %v998 = vld [vmem:[%s382 + $0x54] sm:$0xf]
        %v999 = vld [vmem:[%s382 + $0x58] sm:$0xf]
        %v1000 = vld [vmem:[%s382 + $0x5c] sm:$0xf]
        %v1001 = vld [vmem:[%s382 + $0x60] sm:$0xf]
        %v1002 = vld [vmem:[%s382 + $0x64] sm:$0xf]
        %v1003 = vld [vmem:[%s382 + $0x68] sm:$0xf]
        %v1004 = vld [vmem:[%s382 + $0x6c] sm:$0xf]
        %v1005 = vld [vmem:[%s382 + $0x70] sm:$0xf]
        %v1006 = vld [vmem:[%s382 + $0x74] sm:$0xf]
        %v1007 = vld [vmem:[%s382 + $0x78] sm:$0xf]
        %v1008 = vld [vmem:[%s382 + $0x7c] sm:$0xf]
        %v1009 = vld [vmem:[%s382 + $0x80] sm:$0xf]
        %v1010 = vld [vmem:[%s382 + $0x84] sm:$0xf]
        %v1011 = vld [vmem:[%s382 + $0x88] sm:$0xf]
        %v1012 = vld [vmem:[%s382 + $0x8c] sm:$0xf]
        %v1013 = vld [vmem:[%s382 + $0x90] sm:$0xf]
        %v1014 = vld [vmem:[%s382 + $0x94] sm:$0xf]
        %v1015 = vld [vmem:[%s382 + $0x98] sm:$0xf]
        %v1016 = vld [vmem:[%s382 + $0x9c] sm:$0xf]
        %v1017 = vld [vmem:[%s382 + $0xa0] sm:$0xf]
        %v1018 = vld [vmem:[%s382 + $0xa4] sm:$0xf]
        %v1019 = vld [vmem:[%s382 + $0xa8] sm:$0xf]
        %v1020 = vld [vmem:[%s382 + $0xac] sm:$0xf]
        %v1021 = vld [vmem:[%s382 + $0xb0] sm:$0xf]
        %v1022 = vld [vmem:[%s382 + $0xb4] sm:$0xf]
        %v1023 = vld [vmem:[%s382 + $0xb8] sm:$0xf]
        %v1024 = vld [vmem:[%s382 + $0xbc] sm:$0xf]
        %v1025 = vld [vmem:[%s382 + $0xc0] sm:$0xf]
        %v1026 = vld [vmem:[%s382 + $0xc4] sm:$0xf]
        %v1027 = vld [vmem:[%s382 + $0xc8] sm:$0xf]
        %v1028 = vld [vmem:[%s382 + $0xcc] sm:$0xf]
        %v1029 = vld [vmem:[%s382 + $0xd0] sm:$0xf]
        %v1030 = vld [vmem:[%s382 + $0xd4] sm:$0xf]
        %v1031 = vld [vmem:[%s382 + $0xd8] sm:$0xf]
        %v1032 = vld [vmem:[%s382 + $0xdc] sm:$0xf]
        %v1033 = vld [vmem:[%s382 + $0xe0] sm:$0xf]
        %v1034 = vld [vmem:[%s382 + $0xe4] sm:$0xf]
        %v1035 = vld [vmem:[%s382 + $0xe8] sm:$0xf]
        %v1036 = vld [vmem:[%s382 + $0xec] sm:$0xf]
        %v1037 = vld [vmem:[%s382 + $0xf0] sm:$0xf]
        %v1038 = vld [vmem:[%s382 + $0xf4] sm:$0xf]
        %v1039 = vld [vmem:[%s382 + $0xf8] sm:$0xf]
        %v1040 = vld [vmem:[%s382 + $0xfc] sm:$0xf]
        %v1041 = vld [vmem:[%s382 + $0x100] sm:$0xf]
        %v1042 = vld [vmem:[%s382 + $0x104] sm:$0xf]
        %v1043 = vld [vmem:[%s382 + $0x108] sm:$0xf]
        %v1044 = vld [vmem:[%s382 + $0x10c] sm:$0xf]
        %v1045 = vld [vmem:[%s382 + $0x110] sm:$0xf]
        %v1046 = vld [vmem:[%s382 + $0x114] sm:$0xf]
        %v1047 = vld [vmem:[%s382 + $0x118] sm:$0xf]
        %v1048 = vld [vmem:[%s382 + $0x11c] sm:$0xf]
        %v1049 = vld [vmem:[%s382 + $0x120] sm:$0xf]
        %v1050 = vld [vmem:[%s382 + $0x124] sm:$0xf]
        %v1051 = vld [vmem:[%s382 + $0x128] sm:$0xf]
        %v1052 = vld [vmem:[%s382 + $0x12c] sm:$0xf]
        %v1053 = vld [vmem:[%s382 + $0x130] sm:$0xf]
        %v1054 = vld [vmem:[%s382 + $0x134] sm:$0xf]
        %v1055 = vld [vmem:[%s382 + $0x138] sm:$0xf]
        %v1056 = vld [vmem:[%s382 + $0x13c] sm:$0xf]
        %v1057 = vld [vmem:[%s382 + $0x140] sm:$0xf]
        %v1058 = vld [vmem:[%s382 + $0x144] sm:$0xf]
        %v1059 = vld [vmem:[%s382 + $0x148] sm:$0xf]
        %v1060 = vld [vmem:[%s382 + $0x14c] sm:$0xf]
        %v1061 = vld [vmem:[%s382 + $0x150] sm:$0xf]
        %v1062 = vld [vmem:[%s382 + $0x154] sm:$0xf]
        %v1063 = vld [vmem:[%s382 + $0x158] sm:$0xf]
        %v1064 = vld [vmem:[%s382 + $0x15c] sm:$0xf]
        %v1065 = vld [vmem:[%s382 + $0x160] sm:$0xf]
        %v1066 = vld [vmem:[%s382 + $0x164] sm:$0xf]
        %v1067 = vld [vmem:[%s382 + $0x168] sm:$0xf]
        %v1068 = vld [vmem:[%s382 + $0x16c] sm:$0xf]
        %v1069 = vld [vmem:[%s382 + $0x170] sm:$0xf]
        %v1070 = vld [vmem:[%s382 + $0x174] sm:$0xf]
        %v1071 = vld [vmem:[%s382 + $0x178] sm:$0xf]
        %v1072 = vld [vmem:[%s382 + $0x17c] sm:$0xf]
        %v1073 = vld [vmem:[%s382 + $0x180] sm:$0xf]
        %v1074 = vld [vmem:[%s382 + $0x184] sm:$0xf]
        %v1075 = vld [vmem:[%s382 + $0x188] sm:$0xf]
        %v1076 = vld [vmem:[%s382 + $0x18c] sm:$0xf]
        %v1077 = vld [vmem:[%s382 + $0x190] sm:$0xf]
        %v1078 = vld [vmem:[%s382 + $0x194] sm:$0xf]
        %v1079 = vld [vmem:[%s382 + $0x198] sm:$0xf]
        %v1080 = vld [vmem:[%s382 + $0x19c] sm:$0xf]
        %v1081 = vld [vmem:[%s382 + $0x1a0] sm:$0xf]
        %v1082 = vld [vmem:[%s382 + $0x1a4] sm:$0xf]
        %v1083 = vld [vmem:[%s382 + $0x1a8] sm:$0xf]
        %v1084 = vld [vmem:[%s382 + $0x1ac] sm:$0xf]
        %v1085 = vld [vmem:[%s382 + $0x1b0] sm:$0xf]
        %v1086 = vld [vmem:[%s382 + $0x1b4] sm:$0xf]
        %v1087 = vld [vmem:[%s382 + $0x1b8] sm:$0xf]
        %v1088 = vld [vmem:[%s382 + $0x1bc] sm:$0xf]
        %v1089 = vld [vmem:[%s382 + $0x1c0] sm:$0xf]
        %v1090 = vld [vmem:[%s382 + $0x1c4] sm:$0xf]
        %v1091 = vld [vmem:[%s382 + $0x1c8] sm:$0xf]
        %v1092 = vld [vmem:[%s382 + $0x1cc] sm:$0xf]
        %v1093 = vld [vmem:[%s382 + $0x1d0] sm:$0xf]
        %v1094 = vld [vmem:[%s382 + $0x1d4] sm:$0xf]
        %v1095 = vld [vmem:[%s382 + $0x1d8] sm:$0xf]
        %v1096 = vld [vmem:[%s382 + $0x1dc] sm:$0xf]
        %v1097 = vld [vmem:[%s382 + $0x1e0] sm:$0xf]
        %v1098 = vld [vmem:[%s382 + $0x1e4] sm:$0xf]
        %v1099 = vld [vmem:[%s382 + $0x1e8] sm:$0xf]
        %v1100 = vld [vmem:[%s382 + $0x1ec] sm:$0xf]
        %v1101 = vld [vmem:[%s382 + $0x1f0] sm:$0xf]
        %v1102 = vld [vmem:[%s382 + $0x1f4] sm:$0xf]
        %v1103 = vld [vmem:[%s382 + $0x1f8] sm:$0xf]
        %v1104 = vld [vmem:[%s382 + $0x1fc] sm:$0xf]
        %v1233 = vunpack.c.l.b16 %v977
        %v1234 = vunpack.c.l.b16 %v978
        %v1235 = vunpack.c.l.b16 %v979
        %v1236 = vunpack.c.l.b16 %v980
        %v1237 = vunpack.c.l.b16 %v981
        %v1238 = vunpack.c.l.b16 %v982
        %v1239 = vunpack.c.l.b16 %v983
        %v1240 = vunpack.c.l.b16 %v984
        %v1241 = vunpack.c.l.b16 %v985
        %v1242 = vunpack.c.l.b16 %v986
        %v1243 = vunpack.c.l.b16 %v987
        %v1244 = vunpack.c.l.b16 %v988
        %v1245 = vunpack.c.l.b16 %v989
        %v1246 = vunpack.c.l.b16 %v990
        %v1247 = vunpack.c.l.b16 %v991
        %v1248 = vunpack.c.l.b16 %v992
        %v1249 = vunpack.c.l.b16 %v993
        %v1250 = vunpack.c.l.b16 %v994
        %v1251 = vunpack.c.l.b16 %v995
        %v1252 = vunpack.c.l.b16 %v996
        %v1253 = vunpack.c.l.b16 %v997
        %v1254 = vunpack.c.l.b16 %v998
        %v1255 = vunpack.c.l.b16 %v999
        %v1256 = vunpack.c.l.b16 %v1000
        %v1257 = vunpack.c.l.b16 %v1001
        %v1258 = vunpack.c.l.b16 %v1002
        %v1259 = vunpack.c.l.b16 %v1003
        %v1260 = vunpack.c.l.b16 %v1004
        %v1261 = vunpack.c.l.b16 %v1005
        %v1262 = vunpack.c.l.b16 %v1006
        %v1263 = vunpack.c.l.b16 %v1007
        %v1264 = vunpack.c.l.b16 %v1008
        %v1265 = vunpack.c.l.b16 %v1009
        %v1266 = vunpack.c.l.b16 %v1010
        %v1267 = vunpack.c.l.b16 %v1011
        %v1268 = vunpack.c.l.b16 %v1012
        %v1269 = vunpack.c.l.b16 %v1013
        %v1270 = vunpack.c.l.b16 %v1014
        %v1271 = vunpack.c.l.b16 %v1015
        %v1272 = vunpack.c.l.b16 %v1016
        %v1273 = vunpack.c.l.b16 %v1017
        %v1274 = vunpack.c.l.b16 %v1018
        %v1275 = vunpack.c.l.b16 %v1019
        %v1276 = vunpack.c.l.b16 %v1020
        %v1277 = vunpack.c.l.b16 %v1021
        %v1278 = vunpack.c.l.b16 %v1022
        %v1279 = vunpack.c.l.b16 %v1023
        %v1280 = vunpack.c.l.b16 %v1024
        %v1281 = vunpack.c.l.b16 %v1025
        %v1282 = vunpack.c.l.b16 %v1026
        %v1283 = vunpack.c.l.b16 %v1027
        %v1284 = vunpack.c.l.b16 %v1028
        %v1285 = vunpack.c.l.b16 %v1029
        %v1286 = vunpack.c.l.b16 %v1030
        %v1287 = vunpack.c.l.b16 %v1031
        %v1288 = vunpack.c.l.b16 %v1032
        %v1289 = vunpack.c.l.b16 %v1033
        %v1290 = vunpack.c.l.b16 %v1034
        %v1291 = vunpack.c.l.b16 %v1035
        %v1292 = vunpack.c.l.b16 %v1036
        %v1293 = vunpack.c.l.b16 %v1037
        %v1294 = vunpack.c.l.b16 %v1038
        %v1295 = vunpack.c.l.b16 %v1039
        %v1296 = vunpack.c.l.b16 %v1040
        %v1297 = vunpack.c.l.b16 %v1041
        %v1298 = vunpack.c.l.b16 %v1042
        %v1299 = vunpack.c.l.b16 %v1043
        %v1300 = vunpack.c.l.b16 %v1044
        %v1301 = vunpack.c.l.b16 %v1045
        %v1302 = vunpack.c.l.b16 %v1046
        %v1303 = vunpack.c.l.b16 %v1047
        %v1304 = vunpack.c.l.b16 %v1048
        %v1305 = vunpack.c.l.b16 %v1049
        %v1306 = vunpack.c.l.b16 %v1050
        %v1307 = vunpack.c.l.b16 %v1051
        %v1308 = vunpack.c.l.b16 %v1052
        %v1309 = vunpack.c.l.b16 %v1053
        %v1310 = vunpack.c.l.b16 %v1054
        %v1311 = vunpack.c.l.b16 %v1055
        %v1312 = vunpack.c.l.b16 %v1056
        %v1313 = vunpack.c.l.b16 %v1057
        %v1314 = vunpack.c.l.b16 %v1058
        %v1315 = vunpack.c.l.b16 %v1059
        %v1316 = vunpack.c.l.b16 %v1060
        %v1317 = vunpack.c.l.b16 %v1061
        %v1318 = vunpack.c.l.b16 %v1062
        %v1319 = vunpack.c.l.b16 %v1063
        %v1320 = vunpack.c.l.b16 %v1064
        %v1321 = vunpack.c.l.b16 %v1065
        %v1322 = vunpack.c.l.b16 %v1066
        %v1323 = vunpack.c.l.b16 %v1067
        %v1324 = vunpack.c.l.b16 %v1068
        %v1325 = vunpack.c.l.b16 %v1069
        %v1326 = vunpack.c.l.b16 %v1070
        %v1327 = vunpack.c.l.b16 %v1071
        %v1328 = vunpack.c.l.b16 %v1072
        %v1329 = vunpack.c.l.b16 %v1073
        %v1330 = vunpack.c.l.b16 %v1074
        %v1331 = vunpack.c.l.b16 %v1075
        %v1332 = vunpack.c.l.b16 %v1076
        %v1333 = vunpack.c.l.b16 %v1077
        %v1334 = vunpack.c.l.b16 %v1078
        %v1335 = vunpack.c.l.b16 %v1079
        %v1336 = vunpack.c.l.b16 %v1080
        %v1337 = vunpack.c.l.b16 %v1081
        %v1338 = vunpack.c.l.b16 %v1082
        %v1339 = vunpack.c.l.b16 %v1083
        %v1340 = vunpack.c.l.b16 %v1084
        %v1341 = vunpack.c.l.b16 %v1085
        %v1342 = vunpack.c.l.b16 %v1086
        %v1343 = vunpack.c.l.b16 %v1087
        %v1344 = vunpack.c.l.b16 %v1088
        %v1345 = vunpack.c.l.b16 %v1089
        %v1346 = vunpack.c.l.b16 %v1090
        %v1347 = vunpack.c.l.b16 %v1091
        %v1348 = vunpack.c.l.b16 %v1092
        %v1349 = vunpack.c.l.b16 %v1093
        %v1350 = vunpack.c.l.b16 %v1094
        %v1351 = vunpack.c.l.b16 %v1095
        %v1352 = vunpack.c.l.b16 %v1096
        %v1353 = vunpack.c.l.b16 %v1097
        %v1354 = vunpack.c.l.b16 %v1098
        %v1355 = vunpack.c.l.b16 %v1099
        %v1356 = vunpack.c.l.b16 %v1100
        %v1357 = vunpack.c.l.b16 %v1101
        %v1358 = vunpack.c.l.b16 %v1102
        %v1359 = vunpack.c.l.b16 %v1103
        %v1360 = vunpack.c.l.b16 %v1104
        %v1361 = vpack.c.b16 %v1234, %v1233
        %v1362 = vpack.c.b16 %v1236, %v1235
        %v1363 = vpack.c.b16 %v1238, %v1237
        %v1364 = vpack.c.b16 %v1240, %v1239
        %v1365 = vpack.c.b16 %v1242, %v1241
        %v1366 = vpack.c.b16 %v1244, %v1243
        %v1367 = vpack.c.b16 %v1246, %v1245
        %v1368 = vpack.c.b16 %v1248, %v1247
        %v1369 = vpack.c.b16 %v1250, %v1249
        %v1370 = vpack.c.b16 %v1252, %v1251
        %v1371 = vpack.c.b16 %v1254, %v1253
        %v1372 = vpack.c.b16 %v1256, %v1255
        %v1373 = vpack.c.b16 %v1258, %v1257
        %v1374 = vpack.c.b16 %v1260, %v1259
        %v1375 = vpack.c.b16 %v1262, %v1261
        %v1376 = vpack.c.b16 %v1264, %v1263
        %v1377 = vpack.c.b16 %v1266, %v1265
        %v1378 = vpack.c.b16 %v1268, %v1267
        %v1379 = vpack.c.b16 %v1270, %v1269
        %v1380 = vpack.c.b16 %v1272, %v1271
        %v1381 = vpack.c.b16 %v1274, %v1273
        %v1382 = vpack.c.b16 %v1276, %v1275
        %v1383 = vpack.c.b16 %v1278, %v1277
        %v1384 = vpack.c.b16 %v1280, %v1279
        %v1385 = vpack.c.b16 %v1282, %v1281
        %v1386 = vpack.c.b16 %v1284, %v1283
        %v1387 = vpack.c.b16 %v1286, %v1285
        %v1388 = vpack.c.b16 %v1288, %v1287
        %v1389 = vpack.c.b16 %v1290, %v1289
        %v1390 = vpack.c.b16 %v1292, %v1291
        %v1391 = vpack.c.b16 %v1294, %v1293
        %v1392 = vpack.c.b16 %v1296, %v1295
        %v1393 = vpack.c.b16 %v1298, %v1297
        %v1394 = vpack.c.b16 %v1300, %v1299
        %v1395 = vpack.c.b16 %v1302, %v1301
        %v1396 = vpack.c.b16 %v1304, %v1303
        %v1397 = vpack.c.b16 %v1306, %v1305
        %v1398 = vpack.c.b16 %v1308, %v1307
        %v1399 = vpack.c.b16 %v1310, %v1309
        %v1400 = vpack.c.b16 %v1312, %v1311
        %v1401 = vpack.c.b16 %v1314, %v1313
        %v1402 = vpack.c.b16 %v1316, %v1315
        %v1403 = vpack.c.b16 %v1318, %v1317
        %v1404 = vpack.c.b16 %v1320, %v1319
        %v1405 = vpack.c.b16 %v1322, %v1321
        %v1406 = vpack.c.b16 %v1324, %v1323
        %v1407 = vpack.c.b16 %v1326, %v1325
        %v1408 = vpack.c.b16 %v1328, %v1327
        %v1409 = vpack.c.b16 %v1330, %v1329
        %v1410 = vpack.c.b16 %v1332, %v1331
        %v1411 = vpack.c.b16 %v1334, %v1333
        %v1412 = vpack.c.b16 %v1336, %v1335
        %v1413 = vpack.c.b16 %v1338, %v1337
        %v1414 = vpack.c.b16 %v1340, %v1339
        %v1415 = vpack.c.b16 %v1342, %v1341
        %v1416 = vpack.c.b16 %v1344, %v1343
        %v1417 = vpack.c.b16 %v1346, %v1345
        %v1418 = vpack.c.b16 %v1348, %v1347
        %v1419 = vpack.c.b16 %v1350, %v1349
        %v1420 = vpack.c.b16 %v1352, %v1351
        %v1421 = vpack.c.b16 %v1354, %v1353
        %v1422 = vpack.c.b16 %v1356, %v1355
        %v1423 = vpack.c.b16 %v1358, %v1357
        %v1424 = vpack.c.b16 %v1360, %v1359
        %1489 = vmatprep.subr.bf16.mxu0 0
        %1490 = vmatpush1.bf16.msra.mxu0 %v1361
        %1491 = vmatprep.subr.bf16.mxu0 0
        %1492 = vmatpush1.bf16.msra.mxu0 %v1362
        %1493 = vmatprep.subr.bf16.mxu0 0
        %1494 = vmatpush1.bf16.msra.mxu0 %v1363
        %1495 = vmatprep.subr.bf16.mxu0 0
        %1496 = vmatpush1.bf16.msra.mxu0 %v1364
        %1497 = vmatprep.subr.bf16.mxu0 0
        %1498 = vmatpush1.bf16.msra.mxu0 %v1365
        %1499 = vmatprep.subr.bf16.mxu0 0
        %1500 = vmatpush1.bf16.msra.mxu0 %v1366
        %1501 = vmatprep.subr.bf16.mxu0 0
        %1502 = vmatpush1.bf16.msra.mxu0 %v1367
        %1503 = vmatprep.subr.bf16.mxu0 0
        %1504 = vmatpush1.bf16.msra.mxu0 %v1368
        %1505 = vmatprep.subr.bf16.mxu0 0
        %1506 = vmatpush1.bf16.msra.mxu0 %v1369
        %1507 = vmatprep.subr.bf16.mxu0 0
        %1508 = vmatpush1.bf16.msra.mxu0 %v1370
        %1509 = vmatprep.subr.bf16.mxu0 0
        %1510 = vmatpush1.bf16.msra.mxu0 %v1371
        %1511 = vmatprep.subr.bf16.mxu0 0
        %1512 = vmatpush1.bf16.msra.mxu0 %v1372
        %1513 = vmatprep.subr.bf16.mxu0 0
        %1514 = vmatpush1.bf16.msra.mxu0 %v1373
        %1515 = vmatprep.subr.bf16.mxu0 0
        %1516 = vmatpush1.bf16.msra.mxu0 %v1374
        %1517 = vmatprep.subr.bf16.mxu0 0
        %1518 = vmatpush1.bf16.msra.mxu0 %v1375
        %1519 = vmatprep.subr.bf16.mxu0 0
        %1520 = vmatpush1.bf16.msra.mxu0 %v1376
        %1521 = vmatprep.mubr.bf16.mxu0 %v722
        %1522 = vmatmul.mubr.bf16.gmra.mrb[0].mxu0 %v721
        %v1523 = vpop.f32.mrb[0].mxu0
        %v1524 = vadd.f32 0.0, %v1523
        %v1525 = vpop.f32.mrb[0].mxu0
        %v1526 = vpop.f32.mrb[0].mxu0
        %v1527 = vadd.f32 0.0, %v1526
        %v1528 = vpop.f32.mrb[0].mxu0
        %1529 = vmatprep.mubr.bf16.mxu0 %v730
        %1530 = vmatmul.mubr.bf16.gmra.mrb[0].mxu0 %v729
        %v1531 = vpop.f32.mrb[0].mxu0
        %v1532 = vadd.f32 0.0, %v1531
        %v1533 = vpop.f32.mrb[0].mxu0
        %v1534 = vpop.f32.mrb[0].mxu0
        %v1535 = vadd.f32 0.0, %v1534
        %v1536 = vpop.f32.mrb[0].mxu0
        %1537 = vmatprep.mubr.bf16.mxu0 %v738
        %1538 = vmatmul.mubr.bf16.gmra.mrb[0].mxu0 %v737
        %v1539 = vpop.f32.mrb[0].mxu0
        %v1540 = vadd.f32 0.0, %v1539
        %v1541 = vpop.f32.mrb[0].mxu0
        %v1542 = vpop.f32.mrb[0].mxu0
        %v1543 = vadd.f32 0.0, %v1542
        %v1544 = vpop.f32.mrb[0].mxu0
        %1545 = vmatprep.mubr.bf16.mxu0 %v746
        %1546 = vmatmul.mubr.bf16.gmra.mrb[0].mxu0 %v745
        %v1547 = vpop.f32.mrb[0].mxu0
        %v1548 = vadd.f32 0.0, %v1547
        %v1549 = vpop.f32.mrb[0].mxu0
        %v1550 = vpop.f32.mrb[0].mxu0
        %v1551 = vadd.f32 0.0, %v1550
        %v1552 = vpop.f32.mrb[0].mxu0
        %1553 = vmatprep.mubr.bf16.mxu0 %v754
        %1554 = vmatmul.mubr.bf16.gmra.mrb[0].mxu0 %v753
        %v1555 = vpop.f32.mrb[0].mxu0
        %v1556 = vadd.f32 0.0, %v1555
        %v1557 = vpop.f32.mrb[0].mxu0
        %v1558 = vpop.f32.mrb[0].mxu0
        %v1559 = vadd.f32 0.0, %v1558
        %v1560 = vpop.f32.mrb[0].mxu0
        %1561 = vmatprep.mubr.bf16.mxu0 %v762
        %1562 = vmatmul.mubr.bf16.gmra.mrb[0].mxu0 %v761
        %v1563 = vpop.f32.mrb[0].mxu0
        %v1564 = vadd.f32 0.0, %v1563
        %v1565 = vpop.f32.mrb[0].mxu0
        %v1566 = vpop.f32.mrb[0].mxu0
        %v1567 = vadd.f32 0.0, %v1566
        %v1568 = vpop.f32.mrb[0].mxu0
        %1569 = vmatprep.mubr.bf16.mxu0 %v770
        %1570 = vmatmul.mubr.bf16.gmra.mrb[0].mxu0 %v769
        %v1571 = vpop.f32.mrb[0].mxu0
        %v1572 = vadd.f32 0.0, %v1571
        %v1573 = vpop.f32.mrb[0].mxu0
        %v1574 = vpop.f32.mrb[0].mxu0
        %v1575 = vadd.f32 0.0, %v1574
        %v1576 = vpop.f32.mrb[0].mxu0
        %1577 = vmatprep.mubr.bf16.mxu0 %v778
        %1578 = vmatmul.mubr.bf16.gmra.mrb[0].mxu0 %v777
        %v1579 = vpop.f32.mrb[0].mxu0
        %v1580 = vadd.f32 0.0, %v1579
        %v1581 = vpop.f32.mrb[0].mxu0
        %v1582 = vpop.f32.mrb[0].mxu0
        %v1583 = vadd.f32 0.0, %v1582
        %v1584 = vpop.f32.mrb[0].mxu0
        %1585 = vmatprep.mubr.bf16.mxu0 %v786
        %1586 = vmatmul.mubr.bf16.gmra.mrb[0].mxu0 %v785
        %v1587 = vpop.f32.mrb[0].mxu0
        %v1588 = vadd.f32 0.0, %v1587
        %v1589 = vpop.f32.mrb[0].mxu0
        %v1590 = vpop.f32.mrb[0].mxu0
        %v1591 = vadd.f32 0.0, %v1590
        %v1592 = vpop.f32.mrb[0].mxu0
        %1593 = vmatprep.mubr.bf16.mxu0 %v794
        %1594 = vmatmul.mubr.bf16.gmra.mrb[0].mxu0 %v793
        %v1595 = vpop.f32.mrb[0].mxu0
        %v1596 = vadd.f32 0.0, %v1595
        %v1597 = vpop.f32.mrb[0].mxu0
        %v1598 = vpop.f32.mrb[0].mxu0
        %v1599 = vadd.f32 0.0, %v1598
        %v1600 = vpop.f32.mrb[0].mxu0
        %1601 = vmatprep.mubr.bf16.mxu0 %v802
        %1602 = vmatmul.mubr.bf16.gmra.mrb[0].mxu0 %v801
        %v1603 = vpop.f32.mrb[0].mxu0
        %v1604 = vadd.f32 0.0, %v1603
        %v1605 = vpop.f32.mrb[0].mxu0
        %v1606 = vpop.f32.mrb[0].mxu0
        %v1607 = vadd.f32 0.0, %v1606
        %v1608 = vpop.f32.mrb[0].mxu0
        %1609 = vmatprep.mubr.bf16.mxu0 %v810
        %1610 = vmatmul.mubr.bf16.gmra.mrb[0].mxu0 %v809
        %v1611 = vpop.f32.mrb[0].mxu0
        %v1612 = vadd.f32 0.0, %v1611
        %v1613 = vpop.f32.mrb[0].mxu0
        %v1614 = vpop.f32.mrb[0].mxu0
        %v1615 = vadd.f32 0.0, %v1614
        %v1616 = vpop.f32.mrb[0].mxu0
        %1617 = vmatprep.mubr.bf16.mxu0 %v818
        %1618 = vmatmul.mubr.bf16.gmra.mrb[0].mxu0 %v817
        %v1619 = vpop.f32.mrb[0].mxu0
        %v1620 = vadd.f32 0.0, %v1619
        %v1621 = vpop.f32.mrb[0].mxu0
        %v1622 = vpop.f32.mrb[0].mxu0
        %v1623 = vadd.f32 0.0, %v1622
        %v1624 = vpop.f32.mrb[0].mxu0
        %1625 = vmatprep.mubr.bf16.mxu0 %v826
        %1626 = vmatmul.mubr.bf16.gmra.mrb[0].mxu0 %v825
        %v1627 = vpop.f32.mrb[0].mxu0
        %v1628 = vadd.f32 0.0, %v1627
        %v1629 = vpop.f32.mrb[0].mxu0
        %v1630 = vpop.f32.mrb[0].mxu0
        %v1631 = vadd.f32 0.0, %v1630
        %v1632 = vpop.f32.mrb[0].mxu0
        %1633 = vmatprep.mubr.bf16.mxu0 %v834
        %1634 = vmatmul.mubr.bf16.gmra.mrb[0].mxu0 %v833
        %v1635 = vpop.f32.mrb[0].mxu0
        %v1636 = vadd.f32 0.0, %v1635
        %v1637 = vpop.f32.mrb[0].mxu0
        %v1638 = vpop.f32.mrb[0].mxu0
        %v1639 = vadd.f32 0.0, %v1638
        %v1640 = vpop.f32.mrb[0].mxu0
        %1641 = vmatprep.mubr.bf16.mxu0 %v842
        %1642 = vmatmul.mubr.bf16.gmra.mrb[0].mxu0 %v841
        %v1643 = vpop.f32.mrb[0].mxu0
        %v1644 = vadd.f32 0.0, %v1643
        %v1645 = vpop.f32.mrb[0].mxu0
        %v1646 = vpop.f32.mrb[0].mxu0
        %v1647 = vadd.f32 0.0, %v1646
        %v1648 = vpop.f32.mrb[0].mxu0
        %1649 = vmatprep.mubr.bf16.mxu0 %v850
        %1650 = vmatmul.mubr.bf16.gmra.mrb[0].mxu0 %v849
        %v1651 = vpop.f32.mrb[0].mxu0
        %v1652 = vadd.f32 0.0, %v1651
        %v1653 = vpop.f32.mrb[0].mxu0
        %v1654 = vpop.f32.mrb[0].mxu0
        %v1655 = vadd.f32 0.0, %v1654
        %v1656 = vpop.f32.mrb[0].mxu0
        %1657 = vmatprep.mubr.bf16.mxu0 %v858
        %1658 = vmatmul.mubr.bf16.gmra.mrb[0].mxu0 %v857
        %v1659 = vpop.f32.mrb[0].mxu0
        %v1660 = vadd.f32 0.0, %v1659
        %v1661 = vpop.f32.mrb[0].mxu0
        %v1662 = vpop.f32.mrb[0].mxu0
        %v1663 = vadd.f32 0.0, %v1662
        %v1664 = vpop.f32.mrb[0].mxu0
        %1665 = vmatprep.mubr.bf16.mxu0 %v866
        %1666 = vmatmul.mubr.bf16.gmra.mrb[0].mxu0 %v865
        %v1667 = vpop.f32.mrb[0].mxu0
        %v1668 = vadd.f32 0.0, %v1667
        %v1669 = vpop.f32.mrb[0].mxu0
        %v1670 = vpop.f32.mrb[0].mxu0
        %v1671 = vadd.f32 0.0, %v1670
        %v1672 = vpop.f32.mrb[0].mxu0
        %1673 = vmatprep.mubr.bf16.mxu0 %v874
        %1674 = vmatmul.mubr.bf16.gmra.mrb[0].mxu0 %v873
        %v1675 = vpop.f32.mrb[0].mxu0
        %v1676 = vadd.f32 0.0, %v1675
        %v1677 = vpop.f32.mrb[0].mxu0
        %v1678 = vpop.f32.mrb[0].mxu0
        %v1679 = vadd.f32 0.0, %v1678
        %v1680 = vpop.f32.mrb[0].mxu0
        %1681 = vmatprep.mubr.bf16.mxu0 %v882
        %1682 = vmatmul.mubr.bf16.gmra.mrb[0].mxu0 %v881
        %v1683 = vpop.f32.mrb[0].mxu0
        %v1684 = vadd.f32 0.0, %v1683
        %v1685 = vpop.f32.mrb[0].mxu0
        %v1686 = vpop.f32.mrb[0].mxu0
        %v1687 = vadd.f32 0.0, %v1686
        %v1688 = vpop.f32.mrb[0].mxu0
        %1689 = vmatprep.mubr.bf16.mxu0 %v890
        %1690 = vmatmul.mubr.bf16.gmra.mrb[0].mxu0 %v889
        %v1691 = vpop.f32.mrb[0].mxu0
        %v1692 = vadd.f32 0.0, %v1691
        %v1693 = vpop.f32.mrb[0].mxu0
        %v1694 = vpop.f32.mrb[0].mxu0
        %v1695 = vadd.f32 0.0, %v1694
        %v1696 = vpop.f32.mrb[0].mxu0
        %1697 = vmatprep.mubr.bf16.mxu0 %v898
        %1698 = vmatmul.mubr.bf16.gmra.mrb[0].mxu0 %v897
        %v1699 = vpop.f32.mrb[0].mxu0
        %v1700 = vadd.f32 0.0, %v1699
        %v1701 = vpop.f32.mrb[0].mxu0
        %v1702 = vpop.f32.mrb[0].mxu0
        %v1703 = vadd.f32 0.0, %v1702
        %v1704 = vpop.f32.mrb[0].mxu0
        %1705 = vmatprep.mubr.bf16.mxu0 %v906
        %1706 = vmatmul.mubr.bf16.gmra.mrb[0].mxu0 %v905
        %v1707 = vpop.f32.mrb[0].mxu0
        %v1708 = vadd.f32 0.0, %v1707
        %v1709 = vpop.f32.mrb[0].mxu0
        %v1710 = vpop.f32.mrb[0].mxu0
        %v1711 = vadd.f32 0.0, %v1710
        %v1712 = vpop.f32.mrb[0].mxu0
        %1713 = vmatprep.mubr.bf16.mxu0 %v914
        %1714 = vmatmul.mubr.bf16.gmra.mrb[0].mxu0 %v913
        %v1715 = vpop.f32.mrb[0].mxu0
        %v1716 = vadd.f32 0.0, %v1715
        %v1717 = vpop.f32.mrb[0].mxu0
        %v1718 = vpop.f32.mrb[0].mxu0
        %v1719 = vadd.f32 0.0, %v1718
        %v1720 = vpop.f32.mrb[0].mxu0
        %1721 = vmatprep.mubr.bf16.mxu0 %v922
        %1722 = vmatmul.mubr.bf16.gmra.mrb[0].mxu0 %v921
        %v1723 = vpop.f32.mrb[0].mxu0
        %v1724 = vadd.f32 0.0, %v1723
        %v1725 = vpop.f32.mrb[0].mxu0
        %v1726 = vpop.f32.mrb[0].mxu0
        %v1727 = vadd.f32 0.0, %v1726
        %v1728 = vpop.f32.mrb[0].mxu0
        %1729 = vmatprep.mubr.bf16.mxu0 %v930
        %1730 = vmatmul.mubr.bf16.gmra.mrb[0].mxu0 %v929
        %v1731 = vpop.f32.mrb[0].mxu0
        %v1732 = vadd.f32 0.0, %v1731
        %v1733 = vpop.f32.mrb[0].mxu0
        %v1734 = vpop.f32.mrb[0].mxu0
        %v1735 = vadd.f32 0.0, %v1734
        %v1736 = vpop.f32.mrb[0].mxu0
        %1737 = vmatprep.mubr.bf16.mxu0 %v938
        %1738 = vmatmul.mubr.bf16.gmra.mrb[0].mxu0 %v937
        %v1739 = vpop.f32.mrb[0].mxu0
        %v1740 = vadd.f32 0.0, %v1739
        %v1741 = vpop.f32.mrb[0].mxu0
        %v1742 = vpop.f32.mrb[0].mxu0
        %v1743 = vadd.f32 0.0, %v1742
        %v1744 = vpop.f32.mrb[0].mxu0
        %1745 = vmatprep.mubr.bf16.mxu0 %v946
        %1746 = vmatmul.mubr.bf16.gmra.mrb[0].mxu0 %v945
        %v1747 = vpop.f32.mrb[0].mxu0
        %v1748 = vadd.f32 0.0, %v1747
        %v1749 = vpop.f32.mrb[0].mxu0
        %v1750 = vpop.f32.mrb[0].mxu0
        %v1751 = vadd.f32 0.0, %v1750
        %v1752 = vpop.f32.mrb[0].mxu0
        %1753 = vmatprep.mubr.bf16.mxu0 %v954
        %1754 = vmatmul.mubr.bf16.gmra.mrb[0].mxu0 %v953
        %v1755 = vpop.f32.mrb[0].mxu0
        %v1756 = vadd.f32 0.0, %v1755
        %v1757 = vpop.f32.mrb[0].mxu0
        %v1758 = vpop.f32.mrb[0].mxu0
        %v1759 = vadd.f32 0.0, %v1758
        %v1760 = vpop.f32.mrb[0].mxu0
        %1761 = vmatprep.mubr.bf16.mxu0 %v962
        %1762 = vmatmul.mubr.bf16.gmra.mrb[0].mxu0 %v961
        %v1763 = vpop.f32.mrb[0].mxu0
        %v1764 = vadd.f32 0.0, %v1763
        %v1765 = vpop.f32.mrb[0].mxu0
        %v1766 = vpop.f32.mrb[0].mxu0
        %v1767 = vadd.f32 0.0, %v1766
        %v1768 = vpop.f32.mrb[0].mxu0
        %1769 = vmatprep.mubr.bf16.mxu0 %v970
        %1770 = vmatmul.mubr.bf16.gmra.mrb[0].mxu0 %v969
        %v1771 = vpop.f32.mrb[0].mxu0
        %v1772 = vadd.f32 0.0, %v1771
        %v1773 = vpop.f32.mrb[0].mxu0
        %v1774 = vpop.f32.mrb[0].mxu0
        %v1775 = vadd.f32 0.0, %v1774
        %v1776 = vpop.f32.mrb[0].mxu0
        %1777 = vdwg.mxu0
        %1778 = vmatprep.subr.bf16.mxu0 0
        %1779 = vmatpush1.bf16.msra.mxu0 %v1377
        %1780 = vmatprep.subr.bf16.mxu0 0
        %1781 = vmatpush1.bf16.msra.mxu0 %v1378
        %1782 = vmatprep.subr.bf16.mxu0 0
        %1783 = vmatpush1.bf16.msra.mxu0 %v1379
        %1784 = vmatprep.subr.bf16.mxu0 0
        %1785 = vmatpush1.bf16.msra.mxu0 %v1380
        %1786 = vmatprep.subr.bf16.mxu0 0
        %1787 = vmatpush1.bf16.msra.mxu0 %v1381
        %1788 = vmatprep.subr.bf16.mxu0 0
        %1789 = vmatpush1.bf16.msra.mxu0 %v1382
        %1790 = vmatprep.subr.bf16.mxu0 0
        %1791 = vmatpush1.bf16.msra.mxu0 %v1383
        %1792 = vmatprep.subr.bf16.mxu0 0
        %1793 = vmatpush1.bf16.msra.mxu0 %v1384
        %1794 = vmatprep.subr.bf16.mxu0 0
        %1795 = vmatpush1.bf16.msra.mxu0 %v1385
        %1796 = vmatprep.subr.bf16.mxu0 0
        %1797 = vmatpush1.bf16.msra.mxu0 %v1386
        %1798 = vmatprep.subr.bf16.mxu0 0
        %1799 = vmatpush1.bf16.msra.mxu0 %v1387
        %1800 = vmatprep.subr.bf16.mxu0 0
        %1801 = vmatpush1.bf16.msra.mxu0 %v1388
        %1802 = vmatprep.subr.bf16.mxu0 0
        %1803 = vmatpush1.bf16.msra.mxu0 %v1389
        %1804 = vmatprep.subr.bf16.mxu0 0
        %1805 = vmatpush1.bf16.msra.mxu0 %v1390
        %1806 = vmatprep.subr.bf16.mxu0 0
        %1807 = vmatpush1.bf16.msra.mxu0 %v1391
        %1808 = vmatprep.subr.bf16.mxu0 0
        %1809 = vmatpush1.bf16.msra.mxu0 %v1392
        %1810 = vmatprep.mubr.bf16.mxu0 %v724
        %1811 = vmatmul.mubr.bf16.gmra.mrb[0].mxu0 %v723
        %v1812 = vpop.f32.mrb[0].mxu0
        %v1813 = vadd.f32 %v1524, %v1812
        %v1814 = vpop.f32.mrb[0].mxu0
        %v1815 = vpop.f32.mrb[0].mxu0
        %v1816 = vadd.f32 %v1527, %v1815
        %v1817 = vpop.f32.mrb[0].mxu0
        %1818 = vmatprep.mubr.bf16.mxu0 %v732
        %1819 = vmatmul.mubr.bf16.gmra.mrb[0].mxu0 %v731
        %v1820 = vpop.f32.mrb[0].mxu0
        %v1821 = vadd.f32 %v1532, %v1820
        %v1822 = vpop.f32.mrb[0].mxu0
        %v1823 = vpop.f32.mrb[0].mxu0
        %v1824 = vadd.f32 %v1535, %v1823
        %v1825 = vpop.f32.mrb[0].mxu0
        %1826 = vmatprep.mubr.bf16.mxu0 %v740
        %1827 = vmatmul.mubr.bf16.gmra.mrb[0].mxu0 %v739
        %v1828 = vpop.f32.mrb[0].mxu0
        %v1829 = vadd.f32 %v1540, %v1828
        %v1830 = vpop.f32.mrb[0].mxu0
        %v1831 = vpop.f32.mrb[0].mxu0
        %v1832 = vadd.f32 %v1543, %v1831
        %v1833 = vpop.f32.mrb[0].mxu0
        %1834 = vmatprep.mubr.bf16.mxu0 %v748
        %1835 = vmatmul.mubr.bf16.gmra.mrb[0].mxu0 %v747
        %v1836 = vpop.f32.mrb[0].mxu0
        %v1837 = vadd.f32 %v1548, %v1836
        %v1838 = vpop.f32.mrb[0].mxu0
        %v1839 = vpop.f32.mrb[0].mxu0
        %v1840 = vadd.f32 %v1551, %v1839
        %v1841 = vpop.f32.mrb[0].mxu0
        %1842 = vmatprep.mubr.bf16.mxu0 %v756
        %1843 = vmatmul.mubr.bf16.gmra.mrb[0].mxu0 %v755
        %v1844 = vpop.f32.mrb[0].mxu0
        %v1845 = vadd.f32 %v1556, %v1844
        %v1846 = vpop.f32.mrb[0].mxu0
        %v1847 = vpop.f32.mrb[0].mxu0
        %v1848 = vadd.f32 %v1559, %v1847
        %v1849 = vpop.f32.mrb[0].mxu0
        %1850 = vmatprep.mubr.bf16.mxu0 %v764
        %1851 = vmatmul.mubr.bf16.gmra.mrb[0].mxu0 %v763
        %v1852 = vpop.f32.mrb[0].mxu0
        %v1853 = vadd.f32 %v1564, %v1852
        %v1854 = vpop.f32.mrb[0].mxu0
        %v1855 = vpop.f32.mrb[0].mxu0
        %v1856 = vadd.f32 %v1567, %v1855
        %v1857 = vpop.f32.mrb[0].mxu0
        %1858 = vmatprep.mubr.bf16.mxu0 %v772
        %1859 = vmatmul.mubr.bf16.gmra.mrb[0].mxu0 %v771
        %v1860 = vpop.f32.mrb[0].mxu0
        %v1861 = vadd.f32 %v1572, %v1860
        %v1862 = vpop.f32.mrb[0].mxu0
        %v1863 = vpop.f32.mrb[0].mxu0
        %v1864 = vadd.f32 %v1575, %v1863
        %v1865 = vpop.f32.mrb[0].mxu0
        %1866 = vmatprep.mubr.bf16.mxu0 %v780
        %1867 = vmatmul.mubr.bf16.gmra.mrb[0].mxu0 %v779
        %v1868 = vpop.f32.mrb[0].mxu0
        %v1869 = vadd.f32 %v1580, %v1868
        %v1870 = vpop.f32.mrb[0].mxu0
        %v1871 = vpop.f32.mrb[0].mxu0
        %v1872 = vadd.f32 %v1583, %v1871
        %v1873 = vpop.f32.mrb[0].mxu0
        %1874 = vmatprep.mubr.bf16.mxu0 %v788
        %1875 = vmatmul.mubr.bf16.gmra.mrb[0].mxu0 %v787
        %v1876 = vpop.f32.mrb[0].mxu0
        %v1877 = vadd.f32 %v1588, %v1876
        %v1878 = vpop.f32.mrb[0].mxu0
        %v1879 = vpop.f32.mrb[0].mxu0
        %v1880 = vadd.f32 %v1591, %v1879
        %v1881 = vpop.f32.mrb[0].mxu0
        %1882 = vmatprep.mubr.bf16.mxu0 %v796
        %1883 = vmatmul.mubr.bf16.gmra.mrb[0].mxu0 %v795
        %v1884 = vpop.f32.mrb[0].mxu0
        %v1885 = vadd.f32 %v1596, %v1884
        %v1886 = vpop.f32.mrb[0].mxu0
        %v1887 = vpop.f32.mrb[0].mxu0
        %v1888 = vadd.f32 %v1599, %v1887
        %v1889 = vpop.f32.mrb[0].mxu0
        %1890 = vmatprep.mubr.bf16.mxu0 %v804
        %1891 = vmatmul.mubr.bf16.gmra.mrb[0].mxu0 %v803
        %v1892 = vpop.f32.mrb[0].mxu0
        %v1893 = vadd.f32 %v1604, %v1892
        %v1894 = vpop.f32.mrb[0].mxu0
        %v1895 = vpop.f32.mrb[0].mxu0
        %v1896 = vadd.f32 %v1607, %v1895
        %v1897 = vpop.f32.mrb[0].mxu0
        %1898 = vmatprep.mubr.bf16.mxu0 %v812
        %1899 = vmatmul.mubr.bf16.gmra.mrb[0].mxu0 %v811
        %v1900 = vpop.f32.mrb[0].mxu0
        %v1901 = vadd.f32 %v1612, %v1900
        %v1902 = vpop.f32.mrb[0].mxu0
        %v1903 = vpop.f32.mrb[0].mxu0
        %v1904 = vadd.f32 %v1615, %v1903
        %v1905 = vpop.f32.mrb[0].mxu0
        %1906 = vmatprep.mubr.bf16.mxu0 %v820
        %1907 = vmatmul.mubr.bf16.gmra.mrb[0].mxu0 %v819
        %v1908 = vpop.f32.mrb[0].mxu0
        %v1909 = vadd.f32 %v1620, %v1908
        %v1910 = vpop.f32.mrb[0].mxu0
        %v1911 = vpop.f32.mrb[0].mxu0
        %v1912 = vadd.f32 %v1623, %v1911
        %v1913 = vpop.f32.mrb[0].mxu0
        %1914 = vmatprep.mubr.bf16.mxu0 %v828
        %1915 = vmatmul.mubr.bf16.gmra.mrb[0].mxu0 %v827
        %v1916 = vpop.f32.mrb[0].mxu0
        %v1917 = vadd.f32 %v1628, %v1916
        %v1918 = vpop.f32.mrb[0].mxu0
        %v1919 = vpop.f32.mrb[0].mxu0
        %v1920 = vadd.f32 %v1631, %v1919
        %v1921 = vpop.f32.mrb[0].mxu0
        %1922 = vmatprep.mubr.bf16.mxu0 %v836
        %1923 = vmatmul.mubr.bf16.gmra.mrb[0].mxu0 %v835
        %v1924 = vpop.f32.mrb[0].mxu0
        %v1925 = vadd.f32 %v1636, %v1924
        %v1926 = vpop.f32.mrb[0].mxu0
        %v1927 = vpop.f32.mrb[0].mxu0
        %v1928 = vadd.f32 %v1639, %v1927
        %v1929 = vpop.f32.mrb[0].mxu0
        %1930 = vmatprep.mubr.bf16.mxu0 %v844
        %1931 = vmatmul.mubr.bf16.gmra.mrb[0].mxu0 %v843
        %v1932 = vpop.f32.mrb[0].mxu0
        %v1933 = vadd.f32 %v1644, %v1932
        %v1934 = vpop.f32.mrb[0].mxu0
        %v1935 = vpop.f32.mrb[0].mxu0
        %v1936 = vadd.f32 %v1647, %v1935
        %v1937 = vpop.f32.mrb[0].mxu0
        %1938 = vmatprep.mubr.bf16.mxu0 %v852
        %1939 = vmatmul.mubr.bf16.gmra.mrb[0].mxu0 %v851
        %v1940 = vpop.f32.mrb[0].mxu0
        %v1941 = vadd.f32 %v1652, %v1940
        %v1942 = vpop.f32.mrb[0].mxu0
        %v1943 = vpop.f32.mrb[0].mxu0
        %v1944 = vadd.f32 %v1655, %v1943
        %v1945 = vpop.f32.mrb[0].mxu0
        %1946 = vmatprep.mubr.bf16.mxu0 %v860
        %1947 = vmatmul.mubr.bf16.gmra.mrb[0].mxu0 %v859
        %v1948 = vpop.f32.mrb[0].mxu0
        %v1949 = vadd.f32 %v1660, %v1948
        %v1950 = vpop.f32.mrb[0].mxu0
        %v1951 = vpop.f32.mrb[0].mxu0
        %v1952 = vadd.f32 %v1663, %v1951
        %v1953 = vpop.f32.mrb[0].mxu0
        %1954 = vmatprep.mubr.bf16.mxu0 %v868
        %1955 = vmatmul.mubr.bf16.gmra.mrb[0].mxu0 %v867
        %v1956 = vpop.f32.mrb[0].mxu0
        %v1957 = vadd.f32 %v1668, %v1956
        %v1958 = vpop.f32.mrb[0].mxu0
        %v1959 = vpop.f32.mrb[0].mxu0
        %v1960 = vadd.f32 %v1671, %v1959
        %v1961 = vpop.f32.mrb[0].mxu0
        %1962 = vmatprep.mubr.bf16.mxu0 %v876
        %1963 = vmatmul.mubr.bf16.gmra.mrb[0].mxu0 %v875
        %v1964 = vpop.f32.mrb[0].mxu0
        %v1965 = vadd.f32 %v1676, %v1964
        %v1966 = vpop.f32.mrb[0].mxu0
        %v1967 = vpop.f32.mrb[0].mxu0
        %v1968 = vadd.f32 %v1679, %v1967
        %v1969 = vpop.f32.mrb[0].mxu0
        %1970 = vmatprep.mubr.bf16.mxu0 %v884
        %1971 = vmatmul.mubr.bf16.gmra.mrb[0].mxu0 %v883
        %v1972 = vpop.f32.mrb[0].mxu0
        %v1973 = vadd.f32 %v1684, %v1972
        %v1974 = vpop.f32.mrb[0].mxu0
        %v1975 = vpop.f32.mrb[0].mxu0
        %v1976 = vadd.f32 %v1687, %v1975
        %v1977 = vpop.f32.mrb[0].mxu0
        %1978 = vmatprep.mubr.bf16.mxu0 %v892
        %1979 = vmatmul.mubr.bf16.gmra.mrb[0].mxu0 %v891
        %v1980 = vpop.f32.mrb[0].mxu0
        %v1981 = vadd.f32 %v1692, %v1980
        %v1982 = vpop.f32.mrb[0].mxu0
        %v1983 = vpop.f32.mrb[0].mxu0
        %v1984 = vadd.f32 %v1695, %v1983
        %v1985 = vpop.f32.mrb[0].mxu0
        %1986 = vmatprep.mubr.bf16.mxu0 %v900
        %1987 = vmatmul.mubr.bf16.gmra.mrb[0].mxu0 %v899
        %v1988 = vpop.f32.mrb[0].mxu0
        %v1989 = vadd.f32 %v1700, %v1988
        %v1990 = vpop.f32.mrb[0].mxu0
        %v1991 = vpop.f32.mrb[0].mxu0
        %v1992 = vadd.f32 %v1703, %v1991
        %v1993 = vpop.f32.mrb[0].mxu0
        %1994 = vmatprep.mubr.bf16.mxu0 %v908
        %1995 = vmatmul.mubr.bf16.gmra.mrb[0].mxu0 %v907
        %v1996 = vpop.f32.mrb[0].mxu0
        %v1997 = vadd.f32 %v1708, %v1996
        %v1998 = vpop.f32.mrb[0].mxu0
        %v1999 = vpop.f32.mrb[0].mxu0
        %v2000 = vadd.f32 %v1711, %v1999
        %v2001 = vpop.f32.mrb[0].mxu0
        %2002 = vmatprep.mubr.bf16.mxu0 %v916
        %2003 = vmatmul.mubr.bf16.gmra.mrb[0].mxu0 %v915
        %v2004 = vpop.f32.mrb[0].mxu0
        %v2005 = vadd.f32 %v1716, %v2004
        %v2006 = vpop.f32.mrb[0].mxu0
        %v2007 = vpop.f32.mrb[0].mxu0
        %v2008 = vadd.f32 %v1719, %v2007
        %v2009 = vpop.f32.mrb[0].mxu0
        %2010 = vmatprep.mubr.bf16.mxu0 %v924
        %2011 = vmatmul.mubr.bf16.gmra.mrb[0].mxu0 %v923
        %v2012 = vpop.f32.mrb[0].mxu0
        %v2013 = vadd.f32 %v1724, %v2012
        %v2014 = vpop.f32.mrb[0].mxu0
        %v2015 = vpop.f32.mrb[0].mxu0
        %v2016 = vadd.f32 %v1727, %v2015
        %v2017 = vpop.f32.mrb[0].mxu0
        %2018 = vmatprep.mubr.bf16.mxu0 %v932
        %2019 = vmatmul.mubr.bf16.gmra.mrb[0].mxu0 %v931
        %v2020 = vpop.f32.mrb[0].mxu0
        %v2021 = vadd.f32 %v1732, %v2020
        %v2022 = vpop.f32.mrb[0].mxu0
        %v2023 = vpop.f32.mrb[0].mxu0
        %v2024 = vadd.f32 %v1735, %v2023
        %v2025 = vpop.f32.mrb[0].mxu0
        %2026 = vmatprep.mubr.bf16.mxu0 %v940
        %2027 = vmatmul.mubr.bf16.gmra.mrb[0].mxu0 %v939
        %v2028 = vpop.f32.mrb[0].mxu0
        %v2029 = vadd.f32 %v1740, %v2028
        %v2030 = vpop.f32.mrb[0].mxu0
        %v2031 = vpop.f32.mrb[0].mxu0
        %v2032 = vadd.f32 %v1743, %v2031
        %v2033 = vpop.f32.mrb[0].mxu0
        %2034 = vmatprep.mubr.bf16.mxu0 %v948
        %2035 = vmatmul.mubr.bf16.gmra.mrb[0].mxu0 %v947
        %v2036 = vpop.f32.mrb[0].mxu0
        %v2037 = vadd.f32 %v1748, %v2036
        %v2038 = vpop.f32.mrb[0].mxu0
        %v2039 = vpop.f32.mrb[0].mxu0
        %v2040 = vadd.f32 %v1751, %v2039
        %v2041 = vpop.f32.mrb[0].mxu0
        %2042 = vmatprep.mubr.bf16.mxu0 %v956
        %2043 = vmatmul.mubr.bf16.gmra.mrb[0].mxu0 %v955
        %v2044 = vpop.f32.mrb[0].mxu0
        %v2045 = vadd.f32 %v1756, %v2044
        %v2046 = vpop.f32.mrb[0].mxu0
        %v2047 = vpop.f32.mrb[0].mxu0
        %v2048 = vadd.f32 %v1759, %v2047
        %v2049 = vpop.f32.mrb[0].mxu0
        %2050 = vmatprep.mubr.bf16.mxu0 %v964
        %2051 = vmatmul.mubr.bf16.gmra.mrb[0].mxu0 %v963
        %v2052 = vpop.f32.mrb[0].mxu0
        %v2053 = vadd.f32 %v1764, %v2052
        %v2054 = vpop.f32.mrb[0].mxu0
        %v2055 = vpop.f32.mrb[0].mxu0
        %v2056 = vadd.f32 %v1767, %v2055
        %v2057 = vpop.f32.mrb[0].mxu0
        %2058 = vmatprep.mubr.bf16.mxu0 %v972
        %2059 = vmatmul.mubr.bf16.gmra.mrb[0].mxu0 %v971
        %v2060 = vpop.f32.mrb[0].mxu0
        %v2061 = vadd.f32 %v1772, %v2060
        %v2062 = vpop.f32.mrb[0].mxu0
        %v2063 = vpop.f32.mrb[0].mxu0
        %v2064 = vadd.f32 %v1775, %v2063
        %v2065 = vpop.f32.mrb[0].mxu0
        %2066 = vdwg.mxu0
        %2067 = vmatprep.subr.bf16.mxu0 0
        %2068 = vmatpush1.bf16.msra.mxu0 %v1393
        %2069 = vmatprep.subr.bf16.mxu0 0
        %2070 = vmatpush1.bf16.msra.mxu0 %v1394
        %2071 = vmatprep.subr.bf16.mxu0 0
        %2072 = vmatpush1.bf16.msra.mxu0 %v1395
        %2073 = vmatprep.subr.bf16.mxu0 0
        %2074 = vmatpush1.bf16.msra.mxu0 %v1396
        %2075 = vmatprep.subr.bf16.mxu0 0
        %2076 = vmatpush1.bf16.msra.mxu0 %v1397
        %2077 = vmatprep.subr.bf16.mxu0 0
        %2078 = vmatpush1.bf16.msra.mxu0 %v1398
        %2079 = vmatprep.subr.bf16.mxu0 0
        %2080 = vmatpush1.bf16.msra.mxu0 %v1399
        %2081 = vmatprep.subr.bf16.mxu0 0
        %2082 = vmatpush1.bf16.msra.mxu0 %v1400
        %2083 = vmatprep.subr.bf16.mxu0 0
        %2084 = vmatpush1.bf16.msra.mxu0 %v1401
        %2085 = vmatprep.subr.bf16.mxu0 0
        %2086 = vmatpush1.bf16.msra.mxu0 %v1402
        %2087 = vmatprep.subr.bf16.mxu0 0
        %2088 = vmatpush1.bf16.msra.mxu0 %v1403
        %2089 = vmatprep.subr.bf16.mxu0 0
        %2090 = vmatpush1.bf16.msra.mxu0 %v1404
        %2091 = vmatprep.subr.bf16.mxu0 0
        %2092 = vmatpush1.bf16.msra.mxu0 %v1405
        %2093 = vmatprep.subr.bf16.mxu0 0
        %2094 = vmatpush1.bf16.msra.mxu0 %v1406
        %2095 = vmatprep.subr.bf16.mxu0 0
        %2096 = vmatpush1.bf16.msra.mxu0 %v1407
        %2097 = vmatprep.subr.bf16.mxu0 0
        %2098 = vmatpush1.bf16.msra.mxu0 %v1408
        %2099 = vmatprep.mubr.bf16.mxu0 %v726
        %2100 = vmatmul.mubr.bf16.gmra.mrb[0].mxu0 %v725
        %v2101 = vpop.f32.mrb[0].mxu0
        %v2102 = vadd.f32 %v1813, %v2101
        %v2103 = vpop.f32.mrb[0].mxu0
        %v2104 = vpop.f32.mrb[0].mxu0
        %v2105 = vadd.f32 %v1816, %v2104
        %v2106 = vpop.f32.mrb[0].mxu0
        %2107 = vmatprep.mubr.bf16.mxu0 %v734
        %2108 = vmatmul.mubr.bf16.gmra.mrb[0].mxu0 %v733
        %v2109 = vpop.f32.mrb[0].mxu0
        %v2110 = vadd.f32 %v1821, %v2109
        %v2111 = vpop.f32.mrb[0].mxu0
        %v2112 = vpop.f32.mrb[0].mxu0
        %v2113 = vadd.f32 %v1824, %v2112
        %v2114 = vpop.f32.mrb[0].mxu0
        %2115 = vmatprep.mubr.bf16.mxu0 %v742
        %2116 = vmatmul.mubr.bf16.gmra.mrb[0].mxu0 %v741
        %v2117 = vpop.f32.mrb[0].mxu0
        %v2118 = vadd.f32 %v1829, %v2117
        %v2119 = vpop.f32.mrb[0].mxu0
        %v2120 = vpop.f32.mrb[0].mxu0
        %v2121 = vadd.f32 %v1832, %v2120
        %v2122 = vpop.f32.mrb[0].mxu0
        %2123 = vmatprep.mubr.bf16.mxu0 %v750
        %2124 = vmatmul.mubr.bf16.gmra.mrb[0].mxu0 %v749
        %v2125 = vpop.f32.mrb[0].mxu0
        %v2126 = vadd.f32 %v1837, %v2125
        %v2127 = vpop.f32.mrb[0].mxu0
        %v2128 = vpop.f32.mrb[0].mxu0
        %v2129 = vadd.f32 %v1840, %v2128
        %v2130 = vpop.f32.mrb[0].mxu0
        %2131 = vmatprep.mubr.bf16.mxu0 %v758
        %2132 = vmatmul.mubr.bf16.gmra.mrb[0].mxu0 %v757
        %v2133 = vpop.f32.mrb[0].mxu0
        %v2134 = vadd.f32 %v1845, %v2133
        %v2135 = vpop.f32.mrb[0].mxu0
        %v2136 = vpop.f32.mrb[0].mxu0
        %v2137 = vadd.f32 %v1848, %v2136
        %v2138 = vpop.f32.mrb[0].mxu0
        %2139 = vmatprep.mubr.bf16.mxu0 %v766
        %2140 = vmatmul.mubr.bf16.gmra.mrb[0].mxu0 %v765
        %v2141 = vpop.f32.mrb[0].mxu0
        %v2142 = vadd.f32 %v1853, %v2141
        %v2143 = vpop.f32.mrb[0].mxu0
        %v2144 = vpop.f32.mrb[0].mxu0
        %v2145 = vadd.f32 %v1856, %v2144
        %v2146 = vpop.f32.mrb[0].mxu0
        %2147 = vmatprep.mubr.bf16.mxu0 %v774
        %2148 = vmatmul.mubr.bf16.gmra.mrb[0].mxu0 %v773
        %v2149 = vpop.f32.mrb[0].mxu0
        %v2150 = vadd.f32 %v1861, %v2149
        %v2151 = vpop.f32.mrb[0].mxu0
        %v2152 = vpop.f32.mrb[0].mxu0
        %v2153 = vadd.f32 %v1864, %v2152
        %v2154 = vpop.f32.mrb[0].mxu0
        %2155 = vmatprep.mubr.bf16.mxu0 %v782
        %2156 = vmatmul.mubr.bf16.gmra.mrb[0].mxu0 %v781
        %v2157 = vpop.f32.mrb[0].mxu0
        %v2158 = vadd.f32 %v1869, %v2157
        %v2159 = vpop.f32.mrb[0].mxu0
        %v2160 = vpop.f32.mrb[0].mxu0
        %v2161 = vadd.f32 %v1872, %v2160
        %v2162 = vpop.f32.mrb[0].mxu0
        %2163 = vmatprep.mubr.bf16.mxu0 %v790
        %2164 = vmatmul.mubr.bf16.gmra.mrb[0].mxu0 %v789
        %v2165 = vpop.f32.mrb[0].mxu0
        %v2166 = vadd.f32 %v1877, %v2165
        %v2167 = vpop.f32.mrb[0].mxu0
        %v2168 = vpop.f32.mrb[0].mxu0
        %v2169 = vadd.f32 %v1880, %v2168
        %v2170 = vpop.f32.mrb[0].mxu0
        %2171 = vmatprep.mubr.bf16.mxu0 %v798
        %2172 = vmatmul.mubr.bf16.gmra.mrb[0].mxu0 %v797
        %v2173 = vpop.f32.mrb[0].mxu0
        %v2174 = vadd.f32 %v1885, %v2173
        %v2175 = vpop.f32.mrb[0].mxu0
        %v2176 = vpop.f32.mrb[0].mxu0
        %v2177 = vadd.f32 %v1888, %v2176
        %v2178 = vpop.f32.mrb[0].mxu0
        %2179 = vmatprep.mubr.bf16.mxu0 %v806
        %2180 = vmatmul.mubr.bf16.gmra.mrb[0].mxu0 %v805
        %v2181 = vpop.f32.mrb[0].mxu0
        %v2182 = vadd.f32 %v1893, %v2181
        %v2183 = vpop.f32.mrb[0].mxu0
        %v2184 = vpop.f32.mrb[0].mxu0
        %v2185 = vadd.f32 %v1896, %v2184
        %v2186 = vpop.f32.mrb[0].mxu0
        %2187 = vmatprep.mubr.bf16.mxu0 %v814
        %2188 = vmatmul.mubr.bf16.gmra.mrb[0].mxu0 %v813
        %v2189 = vpop.f32.mrb[0].mxu0
        %v2190 = vadd.f32 %v1901, %v2189
        %v2191 = vpop.f32.mrb[0].mxu0
        %v2192 = vpop.f32.mrb[0].mxu0
        %v2193 = vadd.f32 %v1904, %v2192
        %v2194 = vpop.f32.mrb[0].mxu0
        %2195 = vmatprep.mubr.bf16.mxu0 %v822
        %2196 = vmatmul.mubr.bf16.gmra.mrb[0].mxu0 %v821
        %v2197 = vpop.f32.mrb[0].mxu0
        %v2198 = vadd.f32 %v1909, %v2197
        %v2199 = vpop.f32.mrb[0].mxu0
        %v2200 = vpop.f32.mrb[0].mxu0
        %v2201 = vadd.f32 %v1912, %v2200
        %v2202 = vpop.f32.mrb[0].mxu0
        %2203 = vmatprep.mubr.bf16.mxu0 %v830
        %2204 = vmatmul.mubr.bf16.gmra.mrb[0].mxu0 %v829
        %v2205 = vpop.f32.mrb[0].mxu0
        %v2206 = vadd.f32 %v1917, %v2205
        %v2207 = vpop.f32.mrb[0].mxu0
        %v2208 = vpop.f32.mrb[0].mxu0
        %v2209 = vadd.f32 %v1920, %v2208
        %v2210 = vpop.f32.mrb[0].mxu0
        %2211 = vmatprep.mubr.bf16.mxu0 %v838
        %2212 = vmatmul.mubr.bf16.gmra.mrb[0].mxu0 %v837
        %v2213 = vpop.f32.mrb[0].mxu0
        %v2214 = vadd.f32 %v1925, %v2213
        %v2215 = vpop.f32.mrb[0].mxu0
        %v2216 = vpop.f32.mrb[0].mxu0
        %v2217 = vadd.f32 %v1928, %v2216
        %v2218 = vpop.f32.mrb[0].mxu0
        %2219 = vmatprep.mubr.bf16.mxu0 %v846
        %2220 = vmatmul.mubr.bf16.gmra.mrb[0].mxu0 %v845
        %v2221 = vpop.f32.mrb[0].mxu0
        %v2222 = vadd.f32 %v1933, %v2221
        %v2223 = vpop.f32.mrb[0].mxu0
        %v2224 = vpop.f32.mrb[0].mxu0
        %v2225 = vadd.f32 %v1936, %v2224
        %v2226 = vpop.f32.mrb[0].mxu0
        %2227 = vmatprep.mubr.bf16.mxu0 %v854
        %2228 = vmatmul.mubr.bf16.gmra.mrb[0].mxu0 %v853
        %v2229 = vpop.f32.mrb[0].mxu0
        %v2230 = vadd.f32 %v1941, %v2229
        %v2231 = vpop.f32.mrb[0].mxu0
        %v2232 = vpop.f32.mrb[0].mxu0
        %v2233 = vadd.f32 %v1944, %v2232
        %v2234 = vpop.f32.mrb[0].mxu0
        %2235 = vmatprep.mubr.bf16.mxu0 %v862
        %2236 = vmatmul.mubr.bf16.gmra.mrb[0].mxu0 %v861
        %v2237 = vpop.f32.mrb[0].mxu0
        %v2238 = vadd.f32 %v1949, %v2237
        %v2239 = vpop.f32.mrb[0].mxu0
        %v2240 = vpop.f32.mrb[0].mxu0
        %v2241 = vadd.f32 %v1952, %v2240
        %v2242 = vpop.f32.mrb[0].mxu0
        %2243 = vmatprep.mubr.bf16.mxu0 %v870
        %2244 = vmatmul.mubr.bf16.gmra.mrb[0].mxu0 %v869
        %v2245 = vpop.f32.mrb[0].mxu0
        %v2246 = vadd.f32 %v1957, %v2245
        %v2247 = vpop.f32.mrb[0].mxu0
        %v2248 = vpop.f32.mrb[0].mxu0
        %v2249 = vadd.f32 %v1960, %v2248
        %v2250 = vpop.f32.mrb[0].mxu0
        %2251 = vmatprep.mubr.bf16.mxu0 %v878
        %2252 = vmatmul.mubr.bf16.gmra.mrb[0].mxu0 %v877
        %v2253 = vpop.f32.mrb[0].mxu0
        %v2254 = vadd.f32 %v1965, %v2253
        %v2255 = vpop.f32.mrb[0].mxu0
        %v2256 = vpop.f32.mrb[0].mxu0
        %v2257 = vadd.f32 %v1968, %v2256
        %v2258 = vpop.f32.mrb[0].mxu0
        %2259 = vmatprep.mubr.bf16.mxu0 %v886
        %2260 = vmatmul.mubr.bf16.gmra.mrb[0].mxu0 %v885
        %v2261 = vpop.f32.mrb[0].mxu0
        %v2262 = vadd.f32 %v1973, %v2261
        %v2263 = vpop.f32.mrb[0].mxu0
        %v2264 = vpop.f32.mrb[0].mxu0
        %v2265 = vadd.f32 %v1976, %v2264
        %v2266 = vpop.f32.mrb[0].mxu0
        %2267 = vmatprep.mubr.bf16.mxu0 %v894
        %2268 = vmatmul.mubr.bf16.gmra.mrb[0].mxu0 %v893
        %v2269 = vpop.f32.mrb[0].mxu0
        %v2270 = vadd.f32 %v1981, %v2269
        %v2271 = vpop.f32.mrb[0].mxu0
        %v2272 = vpop.f32.mrb[0].mxu0
        %v2273 = vadd.f32 %v1984, %v2272
        %v2274 = vpop.f32.mrb[0].mxu0
        %2275 = vmatprep.mubr.bf16.mxu0 %v902
        %2276 = vmatmul.mubr.bf16.gmra.mrb[0].mxu0 %v901
        %v2277 = vpop.f32.mrb[0].mxu0
        %v2278 = vadd.f32 %v1989, %v2277
        %v2279 = vpop.f32.mrb[0].mxu0
        %v2280 = vpop.f32.mrb[0].mxu0
        %v2281 = vadd.f32 %v1992, %v2280
        %v2282 = vpop.f32.mrb[0].mxu0
        %2283 = vmatprep.mubr.bf16.mxu0 %v910
        %2284 = vmatmul.mubr.bf16.gmra.mrb[0].mxu0 %v909
        %v2285 = vpop.f32.mrb[0].mxu0
        %v2286 = vadd.f32 %v1997, %v2285
        %v2287 = vpop.f32.mrb[0].mxu0
        %v2288 = vpop.f32.mrb[0].mxu0
        %v2289 = vadd.f32 %v2000, %v2288
        %v2290 = vpop.f32.mrb[0].mxu0
        %2291 = vmatprep.mubr.bf16.mxu0 %v918
        %2292 = vmatmul.mubr.bf16.gmra.mrb[0].mxu0 %v917
        %v2293 = vpop.f32.mrb[0].mxu0
        %v2294 = vadd.f32 %v2005, %v2293
        %v2295 = vpop.f32.mrb[0].mxu0
        %v2296 = vpop.f32.mrb[0].mxu0
        %v2297 = vadd.f32 %v2008, %v2296
        %v2298 = vpop.f32.mrb[0].mxu0
        %2299 = vmatprep.mubr.bf16.mxu0 %v926
        %2300 = vmatmul.mubr.bf16.gmra.mrb[0].mxu0 %v925
        %v2301 = vpop.f32.mrb[0].mxu0
        %v2302 = vadd.f32 %v2013, %v2301
        %v2303 = vpop.f32.mrb[0].mxu0
        %v2304 = vpop.f32.mrb[0].mxu0
        %v2305 = vadd.f32 %v2016, %v2304
        %v2306 = vpop.f32.mrb[0].mxu0
        %2307 = vmatprep.mubr.bf16.mxu0 %v934
        %2308 = vmatmul.mubr.bf16.gmra.mrb[0].mxu0 %v933
        %v2309 = vpop.f32.mrb[0].mxu0
        %v2310 = vadd.f32 %v2021, %v2309
        %v2311 = vpop.f32.mrb[0].mxu0
        %v2312 = vpop.f32.mrb[0].mxu0
        %v2313 = vadd.f32 %v2024, %v2312
        %v2314 = vpop.f32.mrb[0].mxu0
        %2315 = vmatprep.mubr.bf16.mxu0 %v942
        %2316 = vmatmul.mubr.bf16.gmra.mrb[0].mxu0 %v941
        %v2317 = vpop.f32.mrb[0].mxu0
        %v2318 = vadd.f32 %v2029, %v2317
        %v2319 = vpop.f32.mrb[0].mxu0
        %v2320 = vpop.f32.mrb[0].mxu0
        %v2321 = vadd.f32 %v2032, %v2320
        %v2322 = vpop.f32.mrb[0].mxu0
        %2323 = vmatprep.mubr.bf16.mxu0 %v950
        %2324 = vmatmul.mubr.bf16.gmra.mrb[0].mxu0 %v949
        %v2325 = vpop.f32.mrb[0].mxu0
        %v2326 = vadd.f32 %v2037, %v2325
        %v2327 = vpop.f32.mrb[0].mxu0
        %v2328 = vpop.f32.mrb[0].mxu0
        %v2329 = vadd.f32 %v2040, %v2328
        %v2330 = vpop.f32.mrb[0].mxu0
        %2331 = vmatprep.mubr.bf16.mxu0 %v958
        %2332 = vmatmul.mubr.bf16.gmra.mrb[0].mxu0 %v957
        %v2333 = vpop.f32.mrb[0].mxu0
        %v2334 = vadd.f32 %v2045, %v2333
        %v2335 = vpop.f32.mrb[0].mxu0
        %v2336 = vpop.f32.mrb[0].mxu0
        %v2337 = vadd.f32 %v2048, %v2336
        %v2338 = vpop.f32.mrb[0].mxu0
        %2339 = vmatprep.mubr.bf16.mxu0 %v966
        %2340 = vmatmul.mubr.bf16.gmra.mrb[0].mxu0 %v965
        %v2341 = vpop.f32.mrb[0].mxu0
        %v2342 = vadd.f32 %v2053, %v2341
        %v2343 = vpop.f32.mrb[0].mxu0
        %v2344 = vpop.f32.mrb[0].mxu0
        %v2345 = vadd.f32 %v2056, %v2344
        %v2346 = vpop.f32.mrb[0].mxu0
        %2347 = vmatprep.mubr.bf16.mxu0 %v974
        %2348 = vmatmul.mubr.bf16.gmra.mrb[0].mxu0 %v973
        %v2349 = vpop.f32.mrb[0].mxu0
        %v2350 = vadd.f32 %v2061, %v2349
        %v2351 = vpop.f32.mrb[0].mxu0
        %v2352 = vpop.f32.mrb[0].mxu0
        %v2353 = vadd.f32 %v2064, %v2352
        %v2354 = vpop.f32.mrb[0].mxu0
        %2355 = vdwg.mxu0
        %2356 = vmatprep.subr.bf16.mxu0 0
        %2357 = vmatpush1.bf16.msra.mxu0 %v1409
        %2358 = vmatprep.subr.bf16.mxu0 0
        %2359 = vmatpush1.bf16.msra.mxu0 %v1410
        %2360 = vmatprep.subr.bf16.mxu0 0
        %2361 = vmatpush1.bf16.msra.mxu0 %v1411
        %2362 = vmatprep.subr.bf16.mxu0 0
        %2363 = vmatpush1.bf16.msra.mxu0 %v1412
        %2364 = vmatprep.subr.bf16.mxu0 0
        %2365 = vmatpush1.bf16.msra.mxu0 %v1413
        %2366 = vmatprep.subr.bf16.mxu0 0
        %2367 = vmatpush1.bf16.msra.mxu0 %v1414
        %2368 = vmatprep.subr.bf16.mxu0 0
        %2369 = vmatpush1.bf16.msra.mxu0 %v1415
        %2370 = vmatprep.subr.bf16.mxu0 0
        %2371 = vmatpush1.bf16.msra.mxu0 %v1416
        %2372 = vmatprep.subr.bf16.mxu0 0
        %2373 = vmatpush1.bf16.msra.mxu0 %v1417
        %2374 = vmatprep.subr.bf16.mxu0 0
        %2375 = vmatpush1.bf16.msra.mxu0 %v1418
        %2376 = vmatprep.subr.bf16.mxu0 0
        %2377 = vmatpush1.bf16.msra.mxu0 %v1419
        %2378 = vmatprep.subr.bf16.mxu0 0
        %2379 = vmatpush1.bf16.msra.mxu0 %v1420
        %2380 = vmatprep.subr.bf16.mxu0 0
        %2381 = vmatpush1.bf16.msra.mxu0 %v1421
        %2382 = vmatprep.subr.bf16.mxu0 0
        %2383 = vmatpush1.bf16.msra.mxu0 %v1422
        %2384 = vmatprep.subr.bf16.mxu0 0
        %2385 = vmatpush1.bf16.msra.mxu0 %v1423
        %2386 = vmatprep.subr.bf16.mxu0 0
        %2387 = vmatpush1.bf16.msra.mxu0 %v1424
        %2388 = vmatprep.mubr.bf16.mxu0 %v728
        %2389 = vmatmul.mubr.bf16.gmra.mrb[0].mxu0 %v727
        %v2390 = vpop.f32.mrb[0].mxu0
        %v2391 = vadd.f32 %v2102, %v2390
        %v2392 = vpop.f32.mrb[0].mxu0
        %v2393 = vpop.f32.mrb[0].mxu0
        %v2394 = vadd.f32 %v2105, %v2393
        %v2395 = vpop.f32.mrb[0].mxu0
        %2396 = vmatprep.mubr.bf16.mxu0 %v736
        %2397 = vmatmul.mubr.bf16.gmra.mrb[0].mxu0 %v735
        %v2398 = vpop.f32.mrb[0].mxu0
        %v2399 = vadd.f32 %v2110, %v2398
        %v2400 = vpop.f32.mrb[0].mxu0
        %v2401 = vpop.f32.mrb[0].mxu0
        %v2402 = vadd.f32 %v2113, %v2401
        %v2403 = vpop.f32.mrb[0].mxu0
        %2404 = vmatprep.mubr.bf16.mxu0 %v744
        %2405 = vmatmul.mubr.bf16.gmra.mrb[0].mxu0 %v743
        %v2406 = vpop.f32.mrb[0].mxu0
        %v2407 = vadd.f32 %v2118, %v2406
        %v2408 = vpop.f32.mrb[0].mxu0
        %v2409 = vpop.f32.mrb[0].mxu0
        %v2410 = vadd.f32 %v2121, %v2409
        %v2411 = vpop.f32.mrb[0].mxu0
        %2412 = vmatprep.mubr.bf16.mxu0 %v752
        %2413 = vmatmul.mubr.bf16.gmra.mrb[0].mxu0 %v751
        %v2414 = vpop.f32.mrb[0].mxu0
        %v2415 = vadd.f32 %v2126, %v2414
        %v2416 = vpop.f32.mrb[0].mxu0
        %v2417 = vpop.f32.mrb[0].mxu0
        %v2418 = vadd.f32 %v2129, %v2417
        %v2419 = vpop.f32.mrb[0].mxu0
        %2420 = vmatprep.mubr.bf16.mxu0 %v760
        %2421 = vmatmul.mubr.bf16.gmra.mrb[0].mxu0 %v759
        %v2422 = vpop.f32.mrb[0].mxu0
        %v2423 = vadd.f32 %v2134, %v2422
        %v2424 = vpop.f32.mrb[0].mxu0
        %v2425 = vpop.f32.mrb[0].mxu0
        %v2426 = vadd.f32 %v2137, %v2425
        %v2427 = vpop.f32.mrb[0].mxu0
        %2428 = vmatprep.mubr.bf16.mxu0 %v768
        %2429 = vmatmul.mubr.bf16.gmra.mrb[0].mxu0 %v767
        %v2430 = vpop.f32.mrb[0].mxu0
        %v2431 = vadd.f32 %v2142, %v2430
        %v2432 = vpop.f32.mrb[0].mxu0
        %v2433 = vpop.f32.mrb[0].mxu0
        %v2434 = vadd.f32 %v2145, %v2433
        %v2435 = vpop.f32.mrb[0].mxu0
        %2436 = vmatprep.mubr.bf16.mxu0 %v776
        %2437 = vmatmul.mubr.bf16.gmra.mrb[0].mxu0 %v775
        %v2438 = vpop.f32.mrb[0].mxu0
        %v2439 = vadd.f32 %v2150, %v2438
        %v2440 = vpop.f32.mrb[0].mxu0
        %v2441 = vpop.f32.mrb[0].mxu0
        %v2442 = vadd.f32 %v2153, %v2441
        %v2443 = vpop.f32.mrb[0].mxu0
        %2444 = vmatprep.mubr.bf16.mxu0 %v784
        %2445 = vmatmul.mubr.bf16.gmra.mrb[0].mxu0 %v783
        %v2446 = vpop.f32.mrb[0].mxu0
        %v2447 = vadd.f32 %v2158, %v2446
        %v2448 = vpop.f32.mrb[0].mxu0
        %v2449 = vpop.f32.mrb[0].mxu0
        %v2450 = vadd.f32 %v2161, %v2449
        %v2451 = vpop.f32.mrb[0].mxu0
        %2452 = vmatprep.mubr.bf16.mxu0 %v792
        %2453 = vmatmul.mubr.bf16.gmra.mrb[0].mxu0 %v791
        %v2454 = vpop.f32.mrb[0].mxu0
        %v2455 = vadd.f32 %v2166, %v2454
        %v2456 = vpop.f32.mrb[0].mxu0
        %v2457 = vpop.f32.mrb[0].mxu0
        %v2458 = vadd.f32 %v2169, %v2457
        %v2459 = vpop.f32.mrb[0].mxu0
        %2460 = vmatprep.mubr.bf16.mxu0 %v800
        %2461 = vmatmul.mubr.bf16.gmra.mrb[0].mxu0 %v799
        %v2462 = vpop.f32.mrb[0].mxu0
        %v2463 = vadd.f32 %v2174, %v2462
        %v2464 = vpop.f32.mrb[0].mxu0
        %v2465 = vpop.f32.mrb[0].mxu0
        %v2466 = vadd.f32 %v2177, %v2465
        %v2467 = vpop.f32.mrb[0].mxu0
        %2468 = vmatprep.mubr.bf16.mxu0 %v808
        %2469 = vmatmul.mubr.bf16.gmra.mrb[0].mxu0 %v807
        %v2470 = vpop.f32.mrb[0].mxu0
        %v2471 = vadd.f32 %v2182, %v2470
        %v2472 = vpop.f32.mrb[0].mxu0
        %v2473 = vpop.f32.mrb[0].mxu0
        %v2474 = vadd.f32 %v2185, %v2473
        %v2475 = vpop.f32.mrb[0].mxu0
        %2476 = vmatprep.mubr.bf16.mxu0 %v816
        %2477 = vmatmul.mubr.bf16.gmra.mrb[0].mxu0 %v815
        %v2478 = vpop.f32.mrb[0].mxu0
        %v2479 = vadd.f32 %v2190, %v2478
        %v2480 = vpop.f32.mrb[0].mxu0
        %v2481 = vpop.f32.mrb[0].mxu0
        %v2482 = vadd.f32 %v2193, %v2481
        %v2483 = vpop.f32.mrb[0].mxu0
        %2484 = vmatprep.mubr.bf16.mxu0 %v824
        %2485 = vmatmul.mubr.bf16.gmra.mrb[0].mxu0 %v823
        %v2486 = vpop.f32.mrb[0].mxu0
        %v2487 = vadd.f32 %v2198, %v2486
        %v2488 = vpop.f32.mrb[0].mxu0
        %v2489 = vpop.f32.mrb[0].mxu0
        %v2490 = vadd.f32 %v2201, %v2489
        %v2491 = vpop.f32.mrb[0].mxu0
        %2492 = vmatprep.mubr.bf16.mxu0 %v832
        %2493 = vmatmul.mubr.bf16.gmra.mrb[0].mxu0 %v831
        %v2494 = vpop.f32.mrb[0].mxu0
        %v2495 = vadd.f32 %v2206, %v2494
        %v2496 = vpop.f32.mrb[0].mxu0
        %v2497 = vpop.f32.mrb[0].mxu0
        %v2498 = vadd.f32 %v2209, %v2497
        %v2499 = vpop.f32.mrb[0].mxu0
        %2500 = vmatprep.mubr.bf16.mxu0 %v840
        %2501 = vmatmul.mubr.bf16.gmra.mrb[0].mxu0 %v839
        %v2502 = vpop.f32.mrb[0].mxu0
        %v2503 = vadd.f32 %v2214, %v2502
        %v2504 = vpop.f32.mrb[0].mxu0
        %v2505 = vpop.f32.mrb[0].mxu0
        %v2506 = vadd.f32 %v2217, %v2505
        %v2507 = vpop.f32.mrb[0].mxu0
        %2508 = vmatprep.mubr.bf16.mxu0 %v848
        %2509 = vmatmul.mubr.bf16.gmra.mrb[0].mxu0 %v847
        %v2510 = vpop.f32.mrb[0].mxu0
        %v2511 = vadd.f32 %v2222, %v2510
        %v2512 = vpop.f32.mrb[0].mxu0
        %v2513 = vpop.f32.mrb[0].mxu0
        %v2514 = vadd.f32 %v2225, %v2513
        %v2515 = vpop.f32.mrb[0].mxu0
        %2516 = vmatprep.mubr.bf16.mxu0 %v856
        %2517 = vmatmul.mubr.bf16.gmra.mrb[0].mxu0 %v855
        %v2518 = vpop.f32.mrb[0].mxu0
        %v2519 = vadd.f32 %v2230, %v2518
        %v2520 = vpop.f32.mrb[0].mxu0
        %v2521 = vpop.f32.mrb[0].mxu0
        %v2522 = vadd.f32 %v2233, %v2521
        %v2523 = vpop.f32.mrb[0].mxu0
        %2524 = vmatprep.mubr.bf16.mxu0 %v864
        %2525 = vmatmul.mubr.bf16.gmra.mrb[0].mxu0 %v863
        %v2526 = vpop.f32.mrb[0].mxu0
        %v2527 = vadd.f32 %v2238, %v2526
        %v2528 = vpop.f32.mrb[0].mxu0
        %v2529 = vpop.f32.mrb[0].mxu0
        %v2530 = vadd.f32 %v2241, %v2529
        %v2531 = vpop.f32.mrb[0].mxu0
        %2532 = vmatprep.mubr.bf16.mxu0 %v872
        %2533 = vmatmul.mubr.bf16.gmra.mrb[0].mxu0 %v871
        %v2534 = vpop.f32.mrb[0].mxu0
        %v2535 = vadd.f32 %v2246, %v2534
        %v2536 = vpop.f32.mrb[0].mxu0
        %v2537 = vpop.f32.mrb[0].mxu0
        %v2538 = vadd.f32 %v2249, %v2537
        %v2539 = vpop.f32.mrb[0].mxu0
        %2540 = vmatprep.mubr.bf16.mxu0 %v880
        %2541 = vmatmul.mubr.bf16.gmra.mrb[0].mxu0 %v879
        %v2542 = vpop.f32.mrb[0].mxu0
        %v2543 = vadd.f32 %v2254, %v2542
        %v2544 = vpop.f32.mrb[0].mxu0
        %v2545 = vpop.f32.mrb[0].mxu0
        %v2546 = vadd.f32 %v2257, %v2545
        %v2547 = vpop.f32.mrb[0].mxu0
        %2548 = vmatprep.mubr.bf16.mxu0 %v888
        %2549 = vmatmul.mubr.bf16.gmra.mrb[0].mxu0 %v887
        %v2550 = vpop.f32.mrb[0].mxu0
        %v2551 = vadd.f32 %v2262, %v2550
        %v2552 = vpop.f32.mrb[0].mxu0
        %v2553 = vpop.f32.mrb[0].mxu0
        %v2554 = vadd.f32 %v2265, %v2553
        %v2555 = vpop.f32.mrb[0].mxu0
        %2556 = vmatprep.mubr.bf16.mxu0 %v896
        %2557 = vmatmul.mubr.bf16.gmra.mrb[0].mxu0 %v895
        %v2558 = vpop.f32.mrb[0].mxu0
        %v2559 = vadd.f32 %v2270, %v2558
        %v2560 = vpop.f32.mrb[0].mxu0
        %v2561 = vpop.f32.mrb[0].mxu0
        %v2562 = vadd.f32 %v2273, %v2561
        %v2563 = vpop.f32.mrb[0].mxu0
        %2564 = vmatprep.mubr.bf16.mxu0 %v904
        %2565 = vmatmul.mubr.bf16.gmra.mrb[0].mxu0 %v903
        %v2566 = vpop.f32.mrb[0].mxu0
        %v2567 = vadd.f32 %v2278, %v2566
        %v2568 = vpop.f32.mrb[0].mxu0
        %v2569 = vpop.f32.mrb[0].mxu0
        %v2570 = vadd.f32 %v2281, %v2569
        %v2571 = vpop.f32.mrb[0].mxu0
        %2572 = vmatprep.mubr.bf16.mxu0 %v912
        %2573 = vmatmul.mubr.bf16.gmra.mrb[0].mxu0 %v911
        %v2574 = vpop.f32.mrb[0].mxu0
        %v2575 = vadd.f32 %v2286, %v2574
        %v2576 = vpop.f32.mrb[0].mxu0
        %v2577 = vpop.f32.mrb[0].mxu0
        %v2578 = vadd.f32 %v2289, %v2577
        %v2579 = vpop.f32.mrb[0].mxu0
        %2580 = vmatprep.mubr.bf16.mxu0 %v920
        %2581 = vmatmul.mubr.bf16.gmra.mrb[0].mxu0 %v919
        %v2582 = vpop.f32.mrb[0].mxu0
        %v2583 = vadd.f32 %v2294, %v2582
        %v2584 = vpop.f32.mrb[0].mxu0
        %v2585 = vpop.f32.mrb[0].mxu0
        %v2586 = vadd.f32 %v2297, %v2585
        %v2587 = vpop.f32.mrb[0].mxu0
        %2588 = vmatprep.mubr.bf16.mxu0 %v928
        %2589 = vmatmul.mubr.bf16.gmra.mrb[0].mxu0 %v927
        %v2590 = vpop.f32.mrb[0].mxu0
        %v2591 = vadd.f32 %v2302, %v2590
        %v2592 = vpop.f32.mrb[0].mxu0
        %v2593 = vpop.f32.mrb[0].mxu0
        %v2594 = vadd.f32 %v2305, %v2593
        %v2595 = vpop.f32.mrb[0].mxu0
        %2596 = vmatprep.mubr.bf16.mxu0 %v936
        %2597 = vmatmul.mubr.bf16.gmra.mrb[0].mxu0 %v935
        %v2598 = vpop.f32.mrb[0].mxu0
        %v2599 = vadd.f32 %v2310, %v2598
        %v2600 = vpop.f32.mrb[0].mxu0
        %v2601 = vpop.f32.mrb[0].mxu0
        %v2602 = vadd.f32 %v2313, %v2601
        %v2603 = vpop.f32.mrb[0].mxu0
        %2604 = vmatprep.mubr.bf16.mxu0 %v944
        %2605 = vmatmul.mubr.bf16.gmra.mrb[0].mxu0 %v943
        %v2606 = vpop.f32.mrb[0].mxu0
        %v2607 = vadd.f32 %v2318, %v2606
        %v2608 = vpop.f32.mrb[0].mxu0
        %v2609 = vpop.f32.mrb[0].mxu0
        %v2610 = vadd.f32 %v2321, %v2609
        %v2611 = vpop.f32.mrb[0].mxu0
        %2612 = vmatprep.mubr.bf16.mxu0 %v952
        %2613 = vmatmul.mubr.bf16.gmra.mrb[0].mxu0 %v951
        %v2614 = vpop.f32.mrb[0].mxu0
        %v2615 = vadd.f32 %v2326, %v2614
        %v2616 = vpop.f32.mrb[0].mxu0
        %v2617 = vpop.f32.mrb[0].mxu0
        %v2618 = vadd.f32 %v2329, %v2617
        %v2619 = vpop.f32.mrb[0].mxu0
        %2620 = vmatprep.mubr.bf16.mxu0 %v960
        %2621 = vmatmul.mubr.bf16.gmra.mrb[0].mxu0 %v959
        %v2622 = vpop.f32.mrb[0].mxu0
        %v2623 = vadd.f32 %v2334, %v2622
        %v2624 = vpop.f32.mrb[0].mxu0
        %v2625 = vpop.f32.mrb[0].mxu0
        %v2626 = vadd.f32 %v2337, %v2625
        %v2627 = vpop.f32.mrb[0].mxu0
        %2628 = vmatprep.mubr.bf16.mxu0 %v968
        %2629 = vmatmul.mubr.bf16.gmra.mrb[0].mxu0 %v967
        %v2630 = vpop.f32.mrb[0].mxu0
        %v2631 = vadd.f32 %v2342, %v2630
        %v2632 = vpop.f32.mrb[0].mxu0
        %v2633 = vpop.f32.mrb[0].mxu0
        %v2634 = vadd.f32 %v2345, %v2633
        %v2635 = vpop.f32.mrb[0].mxu0
        %2636 = vmatprep.mubr.bf16.mxu0 %v976
        %2637 = vmatmul.mubr.bf16.gmra.mrb[0].mxu0 %v975
        %v2638 = vpop.f32.mrb[0].mxu0
        %v2639 = vadd.f32 %v2350, %v2638
        %v2640 = vpop.f32.mrb[0].mxu0
        %v2641 = vpop.f32.mrb[0].mxu0
        %v2642 = vadd.f32 %v2353, %v2641
        %v2643 = vpop.f32.mrb[0].mxu0
        %2644 = vdwg.mxu0
        %v2645 = vadd.f32 %v529, %v2391
        %v2646 = vadd.f32 %v530, %v2394
        %v2647 = vadd.f32 %v531, %v2399
        %v2648 = vadd.f32 %v532, %v2402
        %v2649 = vadd.f32 %v533, %v2407
        %v2650 = vadd.f32 %v534, %v2410
        %v2651 = vadd.f32 %v535, %v2415
        %v2652 = vadd.f32 %v536, %v2418
        %v2653 = vadd.f32 %v537, %v2423
        %v2654 = vadd.f32 %v538, %v2426
        %v2655 = vadd.f32 %v539, %v2431
        %v2656 = vadd.f32 %v540, %v2434
        %v2657 = vadd.f32 %v541, %v2439
        %v2658 = vadd.f32 %v542, %v2442
        %v2659 = vadd.f32 %v543, %v2447
        %v2660 = vadd.f32 %v544, %v2450
        %v2661 = vadd.f32 %v545, %v2455
        %v2662 = vadd.f32 %v546, %v2458
        %v2663 = vadd.f32 %v547, %v2463
        %v2664 = vadd.f32 %v548, %v2466
        %v2665 = vadd.f32 %v549, %v2471
        %v2666 = vadd.f32 %v550, %v2474
        %v2667 = vadd.f32 %v551, %v2479
        %v2668 = vadd.f32 %v552, %v2482
        %v2669 = vadd.f32 %v553, %v2487
        %v2670 = vadd.f32 %v554, %v2490
        %v2671 = vadd.f32 %v555, %v2495
        %v2672 = vadd.f32 %v556, %v2498
        %v2673 = vadd.f32 %v557, %v2503
        %v2674 = vadd.f32 %v558, %v2506
        %v2675 = vadd.f32 %v559, %v2511
        %v2676 = vadd.f32 %v560, %v2514
        %v2677 = vadd.f32 %v561, %v2519
        %v2678 = vadd.f32 %v562, %v2522
        %v2679 = vadd.f32 %v563, %v2527
        %v2680 = vadd.f32 %v564, %v2530
        %v2681 = vadd.f32 %v565, %v2535
        %v2682 = vadd.f32 %v566, %v2538
        %v2683 = vadd.f32 %v567, %v2543
        %v2684 = vadd.f32 %v568, %v2546
        %v2685 = vadd.f32 %v569, %v2551
        %v2686 = vadd.f32 %v570, %v2554
        %v2687 = vadd.f32 %v571, %v2559
        %v2688 = vadd.f32 %v572, %v2562
        %v2689 = vadd.f32 %v573, %v2567
        %v2690 = vadd.f32 %v574, %v2570
        %v2691 = vadd.f32 %v575, %v2575
        %v2692 = vadd.f32 %v576, %v2578
        %v2693 = vadd.f32 %v577, %v2583
        %v2694 = vadd.f32 %v578, %v2586
        %v2695 = vadd.f32 %v579, %v2591
        %v2696 = vadd.f32 %v580, %v2594
        %v2697 = vadd.f32 %v581, %v2599
        %v2698 = vadd.f32 %v582, %v2602
        %v2699 = vadd.f32 %v583, %v2607
        %v2700 = vadd.f32 %v584, %v2610
        %v2701 = vadd.f32 %v585, %v2615
        %v2702 = vadd.f32 %v586, %v2618
        %v2703 = vadd.f32 %v587, %v2623
        %v2704 = vadd.f32 %v588, %v2626
        %v2705 = vadd.f32 %v589, %v2631
        %v2706 = vadd.f32 %v590, %v2634
        %v2707 = vadd.f32 %v591, %v2639
        %v2708 = vadd.f32 %v592, %v2642
        %2709 = vst [vmem:[#allocation2] sm:$0xff] %v2645
        %2710 = vst [vmem:[#allocation2 + $0x8] sm:$0xff] %v2646
        %2711 = vst [vmem:[#allocation2 + $0x10] sm:$0xff] %v2647
        %2712 = vst [vmem:[#allocation2 + $0x18] sm:$0xff] %v2648
        %2713 = vst [vmem:[#allocation2 + $0x20] sm:$0xff] %v2649
        %2714 = vst [vmem:[#allocation2 + $0x28] sm:$0xff] %v2650
        %2715 = vst [vmem:[#allocation2 + $0x30] sm:$0xff] %v2651
        %2716 = vst [vmem:[#allocation2 + $0x38] sm:$0xff] %v2652
        %2717 = vst [vmem:[#allocation2 + $0x40] sm:$0xff] %v2653
        %2718 = vst [vmem:[#allocation2 + $0x48] sm:$0xff] %v2654
        %2719 = vst [vmem:[#allocation2 + $0x50] sm:$0xff] %v2655
        %2720 = vst [vmem:[#allocation2 + $0x58] sm:$0xff] %v2656
        %2721 = vst [vmem:[#allocation2 + $0x60] sm:$0xff] %v2657
        %2722 = vst [vmem:[#allocation2 + $0x68] sm:$0xff] %v2658
        %2723 = vst [vmem:[#allocation2 + $0x70] sm:$0xff] %v2659
        %2724 = vst [vmem:[#allocation2 + $0x78] sm:$0xff] %v2660
        %2725 = vst [vmem:[#allocation2 + $0x80] sm:$0xff] %v2661
        %2726 = vst [vmem:[#allocation2 + $0x88] sm:$0xff] %v2662
        %2727 = vst [vmem:[#allocation2 + $0x90] sm:$0xff] %v2663
        %2728 = vst [vmem:[#allocation2 + $0x98] sm:$0xff] %v2664
        %2729 = vst [vmem:[#allocation2 + $0xa0] sm:$0xff] %v2665
        %2730 = vst [vmem:[#allocation2 + $0xa8] sm:$0xff] %v2666
        %2731 = vst [vmem:[#allocation2 + $0xb0] sm:$0xff] %v2667
        %2732 = vst [vmem:[#allocation2 + $0xb8] sm:$0xff] %v2668
        %2733 = vst [vmem:[#allocation2 + $0xc0] sm:$0xff] %v2669
        %2734 = vst [vmem:[#allocation2 + $0xc8] sm:$0xff] %v2670
        %2735 = vst [vmem:[#allocation2 + $0xd0] sm:$0xff] %v2671
        %2736 = vst [vmem:[#allocation2 + $0xd8] sm:$0xff] %v2672
        %2737 = vst [vmem:[#allocation2 + $0xe0] sm:$0xff] %v2673
        %2738 = vst [vmem:[#allocation2 + $0xe8] sm:$0xff] %v2674
        %2739 = vst [vmem:[#allocation2 + $0xf0] sm:$0xff] %v2675
        %2740 = vst [vmem:[#allocation2 + $0xf8] sm:$0xff] %v2676
        %2741 = vst [vmem:[#allocation2 + $0x100] sm:$0xff] %v2677
        %2742 = vst [vmem:[#allocation2 + $0x108] sm:$0xff] %v2678
        %2743 = vst [vmem:[#allocation2 + $0x110] sm:$0xff] %v2679
        %2744 = vst [vmem:[#allocation2 + $0x118] sm:$0xff] %v2680
        %2745 = vst [vmem:[#allocation2 + $0x120] sm:$0xff] %v2681
        %2746 = vst [vmem:[#allocation2 + $0x128] sm:$0xff] %v2682
        %2747 = vst [vmem:[#allocation2 + $0x130] sm:$0xff] %v2683
        %2748 = vst [vmem:[#allocation2 + $0x138] sm:$0xff] %v2684
        %2749 = vst [vmem:[#allocation2 + $0x140] sm:$0xff] %v2685
        %2750 = vst [vmem:[#allocation2 + $0x148] sm:$0xff] %v2686
        %2751 = vst [vmem:[#allocation2 + $0x150] sm:$0xff] %v2687
        %2752 = vst [vmem:[#allocation2 + $0x158] sm:$0xff] %v2688
        %2753 = vst [vmem:[#allocation2 + $0x160] sm:$0xff] %v2689
        %2754 = vst [vmem:[#allocation2 + $0x168] sm:$0xff] %v2690
        %2755 = vst [vmem:[#allocation2 + $0x170] sm:$0xff] %v2691
        %2756 = vst [vmem:[#allocation2 + $0x178] sm:$0xff] %v2692
        %2757 = vst [vmem:[#allocation2 + $0x180] sm:$0xff] %v2693
        %2758 = vst [vmem:[#allocation2 + $0x188] sm:$0xff] %v2694
        %2759 = vst [vmem:[#allocation2 + $0x190] sm:$0xff] %v2695
        %2760 = vst [vmem:[#allocation2 + $0x198] sm:$0xff] %v2696
        %2761 = vst [vmem:[#allocation2 + $0x1a0] sm:$0xff] %v2697
        %2762 = vst [vmem:[#allocation2 + $0x1a8] sm:$0xff] %v2698
        %2763 = vst [vmem:[#allocation2 + $0x1b0] sm:$0xff] %v2699
        %2764 = vst [vmem:[#allocation2 + $0x1b8] sm:$0xff] %v2700
        %2765 = vst [vmem:[#allocation2 + $0x1c0] sm:$0xff] %v2701
        %2766 = vst [vmem:[#allocation2 + $0x1c8] sm:$0xff] %v2702
        %2767 = vst [vmem:[#allocation2 + $0x1d0] sm:$0xff] %v2703
        %2768 = vst [vmem:[#allocation2 + $0x1d8] sm:$0xff] %v2704
        %2769 = vst [vmem:[#allocation2 + $0x1e0] sm:$0xff] %v2705
        %2770 = vst [vmem:[#allocation2 + $0x1e8] sm:$0xff] %v2706
        %2771 = vst [vmem:[#allocation2 + $0x1f0] sm:$0xff] %v2707
        %2772 = vst [vmem:[#allocation2 + $0x1f8] sm:$0xff] %v2708
        %p2773 = scmp.eq.s32.totalorder %s34, 2
        // Predicated region
        $region77: #{tpu_custom_call.1} parent=47 // pred_check
          %p2774 = pneg %p2773
        $region78: #{tpu_custom_call.1} parent=47 // pred_check_branch
          %2776 = sbr.rel (%p2774) target = $region80
        $region79: #{tpu_custom_call.1} parent=47 // pred_region
          %v2777 = vld [vmem:[#allocation2] sm:$0xff]
          %v2778 = vld [vmem:[#allocation2 + $0x8] sm:$0xff]
          %v2779 = vld [vmem:[#allocation2 + $0x10] sm:$0xff]
          %v2780 = vld [vmem:[#allocation2 + $0x18] sm:$0xff]
          %v2781 = vld [vmem:[#allocation2 + $0x20] sm:$0xff]
          %v2782 = vld [vmem:[#allocation2 + $0x28] sm:$0xff]
          %v2783 = vld [vmem:[#allocation2 + $0x30] sm:$0xff]
          %v2784 = vld [vmem:[#allocation2 + $0x38] sm:$0xff]
          %v2785 = vld [vmem:[#allocation2 + $0x40] sm:$0xff]
          %v2786 = vld [vmem:[#allocation2 + $0x48] sm:$0xff]
          %v2787 = vld [vmem:[#allocation2 + $0x50] sm:$0xff]
          %v2788 = vld [vmem:[#allocation2 + $0x58] sm:$0xff]
          %v2789 = vld [vmem:[#allocation2 + $0x60] sm:$0xff]
          %v2790 = vld [vmem:[#allocation2 + $0x68] sm:$0xff]
          %v2791 = vld [vmem:[#allocation2 + $0x70] sm:$0xff]
          %v2792 = vld [vmem:[#allocation2 + $0x78] sm:$0xff]
          %v2793 = vld [vmem:[#allocation2 + $0x80] sm:$0xff]
          %v2794 = vld [vmem:[#allocation2 + $0x88] sm:$0xff]
          %v2795 = vld [vmem:[#allocation2 + $0x90] sm:$0xff]
          %v2796 = vld [vmem:[#allocation2 + $0x98] sm:$0xff]
          %v2797 = vld [vmem:[#allocation2 + $0xa0] sm:$0xff]
          %v2798 = vld [vmem:[#allocation2 + $0xa8] sm:$0xff]
          %v2799 = vld [vmem:[#allocation2 + $0xb0] sm:$0xff]
          %v2800 = vld [vmem:[#allocation2 + $0xb8] sm:$0xff]
          %v2801 = vld [vmem:[#allocation2 + $0xc0] sm:$0xff]
          %v2802 = vld [vmem:[#allocation2 + $0xc8] sm:$0xff]
          %v2803 = vld [vmem:[#allocation2 + $0xd0] sm:$0xff]
          %v2804 = vld [vmem:[#allocation2 + $0xd8] sm:$0xff]
          %v2805 = vld [vmem:[#allocation2 + $0xe0] sm:$0xff]
          %v2806 = vld [vmem:[#allocation2 + $0xe8] sm:$0xff]
          %v2807 = vld [vmem:[#allocation2 + $0xf0] sm:$0xff]
          %v2808 = vld [vmem:[#allocation2 + $0xf8] sm:$0xff]
          %v2809 = vld [vmem:[#allocation2 + $0x100] sm:$0xff]
          %v2810 = vld [vmem:[#allocation2 + $0x108] sm:$0xff]
          %v2811 = vld [vmem:[#allocation2 + $0x110] sm:$0xff]
          %v2812 = vld [vmem:[#allocation2 + $0x118] sm:$0xff]
          %v2813 = vld [vmem:[#allocation2 + $0x120] sm:$0xff]
          %v2814 = vld [vmem:[#allocation2 + $0x128] sm:$0xff]
          %v2815 = vld [vmem:[#allocation2 + $0x130] sm:$0xff]
          %v2816 = vld [vmem:[#allocation2 + $0x138] sm:$0xff]
          %v2817 = vld [vmem:[#allocation2 + $0x140] sm:$0xff]
          %v2818 = vld [vmem:[#allocation2 + $0x148] sm:$0xff]
          %v2819 = vld [vmem:[#allocation2 + $0x150] sm:$0xff]
          %v2820 = vld [vmem:[#allocation2 + $0x158] sm:$0xff]
          %v2821 = vld [vmem:[#allocation2 + $0x160] sm:$0xff]
          %v2822 = vld [vmem:[#allocation2 + $0x168] sm:$0xff]
          %v2823 = vld [vmem:[#allocation2 + $0x170] sm:$0xff]
          %v2824 = vld [vmem:[#allocation2 + $0x178] sm:$0xff]
          %v2825 = vld [vmem:[#allocation2 + $0x180] sm:$0xff]
          %v2826 = vld [vmem:[#allocation2 + $0x188] sm:$0xff]
          %v2827 = vld [vmem:[#allocation2 + $0x190] sm:$0xff]
          %v2828 = vld [vmem:[#allocation2 + $0x198] sm:$0xff]
          %v2829 = vld [vmem:[#allocation2 + $0x1a0] sm:$0xff]
          %v2830 = vld [vmem:[#allocation2 + $0x1a8] sm:$0xff]
          %v2831 = vld [vmem:[#allocation2 + $0x1b0] sm:$0xff]
          %v2832 = vld [vmem:[#allocation2 + $0x1b8] sm:$0xff]
          %v2833 = vld [vmem:[#allocation2 + $0x1c0] sm:$0xff]
          %v2834 = vld [vmem:[#allocation2 + $0x1c8] sm:$0xff]
          %v2835 = vld [vmem:[#allocation2 + $0x1d0] sm:$0xff]
          %v2836 = vld [vmem:[#allocation2 + $0x1d8] sm:$0xff]
          %v2837 = vld [vmem:[#allocation2 + $0x1e0] sm:$0xff]
          %v2838 = vld [vmem:[#allocation2 + $0x1e8] sm:$0xff]
          %v2839 = vld [vmem:[#allocation2 + $0x1f0] sm:$0xff]
          %v2840 = vld [vmem:[#allocation2 + $0x1f8] sm:$0xff]
          %v2841 = vld [vmem:[%s457] sm:$0xff]
          %v2842 = vld [vmem:[%s457 + $0x8] sm:$0xff]
          %v2843 = vld [vmem:[%s457 + $0x10] sm:$0xff]
          %v2844 = vld [vmem:[%s457 + $0x18] sm:$0xff]
          %v2845 = vld [vmem:[%s457 + $0x20] sm:$0xff]
          %v2846 = vld [vmem:[%s457 + $0x28] sm:$0xff]
          %v2847 = vld [vmem:[%s457 + $0x30] sm:$0xff]
          %v2848 = vld [vmem:[%s457 + $0x38] sm:$0xff]
          %v2849 = vld [vmem:[%s457 + $0x40] sm:$0xff]
          %v2850 = vld [vmem:[%s457 + $0x48] sm:$0xff]
          %v2851 = vld [vmem:[%s457 + $0x50] sm:$0xff]
          %v2852 = vld [vmem:[%s457 + $0x58] sm:$0xff]
          %v2853 = vld [vmem:[%s457 + $0x60] sm:$0xff]
          %v2854 = vld [vmem:[%s457 + $0x68] sm:$0xff]
          %v2855 = vld [vmem:[%s457 + $0x70] sm:$0xff]
          %v2856 = vld [vmem:[%s457 + $0x78] sm:$0xff]
          %v2857 = vld [vmem:[%s457 + $0x80] sm:$0xff]
          %v2858 = vld [vmem:[%s457 + $0x88] sm:$0xff]
          %v2859 = vld [vmem:[%s457 + $0x90] sm:$0xff]
          %v2860 = vld [vmem:[%s457 + $0x98] sm:$0xff]
          %v2861 = vld [vmem:[%s457 + $0xa0] sm:$0xff]
          %v2862 = vld [vmem:[%s457 + $0xa8] sm:$0xff]
          %v2863 = vld [vmem:[%s457 + $0xb0] sm:$0xff]
          %v2864 = vld [vmem:[%s457 + $0xb8] sm:$0xff]
          %v2865 = vld [vmem:[%s457 + $0xc0] sm:$0xff]
          %v2866 = vld [vmem:[%s457 + $0xc8] sm:$0xff]
          %v2867 = vld [vmem:[%s457 + $0xd0] sm:$0xff]
          %v2868 = vld [vmem:[%s457 + $0xd8] sm:$0xff]
          %v2869 = vld [vmem:[%s457 + $0xe0] sm:$0xff]
          %v2870 = vld [vmem:[%s457 + $0xe8] sm:$0xff]
          %v2871 = vld [vmem:[%s457 + $0xf0] sm:$0xff]
          %v2872 = vld [vmem:[%s457 + $0xf8] sm:$0xff]
          %v2873 = vld [vmem:[%s457 + $0x100] sm:$0xff]
          %v2874 = vld [vmem:[%s457 + $0x108] sm:$0xff]
          %v2875 = vld [vmem:[%s457 + $0x110] sm:$0xff]
          %v2876 = vld [vmem:[%s457 + $0x118] sm:$0xff]
          %v2877 = vld [vmem:[%s457 + $0x120] sm:$0xff]
          %v2878 = vld [vmem:[%s457 + $0x128] sm:$0xff]
          %v2879 = vld [vmem:[%s457 + $0x130] sm:$0xff]
          %v2880 = vld [vmem:[%s457 + $0x138] sm:$0xff]
          %v2881 = vld [vmem:[%s457 + $0x140] sm:$0xff]
          %v2882 = vld [vmem:[%s457 + $0x148] sm:$0xff]
          %v2883 = vld [vmem:[%s457 + $0x150] sm:$0xff]
          %v2884 = vld [vmem:[%s457 + $0x158] sm:$0xff]
          %v2885 = vld [vmem:[%s457 + $0x160] sm:$0xff]
          %v2886 = vld [vmem:[%s457 + $0x168] sm:$0xff]
          %v2887 = vld [vmem:[%s457 + $0x170] sm:$0xff]
          %v2888 = vld [vmem:[%s457 + $0x178] sm:$0xff]
          %v2889 = vld [vmem:[%s457 + $0x180] sm:$0xff]
          %v2890 = vld [vmem:[%s457 + $0x188] sm:$0xff]
          %v2891 = vld [vmem:[%s457 + $0x190] sm:$0xff]
          %v2892 = vld [vmem:[%s457 + $0x198] sm:$0xff]
          %v2893 = vld [vmem:[%s457 + $0x1a0] sm:$0xff]
          %v2894 = vld [vmem:[%s457 + $0x1a8] sm:$0xff]
          %v2895 = vld [vmem:[%s457 + $0x1b0] sm:$0xff]
          %v2896 = vld [vmem:[%s457 + $0x1b8] sm:$0xff]
          %v2897 = vld [vmem:[%s457 + $0x1c0] sm:$0xff]
          %v2898 = vld [vmem:[%s457 + $0x1c8] sm:$0xff]
          %v2899 = vld [vmem:[%s457 + $0x1d0] sm:$0xff]
          %v2900 = vld [vmem:[%s457 + $0x1d8] sm:$0xff]
          %v2901 = vld [vmem:[%s457 + $0x1e0] sm:$0xff]
          %v2902 = vld [vmem:[%s457 + $0x1e8] sm:$0xff]
          %v2903 = vld [vmem:[%s457 + $0x1f0] sm:$0xff]
          %v2904 = vld [vmem:[%s457 + $0x1f8] sm:$0xff]
          %2906 = vset.pattern.permute.xlu0 0
          %2907 = vperm.xlu0 %2906, %v2841
          %v2908 = vpop.permute.xlu0 %2907
          %2911 = vset.pattern.permute.xlu0 0
          %2912 = vperm.xlu0 %2911, %v2842
          %v2913 = vpop.permute.xlu0 %2912
          %2916 = vset.pattern.permute.xlu0 0
          %2917 = vperm.xlu0 %2916, %v2843
          %v2918 = vpop.permute.xlu0 %2917
          %2921 = vset.pattern.permute.xlu0 0
          %2922 = vperm.xlu0 %2921, %v2844
          %v2923 = vpop.permute.xlu0 %2922
          %2926 = vset.pattern.permute.xlu0 0
          %2927 = vperm.xlu0 %2926, %v2845
          %v2928 = vpop.permute.xlu0 %2927
          %2931 = vset.pattern.permute.xlu0 0
          %2932 = vperm.xlu0 %2931, %v2846
          %v2933 = vpop.permute.xlu0 %2932
          %2936 = vset.pattern.permute.xlu0 0
          %2937 = vperm.xlu0 %2936, %v2847
          %v2938 = vpop.permute.xlu0 %2937
          %2941 = vset.pattern.permute.xlu0 0
          %2942 = vperm.xlu0 %2941, %v2848
          %v2943 = vpop.permute.xlu0 %2942
          %2946 = vset.pattern.permute.xlu0 0
          %2947 = vperm.xlu0 %2946, %v2849
          %v2948 = vpop.permute.xlu0 %2947
          %2951 = vset.pattern.permute.xlu0 0
          %2952 = vperm.xlu0 %2951, %v2850
          %v2953 = vpop.permute.xlu0 %2952
          %2956 = vset.pattern.permute.xlu0 0
          %2957 = vperm.xlu0 %2956, %v2851
          %v2958 = vpop.permute.xlu0 %2957
          %2961 = vset.pattern.permute.xlu0 0
          %2962 = vperm.xlu0 %2961, %v2852
          %v2963 = vpop.permute.xlu0 %2962
          %2966 = vset.pattern.permute.xlu0 0
          %2967 = vperm.xlu0 %2966, %v2853
          %v2968 = vpop.permute.xlu0 %2967
          %2971 = vset.pattern.permute.xlu0 0
          %2972 = vperm.xlu0 %2971, %v2854
          %v2973 = vpop.permute.xlu0 %2972
          %2976 = vset.pattern.permute.xlu0 0
          %2977 = vperm.xlu0 %2976, %v2855
          %v2978 = vpop.permute.xlu0 %2977
          %2981 = vset.pattern.permute.xlu0 0
          %2982 = vperm.xlu0 %2981, %v2856
          %v2983 = vpop.permute.xlu0 %2982
          %2986 = vset.pattern.permute.xlu0 0
          %2987 = vperm.xlu0 %2986, %v2857
          %v2988 = vpop.permute.xlu0 %2987
          %2991 = vset.pattern.permute.xlu0 0
          %2992 = vperm.xlu0 %2991, %v2858
          %v2993 = vpop.permute.xlu0 %2992
          %2996 = vset.pattern.permute.xlu0 0
          %2997 = vperm.xlu0 %2996, %v2859
          %v2998 = vpop.permute.xlu0 %2997
          %3001 = vset.pattern.permute.xlu0 0
          %3002 = vperm.xlu0 %3001, %v2860
          %v3003 = vpop.permute.xlu0 %3002
          %3006 = vset.pattern.permute.xlu0 0
          %3007 = vperm.xlu0 %3006, %v2861
          %v3008 = vpop.permute.xlu0 %3007
          %3011 = vset.pattern.permute.xlu0 0
          %3012 = vperm.xlu0 %3011, %v2862
          %v3013 = vpop.permute.xlu0 %3012
          %3016 = vset.pattern.permute.xlu0 0
          %3017 = vperm.xlu0 %3016, %v2863
          %v3018 = vpop.permute.xlu0 %3017
          %3021 = vset.pattern.permute.xlu0 0
          %3022 = vperm.xlu0 %3021, %v2864
          %v3023 = vpop.permute.xlu0 %3022
          %3026 = vset.pattern.permute.xlu0 0
          %3027 = vperm.xlu0 %3026, %v2865
          %v3028 = vpop.permute.xlu0 %3027
          %3031 = vset.pattern.permute.xlu0 0
          %3032 = vperm.xlu0 %3031, %v2866
          %v3033 = vpop.permute.xlu0 %3032
          %3036 = vset.pattern.permute.xlu0 0
          %3037 = vperm.xlu0 %3036, %v2867
          %v3038 = vpop.permute.xlu0 %3037
          %3041 = vset.pattern.permute.xlu0 0
          %3042 = vperm.xlu0 %3041, %v2868
          %v3043 = vpop.permute.xlu0 %3042
          %3046 = vset.pattern.permute.xlu0 0
          %3047 = vperm.xlu0 %3046, %v2869
          %v3048 = vpop.permute.xlu0 %3047
          %3051 = vset.pattern.permute.xlu0 0
          %3052 = vperm.xlu0 %3051, %v2870
          %v3053 = vpop.permute.xlu0 %3052
          %3056 = vset.pattern.permute.xlu0 0
          %3057 = vperm.xlu0 %3056, %v2871
          %v3058 = vpop.permute.xlu0 %3057
          %3061 = vset.pattern.permute.xlu0 0
          %3062 = vperm.xlu0 %3061, %v2872
          %v3063 = vpop.permute.xlu0 %3062
          %3066 = vset.pattern.permute.xlu0 0
          %3067 = vperm.xlu0 %3066, %v2873
          %v3068 = vpop.permute.xlu0 %3067
          %3071 = vset.pattern.permute.xlu0 0
          %3072 = vperm.xlu0 %3071, %v2874
          %v3073 = vpop.permute.xlu0 %3072
          %3076 = vset.pattern.permute.xlu0 0
          %3077 = vperm.xlu0 %3076, %v2875
          %v3078 = vpop.permute.xlu0 %3077
          %3081 = vset.pattern.permute.xlu0 0
          %3082 = vperm.xlu0 %3081, %v2876
          %v3083 = vpop.permute.xlu0 %3082
          %3086 = vset.pattern.permute.xlu0 0
          %3087 = vperm.xlu0 %3086, %v2877
          %v3088 = vpop.permute.xlu0 %3087
          %3091 = vset.pattern.permute.xlu0 0
          %3092 = vperm.xlu0 %3091, %v2878
          %v3093 = vpop.permute.xlu0 %3092
          %3096 = vset.pattern.permute.xlu0 0
          %3097 = vperm.xlu0 %3096, %v2879
          %v3098 = vpop.permute.xlu0 %3097
          %3101 = vset.pattern.permute.xlu0 0
          %3102 = vperm.xlu0 %3101, %v2880
          %v3103 = vpop.permute.xlu0 %3102
          %3106 = vset.pattern.permute.xlu0 0
          %3107 = vperm.xlu0 %3106, %v2881
          %v3108 = vpop.permute.xlu0 %3107
          %3111 = vset.pattern.permute.xlu0 0
          %3112 = vperm.xlu0 %3111, %v2882
          %v3113 = vpop.permute.xlu0 %3112
          %3116 = vset.pattern.permute.xlu0 0
          %3117 = vperm.xlu0 %3116, %v2883
          %v3118 = vpop.permute.xlu0 %3117
          %3121 = vset.pattern.permute.xlu0 0
          %3122 = vperm.xlu0 %3121, %v2884
          %v3123 = vpop.permute.xlu0 %3122
          %3126 = vset.pattern.permute.xlu0 0
          %3127 = vperm.xlu0 %3126, %v2885
          %v3128 = vpop.permute.xlu0 %3127
          %3131 = vset.pattern.permute.xlu0 0
          %3132 = vperm.xlu0 %3131, %v2886
          %v3133 = vpop.permute.xlu0 %3132
          %3136 = vset.pattern.permute.xlu0 0
          %3137 = vperm.xlu0 %3136, %v2887
          %v3138 = vpop.permute.xlu0 %3137
          %3141 = vset.pattern.permute.xlu0 0
          %3142 = vperm.xlu0 %3141, %v2888
          %v3143 = vpop.permute.xlu0 %3142
          %3146 = vset.pattern.permute.xlu0 0
          %3147 = vperm.xlu0 %3146, %v2889
          %v3148 = vpop.permute.xlu0 %3147
          %3151 = vset.pattern.permute.xlu0 0
          %3152 = vperm.xlu0 %3151, %v2890
          %v3153 = vpop.permute.xlu0 %3152
          %3156 = vset.pattern.permute.xlu0 0
          %3157 = vperm.xlu0 %3156, %v2891
          %v3158 = vpop.permute.xlu0 %3157
          %3161 = vset.pattern.permute.xlu0 0
          %3162 = vperm.xlu0 %3161, %v2892
          %v3163 = vpop.permute.xlu0 %3162
          %3166 = vset.pattern.permute.xlu0 0
          %3167 = vperm.xlu0 %3166, %v2893
          %v3168 = vpop.permute.xlu0 %3167
          %3171 = vset.pattern.permute.xlu0 0
          %3172 = vperm.xlu0 %3171, %v2894
          %v3173 = vpop.permute.xlu0 %3172
          %3176 = vset.pattern.permute.xlu0 0
          %3177 = vperm.xlu0 %3176, %v2895
          %v3178 = vpop.permute.xlu0 %3177
          %3181 = vset.pattern.permute.xlu0 0
          %3182 = vperm.xlu0 %3181, %v2896
          %v3183 = vpop.permute.xlu0 %3182
          %3186 = vset.pattern.permute.xlu0 0
          %3187 = vperm.xlu0 %3186, %v2897
          %v3188 = vpop.permute.xlu0 %3187
          %3191 = vset.pattern.permute.xlu0 0
          %3192 = vperm.xlu0 %3191, %v2898
          %v3193 = vpop.permute.xlu0 %3192
          %3196 = vset.pattern.permute.xlu0 0
          %3197 = vperm.xlu0 %3196, %v2899
          %v3198 = vpop.permute.xlu0 %3197
          %3201 = vset.pattern.permute.xlu0 0
          %3202 = vperm.xlu0 %3201, %v2900
          %v3203 = vpop.permute.xlu0 %3202
          %3206 = vset.pattern.permute.xlu0 0
          %3207 = vperm.xlu0 %3206, %v2901
          %v3208 = vpop.permute.xlu0 %3207
          %3211 = vset.pattern.permute.xlu0 0
          %3212 = vperm.xlu0 %3211, %v2902
          %v3213 = vpop.permute.xlu0 %3212
          %3216 = vset.pattern.permute.xlu0 0
          %3217 = vperm.xlu0 %3216, %v2903
          %v3218 = vpop.permute.xlu0 %3217
          %3221 = vset.pattern.permute.xlu0 0
          %3222 = vperm.xlu0 %3221, %v2904
          %v3223 = vpop.permute.xlu0 %3222
          %v3225 = vmul.f32 %v2777, %v2908
          %v3226 = vmul.f32 %v2778, %v2913
          %v3227 = vmul.f32 %v2779, %v2918
          %v3228 = vmul.f32 %v2780, %v2923
          %v3229 = vmul.f32 %v2781, %v2928
          %v3230 = vmul.f32 %v2782, %v2933
          %v3231 = vmul.f32 %v2783, %v2938
          %v3232 = vmul.f32 %v2784, %v2943
          %v3233 = vmul.f32 %v2785, %v2948
          %v3234 = vmul.f32 %v2786, %v2953
          %v3235 = vmul.f32 %v2787, %v2958
          %v3236 = vmul.f32 %v2788, %v2963
          %v3237 = vmul.f32 %v2789, %v2968
          %v3238 = vmul.f32 %v2790, %v2973
          %v3239 = vmul.f32 %v2791, %v2978
          %v3240 = vmul.f32 %v2792, %v2983
          %v3241 = vmul.f32 %v2793, %v2988
          %v3242 = vmul.f32 %v2794, %v2993
          %v3243 = vmul.f32 %v2795, %v2998
          %v3244 = vmul.f32 %v2796, %v3003
          %v3245 = vmul.f32 %v2797, %v3008
          %v3246 = vmul.f32 %v2798, %v3013
          %v3247 = vmul.f32 %v2799, %v3018
          %v3248 = vmul.f32 %v2800, %v3023
          %v3249 = vmul.f32 %v2801, %v3028
          %v3250 = vmul.f32 %v2802, %v3033
          %v3251 = vmul.f32 %v2803, %v3038
          %v3252 = vmul.f32 %v2804, %v3043
          %v3253 = vmul.f32 %v2805, %v3048
          %v3254 = vmul.f32 %v2806, %v3053
          %v3255 = vmul.f32 %v2807, %v3058
          %v3256 = vmul.f32 %v2808, %v3063
          %v3257 = vmul.f32 %v2809, %v3068
          %v3258 = vmul.f32 %v2810, %v3073
          %v3259 = vmul.f32 %v2811, %v3078
          %v3260 = vmul.f32 %v2812, %v3083
          %v3261 = vmul.f32 %v2813, %v3088
          %v3262 = vmul.f32 %v2814, %v3093
          %v3263 = vmul.f32 %v2815, %v3098
          %v3264 = vmul.f32 %v2816, %v3103
          %v3265 = vmul.f32 %v2817, %v3108
          %v3266 = vmul.f32 %v2818, %v3113
          %v3267 = vmul.f32 %v2819, %v3118
          %v3268 = vmul.f32 %v2820, %v3123
          %v3269 = vmul.f32 %v2821, %v3128
          %v3270 = vmul.f32 %v2822, %v3133
          %v3271 = vmul.f32 %v2823, %v3138
          %v3272 = vmul.f32 %v2824, %v3143
          %v3273 = vmul.f32 %v2825, %v3148
          %v3274 = vmul.f32 %v2826, %v3153
          %v3275 = vmul.f32 %v2827, %v3158
          %v3276 = vmul.f32 %v2828, %v3163
          %v3277 = vmul.f32 %v2829, %v3168
          %v3278 = vmul.f32 %v2830, %v3173
          %v3279 = vmul.f32 %v2831, %v3178
          %v3280 = vmul.f32 %v2832, %v3183
          %v3281 = vmul.f32 %v2833, %v3188
          %v3282 = vmul.f32 %v2834, %v3193
          %v3283 = vmul.f32 %v2835, %v3198
          %v3284 = vmul.f32 %v2836, %v3203
          %v3285 = vmul.f32 %v2837, %v3208
          %v3286 = vmul.f32 %v2838, %v3213
          %v3287 = vmul.f32 %v2839, %v3218
          %v3288 = vmul.f32 %v2840, %v3223
          %v3289 = vpack.c.bf16 %v3226, %v3225
          %v3290 = vpack.c.bf16 %v3228, %v3227
          %v3291 = vpack.c.bf16 %v3230, %v3229
          %v3292 = vpack.c.bf16 %v3232, %v3231
          %v3293 = vpack.c.bf16 %v3234, %v3233
          %v3294 = vpack.c.bf16 %v3236, %v3235
          %v3295 = vpack.c.bf16 %v3238, %v3237
          %v3296 = vpack.c.bf16 %v3240, %v3239
          %v3297 = vpack.c.bf16 %v3242, %v3241
          %v3298 = vpack.c.bf16 %v3244, %v3243
          %v3299 = vpack.c.bf16 %v3246, %v3245
          %v3300 = vpack.c.bf16 %v3248, %v3247
          %v3301 = vpack.c.bf16 %v3250, %v3249
          %v3302 = vpack.c.bf16 %v3252, %v3251
          %v3303 = vpack.c.bf16 %v3254, %v3253
          %v3304 = vpack.c.bf16 %v3256, %v3255
          %v3305 = vpack.c.bf16 %v3258, %v3257
          %v3306 = vpack.c.bf16 %v3260, %v3259
          %v3307 = vpack.c.bf16 %v3262, %v3261
          %v3308 = vpack.c.bf16 %v3264, %v3263
          %v3309 = vpack.c.bf16 %v3266, %v3265
          %v3310 = vpack.c.bf16 %v3268, %v3267
          %v3311 = vpack.c.bf16 %v3270, %v3269
          %v3312 = vpack.c.bf16 %v3272, %v3271
          %v3313 = vpack.c.bf16 %v3274, %v3273
          %v3314 = vpack.c.bf16 %v3276, %v3275
          %v3315 = vpack.c.bf16 %v3278, %v3277
          %v3316 = vpack.c.bf16 %v3280, %v3279
          %v3317 = vpack.c.bf16 %v3282, %v3281
          %v3318 = vpack.c.bf16 %v3284, %v3283
          %v3319 = vpack.c.bf16 %v3286, %v3285
          %v3320 = vpack.c.bf16 %v3288, %v3287
          %v3321 = vld [vmem:[#allocation9] sm:$0xf]
          %v3322 = vld [vmem:[#allocation9 + $0x4] sm:$0xf]
          %v3323 = vld [vmem:[#allocation9 + $0x8] sm:$0xf]
          %v3324 = vld [vmem:[#allocation9 + $0xc] sm:$0xf]
          %v3325 = vld [vmem:[#allocation9 + $0x10] sm:$0xf]
          %v3326 = vld [vmem:[#allocation9 + $0x14] sm:$0xf]
          %v3327 = vld [vmem:[#allocation9 + $0x18] sm:$0xf]
          %v3328 = vld [vmem:[#allocation9 + $0x1c] sm:$0xf]
          %v3329 = vld [vmem:[#allocation9 + $0x20] sm:$0xf]
          %v3330 = vld [vmem:[#allocation9 + $0x24] sm:$0xf]
          %v3331 = vld [vmem:[#allocation9 + $0x28] sm:$0xf]
          %v3332 = vld [vmem:[#allocation9 + $0x2c] sm:$0xf]
          %v3333 = vld [vmem:[#allocation9 + $0x30] sm:$0xf]
          %v3334 = vld [vmem:[#allocation9 + $0x34] sm:$0xf]
          %v3335 = vld [vmem:[#allocation9 + $0x38] sm:$0xf]
          %v3336 = vld [vmem:[#allocation9 + $0x3c] sm:$0xf]
          %v3337 = vld [vmem:[%s391] sm:$0xf]
          %v3338 = vld [vmem:[%s391 + $0x4] sm:$0xf]
          %v3339 = vld [vmem:[%s391 + $0x8] sm:$0xf]
          %v3340 = vld [vmem:[%s391 + $0xc] sm:$0xf]
          %v3341 = vld [vmem:[%s391 + $0x10] sm:$0xf]
          %v3342 = vld [vmem:[%s391 + $0x14] sm:$0xf]
          %v3343 = vld [vmem:[%s391 + $0x18] sm:$0xf]
          %v3344 = vld [vmem:[%s391 + $0x1c] sm:$0xf]
          %v3345 = vld [vmem:[%s391 + $0x20] sm:$0xf]
          %v3346 = vld [vmem:[%s391 + $0x24] sm:$0xf]
          %v3347 = vld [vmem:[%s391 + $0x28] sm:$0xf]
          %v3348 = vld [vmem:[%s391 + $0x2c] sm:$0xf]
          %v3349 = vld [vmem:[%s391 + $0x30] sm:$0xf]
          %v3350 = vld [vmem:[%s391 + $0x34] sm:$0xf]
          %v3351 = vld [vmem:[%s391 + $0x38] sm:$0xf]
          %v3352 = vld [vmem:[%s391 + $0x3c] sm:$0xf]
          %v3353 = vld [vmem:[%s391 + $0x40] sm:$0xf]
          %v3354 = vld [vmem:[%s391 + $0x44] sm:$0xf]
          %v3355 = vld [vmem:[%s391 + $0x48] sm:$0xf]
          %v3356 = vld [vmem:[%s391 + $0x4c] sm:$0xf]
          %v3357 = vld [vmem:[%s391 + $0x50] sm:$0xf]
          %v3358 = vld [vmem:[%s391 + $0x54] sm:$0xf]
          %v3359 = vld [vmem:[%s391 + $0x58] sm:$0xf]
          %v3360 = vld [vmem:[%s391 + $0x5c] sm:$0xf]
          %v3361 = vld [vmem:[%s391 + $0x60] sm:$0xf]
          %v3362 = vld [vmem:[%s391 + $0x64] sm:$0xf]
          %v3363 = vld [vmem:[%s391 + $0x68] sm:$0xf]
          %v3364 = vld [vmem:[%s391 + $0x6c] sm:$0xf]
          %v3365 = vld [vmem:[%s391 + $0x70] sm:$0xf]
          %v3366 = vld [vmem:[%s391 + $0x74] sm:$0xf]
          %v3367 = vld [vmem:[%s391 + $0x78] sm:$0xf]
          %v3368 = vld [vmem:[%s391 + $0x7c] sm:$0xf]
          %v3369 = vld [vmem:[%s391 + $0x80] sm:$0xf]
          %v3370 = vld [vmem:[%s391 + $0x84] sm:$0xf]
          %v3371 = vld [vmem:[%s391 + $0x88] sm:$0xf]
          %v3372 = vld [vmem:[%s391 + $0x8c] sm:$0xf]
          %v3373 = vld [vmem:[%s391 + $0x90] sm:$0xf]
          %v3374 = vld [vmem:[%s391 + $0x94] sm:$0xf]
          %v3375 = vld [vmem:[%s391 + $0x98] sm:$0xf]
          %v3376 = vld [vmem:[%s391 + $0x9c] sm:$0xf]
          %v3377 = vld [vmem:[%s391 + $0xa0] sm:$0xf]
          %v3378 = vld [vmem:[%s391 + $0xa4] sm:$0xf]
          %v3379 = vld [vmem:[%s391 + $0xa8] sm:$0xf]
          %v3380 = vld [vmem:[%s391 + $0xac] sm:$0xf]
          %v3381 = vld [vmem:[%s391 + $0xb0] sm:$0xf]
          %v3382 = vld [vmem:[%s391 + $0xb4] sm:$0xf]
          %v3383 = vld [vmem:[%s391 + $0xb8] sm:$0xf]
          %v3384 = vld [vmem:[%s391 + $0xbc] sm:$0xf]
          %v3385 = vld [vmem:[%s391 + $0xc0] sm:$0xf]
          %v3386 = vld [vmem:[%s391 + $0xc4] sm:$0xf]
          %v3387 = vld [vmem:[%s391 + $0xc8] sm:$0xf]
          %v3388 = vld [vmem:[%s391 + $0xcc] sm:$0xf]
          %v3389 = vld [vmem:[%s391 + $0xd0] sm:$0xf]
          %v3390 = vld [vmem:[%s391 + $0xd4] sm:$0xf]
          %v3391 = vld [vmem:[%s391 + $0xd8] sm:$0xf]
          %v3392 = vld [vmem:[%s391 + $0xdc] sm:$0xf]
          %v3393 = vld [vmem:[%s391 + $0xe0] sm:$0xf]
          %v3394 = vld [vmem:[%s391 + $0xe4] sm:$0xf]
          %v3395 = vld [vmem:[%s391 + $0xe8] sm:$0xf]
          %v3396 = vld [vmem:[%s391 + $0xec] sm:$0xf]
          %v3397 = vld [vmem:[%s391 + $0xf0] sm:$0xf]
          %v3398 = vld [vmem:[%s391 + $0xf4] sm:$0xf]
          %v3399 = vld [vmem:[%s391 + $0xf8] sm:$0xf]
          %v3400 = vld [vmem:[%s391 + $0xfc] sm:$0xf]
          %v3401 = vld [vmem:[#allocation11] sm:$0xf]
          %v3402 = vld [vmem:[#allocation11 + $0x4] sm:$0xf]
          %v3403 = vld [vmem:[#allocation11 + $0x8] sm:$0xf]
          %v3404 = vld [vmem:[#allocation11 + $0xc] sm:$0xf]
          %v3405 = vld [vmem:[#allocation11 + $0x10] sm:$0xf]
          %v3406 = vld [vmem:[#allocation11 + $0x14] sm:$0xf]
          %v3407 = vld [vmem:[#allocation11 + $0x18] sm:$0xf]
          %v3408 = vld [vmem:[#allocation11 + $0x1c] sm:$0xf]
          %v3409 = vld [vmem:[#allocation11 + $0x20] sm:$0xf]
          %v3410 = vld [vmem:[#allocation11 + $0x24] sm:$0xf]
          %v3411 = vld [vmem:[#allocation11 + $0x28] sm:$0xf]
          %v3412 = vld [vmem:[#allocation11 + $0x2c] sm:$0xf]
          %v3413 = vld [vmem:[#allocation11 + $0x30] sm:$0xf]
          %v3414 = vld [vmem:[#allocation11 + $0x34] sm:$0xf]
          %v3415 = vld [vmem:[#allocation11 + $0x38] sm:$0xf]
          %v3416 = vld [vmem:[#allocation11 + $0x3c] sm:$0xf]
          %v3481 = vunpack.c.l.b16 %v3337
          %v3482 = vunpack.c.l.b16 %v3338
          %v3483 = vunpack.c.l.b16 %v3339
          %v3484 = vunpack.c.l.b16 %v3340
          %v3485 = vunpack.c.l.b16 %v3341
          %v3486 = vunpack.c.l.b16 %v3342
          %v3487 = vunpack.c.l.b16 %v3343
          %v3488 = vunpack.c.l.b16 %v3344
          %v3489 = vunpack.c.l.b16 %v3345
          %v3490 = vunpack.c.l.b16 %v3346
          %v3491 = vunpack.c.l.b16 %v3347
          %v3492 = vunpack.c.l.b16 %v3348
          %v3493 = vunpack.c.l.b16 %v3349
          %v3494 = vunpack.c.l.b16 %v3350
          %v3495 = vunpack.c.l.b16 %v3351
          %v3496 = vunpack.c.l.b16 %v3352
          %v3497 = vunpack.c.l.b16 %v3353
          %v3498 = vunpack.c.l.b16 %v3354
          %v3499 = vunpack.c.l.b16 %v3355
          %v3500 = vunpack.c.l.b16 %v3356
          %v3501 = vunpack.c.l.b16 %v3357
          %v3502 = vunpack.c.l.b16 %v3358
          %v3503 = vunpack.c.l.b16 %v3359
          %v3504 = vunpack.c.l.b16 %v3360
          %v3505 = vunpack.c.l.b16 %v3361
          %v3506 = vunpack.c.l.b16 %v3362
          %v3507 = vunpack.c.l.b16 %v3363
          %v3508 = vunpack.c.l.b16 %v3364
          %v3509 = vunpack.c.l.b16 %v3365
          %v3510 = vunpack.c.l.b16 %v3366
          %v3511 = vunpack.c.l.b16 %v3367
          %v3512 = vunpack.c.l.b16 %v3368
          %v3513 = vunpack.c.l.b16 %v3369
          %v3514 = vunpack.c.l.b16 %v3370
          %v3515 = vunpack.c.l.b16 %v3371
          %v3516 = vunpack.c.l.b16 %v3372
          %v3517 = vunpack.c.l.b16 %v3373
          %v3518 = vunpack.c.l.b16 %v3374
          %v3519 = vunpack.c.l.b16 %v3375
          %v3520 = vunpack.c.l.b16 %v3376
          %v3521 = vunpack.c.l.b16 %v3377
          %v3522 = vunpack.c.l.b16 %v3378
          %v3523 = vunpack.c.l.b16 %v3379
          %v3524 = vunpack.c.l.b16 %v3380
          %v3525 = vunpack.c.l.b16 %v3381
          %v3526 = vunpack.c.l.b16 %v3382
          %v3527 = vunpack.c.l.b16 %v3383
          %v3528 = vunpack.c.l.b16 %v3384
          %v3529 = vunpack.c.l.b16 %v3385
          %v3530 = vunpack.c.l.b16 %v3386
          %v3531 = vunpack.c.l.b16 %v3387
          %v3532 = vunpack.c.l.b16 %v3388
          %v3533 = vunpack.c.l.b16 %v3389
          %v3534 = vunpack.c.l.b16 %v3390
          %v3535 = vunpack.c.l.b16 %v3391
          %v3536 = vunpack.c.l.b16 %v3392
          %v3537 = vunpack.c.l.b16 %v3393
          %v3538 = vunpack.c.l.b16 %v3394
          %v3539 = vunpack.c.l.b16 %v3395
          %v3540 = vunpack.c.l.b16 %v3396
          %v3541 = vunpack.c.l.b16 %v3397
          %v3542 = vunpack.c.l.b16 %v3398
          %v3543 = vunpack.c.l.b16 %v3399
          %v3544 = vunpack.c.l.b16 %v3400
          %v3545 = vpack.c.b16 %v3482, %v3481
          %v3546 = vpack.c.b16 %v3484, %v3483
          %v3547 = vpack.c.b16 %v3486, %v3485
          %v3548 = vpack.c.b16 %v3488, %v3487
          %v3549 = vpack.c.b16 %v3490, %v3489
          %v3550 = vpack.c.b16 %v3492, %v3491
          %v3551 = vpack.c.b16 %v3494, %v3493
          %v3552 = vpack.c.b16 %v3496, %v3495
          %v3553 = vpack.c.b16 %v3498, %v3497
          %v3554 = vpack.c.b16 %v3500, %v3499
          %v3555 = vpack.c.b16 %v3502, %v3501
          %v3556 = vpack.c.b16 %v3504, %v3503
          %v3557 = vpack.c.b16 %v3506, %v3505
          %v3558 = vpack.c.b16 %v3508, %v3507
          %v3559 = vpack.c.b16 %v3510, %v3509
          %v3560 = vpack.c.b16 %v3512, %v3511
          %v3561 = vpack.c.b16 %v3514, %v3513
          %v3562 = vpack.c.b16 %v3516, %v3515
          %v3563 = vpack.c.b16 %v3518, %v3517
          %v3564 = vpack.c.b16 %v3520, %v3519
          %v3565 = vpack.c.b16 %v3522, %v3521
          %v3566 = vpack.c.b16 %v3524, %v3523
          %v3567 = vpack.c.b16 %v3526, %v3525
          %v3568 = vpack.c.b16 %v3528, %v3527
          %v3569 = vpack.c.b16 %v3530, %v3529
          %v3570 = vpack.c.b16 %v3532, %v3531
          %v3571 = vpack.c.b16 %v3534, %v3533
          %v3572 = vpack.c.b16 %v3536, %v3535
          %v3573 = vpack.c.b16 %v3538, %v3537
          %v3574 = vpack.c.b16 %v3540, %v3539
          %v3575 = vpack.c.b16 %v3542, %v3541
          %v3576 = vpack.c.b16 %v3544, %v3543
          %v3625 = vunpack.c.l.b16 %v3401
          %v3626 = vunpack.c.l.b16 %v3402
          %v3627 = vunpack.c.l.b16 %v3403
          %v3628 = vunpack.c.l.b16 %v3404
          %v3629 = vunpack.c.l.b16 %v3405
          %v3630 = vunpack.c.l.b16 %v3406
          %v3631 = vunpack.c.l.b16 %v3407
          %v3632 = vunpack.c.l.b16 %v3408
          %v3633 = vunpack.c.l.b16 %v3409
          %v3634 = vunpack.c.l.b16 %v3410
          %v3635 = vunpack.c.l.b16 %v3411
          %v3636 = vunpack.c.l.b16 %v3412
          %v3637 = vunpack.c.l.b16 %v3413
          %v3638 = vunpack.c.l.b16 %v3414
          %v3639 = vunpack.c.l.b16 %v3415
          %v3640 = vunpack.c.l.b16 %v3416
          %v3641 = vpack.c.b16 %v3626, %v3625
          %v3642 = vpack.c.b16 %v3628, %v3627
          %v3643 = vpack.c.b16 %v3630, %v3629
          %v3644 = vpack.c.b16 %v3632, %v3631
          %v3645 = vpack.c.b16 %v3634, %v3633
          %v3646 = vpack.c.b16 %v3636, %v3635
          %v3647 = vpack.c.b16 %v3638, %v3637
          %v3648 = vpack.c.b16 %v3640, %v3639
          %3657 = vmatprep.subr.bf16.mxu0 0
          %3658 = vmatpush1.bf16.msra.mxu0 %v3641
          %3659 = vmatprep.subr.bf16.mxu0 0
          %3660 = vmatpush1.bf16.msra.mxu0 %v3642
          %3661 = vmatprep.subr.bf16.mxu0 0
          %3662 = vmatpush1.bf16.msra.mxu0 %v3643
          %3663 = vmatprep.subr.bf16.mxu0 0
          %3664 = vmatpush1.bf16.msra.mxu0 %v3644
          %3665 = vmatprep.subr.bf16.mxu0 0
          %3666 = vmatpush1.bf16.msra.mxu0 %v3645
          %3667 = vmatprep.subr.bf16.mxu0 0
          %3668 = vmatpush1.bf16.msra.mxu0 %v3646
          %3669 = vmatprep.subr.bf16.mxu0 0
          %3670 = vmatpush1.bf16.msra.mxu0 %v3647
          %3671 = vmatprep.subr.bf16.mxu0 0
          %3672 = vmatpush1.bf16.msra.mxu0 %v3648
          %3673 = vmatprep.subr.bf16.mxu0 0
          %3674 = vmatpush1.bf16.msra.mxu0 0
          %3675 = vmatprep.subr.bf16.mxu0 0
          %3676 = vmatpush1.bf16.msra.mxu0 0
          %3677 = vmatprep.subr.bf16.mxu0 0
          %3678 = vmatpush1.bf16.msra.mxu0 0
          %3679 = vmatprep.subr.bf16.mxu0 0
          %3680 = vmatpush1.bf16.msra.mxu0 0
          %3681 = vmatprep.subr.bf16.mxu0 0
          %3682 = vmatpush1.bf16.msra.mxu0 0
          %3683 = vmatprep.subr.bf16.mxu0 0
          %3684 = vmatpush1.bf16.msra.mxu0 0
          %3685 = vmatprep.subr.bf16.mxu0 0
          %3686 = vmatpush1.bf16.msra.mxu0 0
          %3687 = vmatprep.subr.bf16.mxu0 0
          %3688 = vmatpush1.bf16.msra.mxu0 0
          %3689 = vmatprep.mubr.bf16.mxu0 0
          %3690 = vmatmul.mubr.bf16.gmra.mrb[0].mxu0 %v3545
          %v3691 = vpop.f32.mrb[0].mxu0
          %v3692 = vadd.f32 0.0, %v3691
          %v3693 = vpop.f32.mrb[0].mxu0
          %v3694 = vpop.f32.mrb[0].mxu0
          %v3695 = vadd.f32 0.0, %v3694
          %v3696 = vpop.f32.mrb[0].mxu0
          %3697 = vmatprep.mubr.bf16.mxu0 0
          %3698 = vmatmul.mubr.bf16.gmra.mrb[0].mxu0 %v3546
          %v3699 = vpop.f32.mrb[0].mxu0
          %v3700 = vadd.f32 0.0, %v3699
          %v3701 = vpop.f32.mrb[0].mxu0
          %v3702 = vpop.f32.mrb[0].mxu0
          %v3703 = vadd.f32 0.0, %v3702
          %v3704 = vpop.f32.mrb[0].mxu0
          %3705 = vmatprep.mubr.bf16.mxu0 0
          %3706 = vmatmul.mubr.bf16.gmra.mrb[0].mxu0 %v3547
          %v3707 = vpop.f32.mrb[0].mxu0
          %v3708 = vadd.f32 0.0, %v3707
          %v3709 = vpop.f32.mrb[0].mxu0
          %v3710 = vpop.f32.mrb[0].mxu0
          %v3711 = vadd.f32 0.0, %v3710
          %v3712 = vpop.f32.mrb[0].mxu0
          %3713 = vmatprep.mubr.bf16.mxu0 0
          %3714 = vmatmul.mubr.bf16.gmra.mrb[0].mxu0 %v3548
          %v3715 = vpop.f32.mrb[0].mxu0
          %v3716 = vadd.f32 0.0, %v3715
          %v3717 = vpop.f32.mrb[0].mxu0
          %v3718 = vpop.f32.mrb[0].mxu0
          %v3719 = vadd.f32 0.0, %v3718
          %v3720 = vpop.f32.mrb[0].mxu0
          %3721 = vmatprep.mubr.bf16.mxu0 0
          %3722 = vmatmul.mubr.bf16.gmra.mrb[0].mxu0 %v3549
          %v3723 = vpop.f32.mrb[0].mxu0
          %v3724 = vadd.f32 0.0, %v3723
          %v3725 = vpop.f32.mrb[0].mxu0
          %v3726 = vpop.f32.mrb[0].mxu0
          %v3727 = vadd.f32 0.0, %v3726
          %v3728 = vpop.f32.mrb[0].mxu0
          %3729 = vmatprep.mubr.bf16.mxu0 0
          %3730 = vmatmul.mubr.bf16.gmra.mrb[0].mxu0 %v3550
          %v3731 = vpop.f32.mrb[0].mxu0
          %v3732 = vadd.f32 0.0, %v3731
          %v3733 = vpop.f32.mrb[0].mxu0
          %v3734 = vpop.f32.mrb[0].mxu0
          %v3735 = vadd.f32 0.0, %v3734
          %v3736 = vpop.f32.mrb[0].mxu0
          %3737 = vmatprep.mubr.bf16.mxu0 0
          %3738 = vmatmul.mubr.bf16.gmra.mrb[0].mxu0 %v3551
          %v3739 = vpop.f32.mrb[0].mxu0
          %v3740 = vadd.f32 0.0, %v3739
          %v3741 = vpop.f32.mrb[0].mxu0
          %v3742 = vpop.f32.mrb[0].mxu0
          %v3743 = vadd.f32 0.0, %v3742
          %v3744 = vpop.f32.mrb[0].mxu0
          %3745 = vmatprep.mubr.bf16.mxu0 0
          %3746 = vmatmul.mubr.bf16.gmra.mrb[0].mxu0 %v3552
          %v3747 = vpop.f32.mrb[0].mxu0
          %v3748 = vadd.f32 0.0, %v3747
          %v3749 = vpop.f32.mrb[0].mxu0
          %v3750 = vpop.f32.mrb[0].mxu0
          %v3751 = vadd.f32 0.0, %v3750
          %v3752 = vpop.f32.mrb[0].mxu0
          %3753 = vmatprep.mubr.bf16.mxu0 0
          %3754 = vmatmul.mubr.bf16.gmra.mrb[0].mxu0 %v3553
          %v3755 = vpop.f32.mrb[0].mxu0
          %v3756 = vadd.f32 0.0, %v3755
          %v3757 = vpop.f32.mrb[0].mxu0
          %v3758 = vpop.f32.mrb[0].mxu0
          %v3759 = vadd.f32 0.0, %v3758
          %v3760 = vpop.f32.mrb[0].mxu0
          %3761 = vmatprep.mubr.bf16.mxu0 0
          %3762 = vmatmul.mubr.bf16.gmra.mrb[0].mxu0 %v3554
          %v3763 = vpop.f32.mrb[0].mxu0
          %v3764 = vadd.f32 0.0, %v3763
          %v3765 = vpop.f32.mrb[0].mxu0
          %v3766 = vpop.f32.mrb[0].mxu0
          %v3767 = vadd.f32 0.0, %v3766
          %v3768 = vpop.f32.mrb[0].mxu0
          %3769 = vmatprep.mubr.bf16.mxu0 0
          %3770 = vmatmul.mubr.bf16.gmra.mrb[0].mxu0 %v3555
          %v3771 = vpop.f32.mrb[0].mxu0
          %v3772 = vadd.f32 0.0, %v3771
          %v3773 = vpop.f32.mrb[0].mxu0
          %v3774 = vpop.f32.mrb[0].mxu0
          %v3775 = vadd.f32 0.0, %v3774
          %v3776 = vpop.f32.mrb[0].mxu0
          %3777 = vmatprep.mubr.bf16.mxu0 0
          %3778 = vmatmul.mubr.bf16.gmra.mrb[0].mxu0 %v3556
          %v3779 = vpop.f32.mrb[0].mxu0
          %v3780 = vadd.f32 0.0, %v3779
          %v3781 = vpop.f32.mrb[0].mxu0
          %v3782 = vpop.f32.mrb[0].mxu0
          %v3783 = vadd.f32 0.0, %v3782
          %v3784 = vpop.f32.mrb[0].mxu0
          %3785 = vmatprep.mubr.bf16.mxu0 0
          %3786 = vmatmul.mubr.bf16.gmra.mrb[0].mxu0 %v3557
          %v3787 = vpop.f32.mrb[0].mxu0
          %v3788 = vadd.f32 0.0, %v3787
          %v3789 = vpop.f32.mrb[0].mxu0
          %v3790 = vpop.f32.mrb[0].mxu0
          %v3791 = vadd.f32 0.0, %v3790
          %v3792 = vpop.f32.mrb[0].mxu0
          %3793 = vmatprep.mubr.bf16.mxu0 0
          %3794 = vmatmul.mubr.bf16.gmra.mrb[0].mxu0 %v3558
          %v3795 = vpop.f32.mrb[0].mxu0
          %v3796 = vadd.f32 0.0, %v3795
          %v3797 = vpop.f32.mrb[0].mxu0
          %v3798 = vpop.f32.mrb[0].mxu0
          %v3799 = vadd.f32 0.0, %v3798
          %v3800 = vpop.f32.mrb[0].mxu0
          %3801 = vmatprep.mubr.bf16.mxu0 0
          %3802 = vmatmul.mubr.bf16.gmra.mrb[0].mxu0 %v3559
          %v3803 = vpop.f32.mrb[0].mxu0
          %v3804 = vadd.f32 0.0, %v3803
          %v3805 = vpop.f32.mrb[0].mxu0
          %v3806 = vpop.f32.mrb[0].mxu0
          %v3807 = vadd.f32 0.0, %v3806
          %v3808 = vpop.f32.mrb[0].mxu0
          %3809 = vmatprep.mubr.bf16.mxu0 0
          %3810 = vmatmul.mubr.bf16.gmra.mrb[0].mxu0 %v3560
          %v3811 = vpop.f32.mrb[0].mxu0
          %v3812 = vadd.f32 0.0, %v3811
          %v3813 = vpop.f32.mrb[0].mxu0
          %v3814 = vpop.f32.mrb[0].mxu0
          %v3815 = vadd.f32 0.0, %v3814
          %v3816 = vpop.f32.mrb[0].mxu0
          %3817 = vmatprep.mubr.bf16.mxu0 0
          %3818 = vmatmul.mubr.bf16.gmra.mrb[0].mxu0 %v3561
          %v3819 = vpop.f32.mrb[0].mxu0
          %v3820 = vadd.f32 0.0, %v3819
          %v3821 = vpop.f32.mrb[0].mxu0
          %v3822 = vpop.f32.mrb[0].mxu0
          %v3823 = vadd.f32 0.0, %v3822
          %v3824 = vpop.f32.mrb[0].mxu0
          %3825 = vmatprep.mubr.bf16.mxu0 0
          %3826 = vmatmul.mubr.bf16.gmra.mrb[0].mxu0 %v3562
          %v3827 = vpop.f32.mrb[0].mxu0
          %v3828 = vadd.f32 0.0, %v3827
          %v3829 = vpop.f32.mrb[0].mxu0
          %v3830 = vpop.f32.mrb[0].mxu0
          %v3831 = vadd.f32 0.0, %v3830
          %v3832 = vpop.f32.mrb[0].mxu0
          %3833 = vmatprep.mubr.bf16.mxu0 0
          %3834 = vmatmul.mubr.bf16.gmra.mrb[0].mxu0 %v3563
          %v3835 = vpop.f32.mrb[0].mxu0
          %v3836 = vadd.f32 0.0, %v3835
          %v3837 = vpop.f32.mrb[0].mxu0
          %v3838 = vpop.f32.mrb[0].mxu0
          %v3839 = vadd.f32 0.0, %v3838
          %v3840 = vpop.f32.mrb[0].mxu0
          %3841 = vmatprep.mubr.bf16.mxu0 0
          %3842 = vmatmul.mubr.bf16.gmra.mrb[0].mxu0 %v3564
          %v3843 = vpop.f32.mrb[0].mxu0
          %v3844 = vadd.f32 0.0, %v3843
          %v3845 = vpop.f32.mrb[0].mxu0
          %v3846 = vpop.f32.mrb[0].mxu0
          %v3847 = vadd.f32 0.0, %v3846
          %v3848 = vpop.f32.mrb[0].mxu0
          %3849 = vmatprep.mubr.bf16.mxu0 0
          %3850 = vmatmul.mubr.bf16.gmra.mrb[0].mxu0 %v3565
          %v3851 = vpop.f32.mrb[0].mxu0
          %v3852 = vadd.f32 0.0, %v3851
          %v3853 = vpop.f32.mrb[0].mxu0
          %v3854 = vpop.f32.mrb[0].mxu0
          %v3855 = vadd.f32 0.0, %v3854
          %v3856 = vpop.f32.mrb[0].mxu0
          %3857 = vmatprep.mubr.bf16.mxu0 0
          %3858 = vmatmul.mubr.bf16.gmra.mrb[0].mxu0 %v3566
          %v3859 = vpop.f32.mrb[0].mxu0
          %v3860 = vadd.f32 0.0, %v3859
          %v3861 = vpop.f32.mrb[0].mxu0
          %v3862 = vpop.f32.mrb[0].mxu0
          %v3863 = vadd.f32 0.0, %v3862
          %v3864 = vpop.f32.mrb[0].mxu0
          %3865 = vmatprep.mubr.bf16.mxu0 0
          %3866 = vmatmul.mubr.bf16.gmra.mrb[0].mxu0 %v3567
          %v3867 = vpop.f32.mrb[0].mxu0
          %v3868 = vadd.f32 0.0, %v3867
          %v3869 = vpop.f32.mrb[0].mxu0
          %v3870 = vpop.f32.mrb[0].mxu0
          %v3871 = vadd.f32 0.0, %v3870
          %v3872 = vpop.f32.mrb[0].mxu0
          %3873 = vmatprep.mubr.bf16.mxu0 0
          %3874 = vmatmul.mubr.bf16.gmra.mrb[0].mxu0 %v3568
          %v3875 = vpop.f32.mrb[0].mxu0
          %v3876 = vadd.f32 0.0, %v3875
          %v3877 = vpop.f32.mrb[0].mxu0
          %v3878 = vpop.f32.mrb[0].mxu0
          %v3879 = vadd.f32 0.0, %v3878
          %v3880 = vpop.f32.mrb[0].mxu0
          %3881 = vmatprep.mubr.bf16.mxu0 0
          %3882 = vmatmul.mubr.bf16.gmra.mrb[0].mxu0 %v3569
          %v3883 = vpop.f32.mrb[0].mxu0
          %v3884 = vadd.f32 0.0, %v3883
          %v3885 = vpop.f32.mrb[0].mxu0
          %v3886 = vpop.f32.mrb[0].mxu0
          %v3887 = vadd.f32 0.0, %v3886
          %v3888 = vpop.f32.mrb[0].mxu0
          %3889 = vmatprep.mubr.bf16.mxu0 0
          %3890 = vmatmul.mubr.bf16.gmra.mrb[0].mxu0 %v3570
          %v3891 = vpop.f32.mrb[0].mxu0
          %v3892 = vadd.f32 0.0, %v3891
          %v3893 = vpop.f32.mrb[0].mxu0
          %v3894 = vpop.f32.mrb[0].mxu0
          %v3895 = vadd.f32 0.0, %v3894
          %v3896 = vpop.f32.mrb[0].mxu0
          %3897 = vmatprep.mubr.bf16.mxu0 0
          %3898 = vmatmul.mubr.bf16.gmra.mrb[0].mxu0 %v3571
          %v3899 = vpop.f32.mrb[0].mxu0
          %v3900 = vadd.f32 0.0, %v3899
          %v3901 = vpop.f32.mrb[0].mxu0
          %v3902 = vpop.f32.mrb[0].mxu0
          %v3903 = vadd.f32 0.0, %v3902
          %v3904 = vpop.f32.mrb[0].mxu0
          %3905 = vmatprep.mubr.bf16.mxu0 0
          %3906 = vmatmul.mubr.bf16.gmra.mrb[0].mxu0 %v3572
          %v3907 = vpop.f32.mrb[0].mxu0
          %v3908 = vadd.f32 0.0, %v3907
          %v3909 = vpop.f32.mrb[0].mxu0
          %v3910 = vpop.f32.mrb[0].mxu0
          %v3911 = vadd.f32 0.0, %v3910
          %v3912 = vpop.f32.mrb[0].mxu0
          %3913 = vmatprep.mubr.bf16.mxu0 0
          %3914 = vmatmul.mubr.bf16.gmra.mrb[0].mxu0 %v3573
          %v3915 = vpop.f32.mrb[0].mxu0
          %v3916 = vadd.f32 0.0, %v3915
          %v3917 = vpop.f32.mrb[0].mxu0
          %v3918 = vpop.f32.mrb[0].mxu0
          %v3919 = vadd.f32 0.0, %v3918
          %v3920 = vpop.f32.mrb[0].mxu0
          %3921 = vmatprep.mubr.bf16.mxu0 0
          %3922 = vmatmul.mubr.bf16.gmra.mrb[0].mxu0 %v3574
          %v3923 = vpop.f32.mrb[0].mxu0
          %v3924 = vadd.f32 0.0, %v3923
          %v3925 = vpop.f32.mrb[0].mxu0
          %v3926 = vpop.f32.mrb[0].mxu0
          %v3927 = vadd.f32 0.0, %v3926
          %v3928 = vpop.f32.mrb[0].mxu0
          %3929 = vmatprep.mubr.bf16.mxu0 0
          %3930 = vmatmul.mubr.bf16.gmra.mrb[0].mxu0 %v3575
          %v3931 = vpop.f32.mrb[0].mxu0
          %v3932 = vadd.f32 0.0, %v3931
          %v3933 = vpop.f32.mrb[0].mxu0
          %v3934 = vpop.f32.mrb[0].mxu0
          %v3935 = vadd.f32 0.0, %v3934
          %v3936 = vpop.f32.mrb[0].mxu0
          %3937 = vmatprep.mubr.bf16.mxu0 0
          %3938 = vmatmul.mubr.bf16.gmra.mrb[0].mxu0 %v3576
          %v3939 = vpop.f32.mrb[0].mxu0
          %v3940 = vadd.f32 0.0, %v3939
          %v3941 = vpop.f32.mrb[0].mxu0
          %v3942 = vpop.f32.mrb[0].mxu0
          %v3943 = vadd.f32 0.0, %v3942
          %v3944 = vpop.f32.mrb[0].mxu0
          %3945 = vdwg.mxu0
          %v3962 = vunpack.c.l.b16 %v3321
          %v3963 = vunpack.c.l.b16 %v3322
          %v3964 = vunpack.c.l.b16 %v3323
          %v3965 = vunpack.c.l.b16 %v3324
          %v3966 = vunpack.c.l.b16 %v3325
          %v3967 = vunpack.c.l.b16 %v3326
          %v3968 = vunpack.c.l.b16 %v3327
          %v3969 = vunpack.c.l.b16 %v3328
          %v3970 = vunpack.c.l.b16 %v3329
          %v3971 = vunpack.c.l.b16 %v3330
          %v3972 = vunpack.c.l.b16 %v3331
          %v3973 = vunpack.c.l.b16 %v3332
          %v3974 = vunpack.c.l.b16 %v3333
          %v3975 = vunpack.c.l.b16 %v3334
          %v3976 = vunpack.c.l.b16 %v3335
          %v3977 = vunpack.c.l.b16 %v3336
          %v3978 = vpack.c.b16 %v3963, %v3962
          %v3979 = vpack.c.b16 %v3965, %v3964
          %v3980 = vpack.c.b16 %v3967, %v3966
          %v3981 = vpack.c.b16 %v3969, %v3968
          %v3982 = vpack.c.b16 %v3971, %v3970
          %v3983 = vpack.c.b16 %v3973, %v3972
          %v3984 = vpack.c.b16 %v3975, %v3974
          %v3985 = vpack.c.b16 %v3977, %v3976
          %3994 = vmatprep.subr.bf16.mxu0 0
          %3995 = vmatpush1.bf16.msra.mxu0 %v3978
          %3996 = vmatprep.subr.bf16.mxu0 0
          %3997 = vmatpush1.bf16.msra.mxu0 %v3979
          %3998 = vmatprep.subr.bf16.mxu0 0
          %3999 = vmatpush1.bf16.msra.mxu0 %v3980
          %4000 = vmatprep.subr.bf16.mxu0 0
          %4001 = vmatpush1.bf16.msra.mxu0 %v3981
          %4002 = vmatprep.subr.bf16.mxu0 0
          %4003 = vmatpush1.bf16.msra.mxu0 %v3982
          %4004 = vmatprep.subr.bf16.mxu0 0
          %4005 = vmatpush1.bf16.msra.mxu0 %v3983
          %4006 = vmatprep.subr.bf16.mxu0 0
          %4007 = vmatpush1.bf16.msra.mxu0 %v3984
          %4008 = vmatprep.subr.bf16.mxu0 0
          %4009 = vmatpush1.bf16.msra.mxu0 %v3985
          %4010 = vmatprep.subr.bf16.mxu0 0
          %4011 = vmatpush1.bf16.msra.mxu0 0
          %4012 = vmatprep.subr.bf16.mxu0 0
          %4013 = vmatpush1.bf16.msra.mxu0 0
          %4014 = vmatprep.subr.bf16.mxu0 0
          %4015 = vmatpush1.bf16.msra.mxu0 0
          %4016 = vmatprep.subr.bf16.mxu0 0
          %4017 = vmatpush1.bf16.msra.mxu0 0
          %4018 = vmatprep.subr.bf16.mxu0 0
          %4019 = vmatpush1.bf16.msra.mxu0 0
          %4020 = vmatprep.subr.bf16.mxu0 0
          %4021 = vmatpush1.bf16.msra.mxu0 0
          %4022 = vmatprep.subr.bf16.mxu0 0
          %4023 = vmatpush1.bf16.msra.mxu0 0
          %4024 = vmatprep.subr.bf16.mxu0 0
          %4025 = vmatpush1.bf16.msra.mxu0 0
          %4026 = vmatprep.mubr.bf16.mxu0 0
          %4027 = vmatmul.mubr.bf16.gmra.mrb[0].mxu0 %v3289
          %v4028 = vpop.f32.mrb[0].mxu0
          %v4029 = vadd.f32 %v3692, %v4028
          %v4030 = vpop.f32.mrb[0].mxu0
          %v4031 = vpop.f32.mrb[0].mxu0
          %v4032 = vadd.f32 %v3695, %v4031
          %v4033 = vpop.f32.mrb[0].mxu0
          %4034 = vmatprep.mubr.bf16.mxu0 0
          %4035 = vmatmul.mubr.bf16.gmra.mrb[0].mxu0 %v3290
          %v4036 = vpop.f32.mrb[0].mxu0
          %v4037 = vadd.f32 %v3700, %v4036
          %v4038 = vpop.f32.mrb[0].mxu0
          %v4039 = vpop.f32.mrb[0].mxu0
          %v4040 = vadd.f32 %v3703, %v4039
          %v4041 = vpop.f32.mrb[0].mxu0
          %4042 = vmatprep.mubr.bf16.mxu0 0
          %4043 = vmatmul.mubr.bf16.gmra.mrb[0].mxu0 %v3291
          %v4044 = vpop.f32.mrb[0].mxu0
          %v4045 = vadd.f32 %v3708, %v4044
          %v4046 = vpop.f32.mrb[0].mxu0
          %v4047 = vpop.f32.mrb[0].mxu0
          %v4048 = vadd.f32 %v3711, %v4047
          %v4049 = vpop.f32.mrb[0].mxu0
          %4050 = vmatprep.mubr.bf16.mxu0 0
          %4051 = vmatmul.mubr.bf16.gmra.mrb[0].mxu0 %v3292
          %v4052 = vpop.f32.mrb[0].mxu0
          %v4053 = vadd.f32 %v3716, %v4052
          %v4054 = vpop.f32.mrb[0].mxu0
          %v4055 = vpop.f32.mrb[0].mxu0
          %v4056 = vadd.f32 %v3719, %v4055
          %v4057 = vpop.f32.mrb[0].mxu0
          %4058 = vmatprep.mubr.bf16.mxu0 0
          %4059 = vmatmul.mubr.bf16.gmra.mrb[0].mxu0 %v3293
          %v4060 = vpop.f32.mrb[0].mxu0
          %v4061 = vadd.f32 %v3724, %v4060
          %v4062 = vpop.f32.mrb[0].mxu0
          %v4063 = vpop.f32.mrb[0].mxu0
          %v4064 = vadd.f32 %v3727, %v4063
          %v4065 = vpop.f32.mrb[0].mxu0
          %4066 = vmatprep.mubr.bf16.mxu0 0
          %4067 = vmatmul.mubr.bf16.gmra.mrb[0].mxu0 %v3294
          %v4068 = vpop.f32.mrb[0].mxu0
          %v4069 = vadd.f32 %v3732, %v4068
          %v4070 = vpop.f32.mrb[0].mxu0
          %v4071 = vpop.f32.mrb[0].mxu0
          %v4072 = vadd.f32 %v3735, %v4071
          %v4073 = vpop.f32.mrb[0].mxu0
          %4074 = vmatprep.mubr.bf16.mxu0 0
          %4075 = vmatmul.mubr.bf16.gmra.mrb[0].mxu0 %v3295
          %v4076 = vpop.f32.mrb[0].mxu0
          %v4077 = vadd.f32 %v3740, %v4076
          %v4078 = vpop.f32.mrb[0].mxu0
          %v4079 = vpop.f32.mrb[0].mxu0
          %v4080 = vadd.f32 %v3743, %v4079
          %v4081 = vpop.f32.mrb[0].mxu0
          %4082 = vmatprep.mubr.bf16.mxu0 0
          %4083 = vmatmul.mubr.bf16.gmra.mrb[0].mxu0 %v3296
          %v4084 = vpop.f32.mrb[0].mxu0
          %v4085 = vadd.f32 %v3748, %v4084
          %v4086 = vpop.f32.mrb[0].mxu0
          %v4087 = vpop.f32.mrb[0].mxu0
          %v4088 = vadd.f32 %v3751, %v4087
          %v4089 = vpop.f32.mrb[0].mxu0
          %4090 = vmatprep.mubr.bf16.mxu0 0
          %4091 = vmatmul.mubr.bf16.gmra.mrb[0].mxu0 %v3297
          %v4092 = vpop.f32.mrb[0].mxu0
          %v4093 = vadd.f32 %v3756, %v4092
          %v4094 = vpop.f32.mrb[0].mxu0
          %v4095 = vpop.f32.mrb[0].mxu0
          %v4096 = vadd.f32 %v3759, %v4095
          %v4097 = vpop.f32.mrb[0].mxu0
          %4098 = vmatprep.mubr.bf16.mxu0 0
          %4099 = vmatmul.mubr.bf16.gmra.mrb[0].mxu0 %v3298
          %v4100 = vpop.f32.mrb[0].mxu0
          %v4101 = vadd.f32 %v3764, %v4100
          %v4102 = vpop.f32.mrb[0].mxu0
          %v4103 = vpop.f32.mrb[0].mxu0
          %v4104 = vadd.f32 %v3767, %v4103
          %v4105 = vpop.f32.mrb[0].mxu0
          %4106 = vmatprep.mubr.bf16.mxu0 0
          %4107 = vmatmul.mubr.bf16.gmra.mrb[0].mxu0 %v3299
          %v4108 = vpop.f32.mrb[0].mxu0
          %v4109 = vadd.f32 %v3772, %v4108
          %v4110 = vpop.f32.mrb[0].mxu0
          %v4111 = vpop.f32.mrb[0].mxu0
          %v4112 = vadd.f32 %v3775, %v4111
          %v4113 = vpop.f32.mrb[0].mxu0
          %4114 = vmatprep.mubr.bf16.mxu0 0
          %4115 = vmatmul.mubr.bf16.gmra.mrb[0].mxu0 %v3300
          %v4116 = vpop.f32.mrb[0].mxu0
          %v4117 = vadd.f32 %v3780, %v4116
          %v4118 = vpop.f32.mrb[0].mxu0
          %v4119 = vpop.f32.mrb[0].mxu0
          %v4120 = vadd.f32 %v3783, %v4119
          %v4121 = vpop.f32.mrb[0].mxu0
          %4122 = vmatprep.mubr.bf16.mxu0 0
          %4123 = vmatmul.mubr.bf16.gmra.mrb[0].mxu0 %v3301
          %v4124 = vpop.f32.mrb[0].mxu0
          %v4125 = vadd.f32 %v3788, %v4124
          %v4126 = vpop.f32.mrb[0].mxu0
          %v4127 = vpop.f32.mrb[0].mxu0
          %v4128 = vadd.f32 %v3791, %v4127
          %v4129 = vpop.f32.mrb[0].mxu0
          %4130 = vmatprep.mubr.bf16.mxu0 0
          %4131 = vmatmul.mubr.bf16.gmra.mrb[0].mxu0 %v3302
          %v4132 = vpop.f32.mrb[0].mxu0
          %v4133 = vadd.f32 %v3796, %v4132
          %v4134 = vpop.f32.mrb[0].mxu0
          %v4135 = vpop.f32.mrb[0].mxu0
          %v4136 = vadd.f32 %v3799, %v4135
          %v4137 = vpop.f32.mrb[0].mxu0
          %4138 = vmatprep.mubr.bf16.mxu0 0
          %4139 = vmatmul.mubr.bf16.gmra.mrb[0].mxu0 %v3303
          %v4140 = vpop.f32.mrb[0].mxu0
          %v4141 = vadd.f32 %v3804, %v4140
          %v4142 = vpop.f32.mrb[0].mxu0
          %v4143 = vpop.f32.mrb[0].mxu0
          %v4144 = vadd.f32 %v3807, %v4143
          %v4145 = vpop.f32.mrb[0].mxu0
          %4146 = vmatprep.mubr.bf16.mxu0 0
          %4147 = vmatmul.mubr.bf16.gmra.mrb[0].mxu0 %v3304
          %v4148 = vpop.f32.mrb[0].mxu0
          %v4149 = vadd.f32 %v3812, %v4148
          %v4150 = vpop.f32.mrb[0].mxu0
          %v4151 = vpop.f32.mrb[0].mxu0
          %v4152 = vadd.f32 %v3815, %v4151
          %v4153 = vpop.f32.mrb[0].mxu0
          %4154 = vmatprep.mubr.bf16.mxu0 0
          %4155 = vmatmul.mubr.bf16.gmra.mrb[0].mxu0 %v3305
          %v4156 = vpop.f32.mrb[0].mxu0
          %v4157 = vadd.f32 %v3820, %v4156
          %v4158 = vpop.f32.mrb[0].mxu0
          %v4159 = vpop.f32.mrb[0].mxu0
          %v4160 = vadd.f32 %v3823, %v4159
          %v4161 = vpop.f32.mrb[0].mxu0
          %4162 = vmatprep.mubr.bf16.mxu0 0
          %4163 = vmatmul.mubr.bf16.gmra.mrb[0].mxu0 %v3306
          %v4164 = vpop.f32.mrb[0].mxu0
          %v4165 = vadd.f32 %v3828, %v4164
          %v4166 = vpop.f32.mrb[0].mxu0
          %v4167 = vpop.f32.mrb[0].mxu0
          %v4168 = vadd.f32 %v3831, %v4167
          %v4169 = vpop.f32.mrb[0].mxu0
          %4170 = vmatprep.mubr.bf16.mxu0 0
          %4171 = vmatmul.mubr.bf16.gmra.mrb[0].mxu0 %v3307
          %v4172 = vpop.f32.mrb[0].mxu0
          %v4173 = vadd.f32 %v3836, %v4172
          %v4174 = vpop.f32.mrb[0].mxu0
          %v4175 = vpop.f32.mrb[0].mxu0
          %v4176 = vadd.f32 %v3839, %v4175
          %v4177 = vpop.f32.mrb[0].mxu0
          %4178 = vmatprep.mubr.bf16.mxu0 0
          %4179 = vmatmul.mubr.bf16.gmra.mrb[0].mxu0 %v3308
          %v4180 = vpop.f32.mrb[0].mxu0
          %v4181 = vadd.f32 %v3844, %v4180
          %v4182 = vpop.f32.mrb[0].mxu0
          %v4183 = vpop.f32.mrb[0].mxu0
          %v4184 = vadd.f32 %v3847, %v4183
          %v4185 = vpop.f32.mrb[0].mxu0
          %4186 = vmatprep.mubr.bf16.mxu0 0
          %4187 = vmatmul.mubr.bf16.gmra.mrb[0].mxu0 %v3309
          %v4188 = vpop.f32.mrb[0].mxu0
          %v4189 = vadd.f32 %v3852, %v4188
          %v4190 = vpop.f32.mrb[0].mxu0
          %v4191 = vpop.f32.mrb[0].mxu0
          %v4192 = vadd.f32 %v3855, %v4191
          %v4193 = vpop.f32.mrb[0].mxu0
          %4194 = vmatprep.mubr.bf16.mxu0 0
          %4195 = vmatmul.mubr.bf16.gmra.mrb[0].mxu0 %v3310
          %v4196 = vpop.f32.mrb[0].mxu0
          %v4197 = vadd.f32 %v3860, %v4196
          %v4198 = vpop.f32.mrb[0].mxu0
          %v4199 = vpop.f32.mrb[0].mxu0
          %v4200 = vadd.f32 %v3863, %v4199
          %v4201 = vpop.f32.mrb[0].mxu0
          %4202 = vmatprep.mubr.bf16.mxu0 0
          %4203 = vmatmul.mubr.bf16.gmra.mrb[0].mxu0 %v3311
          %v4204 = vpop.f32.mrb[0].mxu0
          %v4205 = vadd.f32 %v3868, %v4204
          %v4206 = vpop.f32.mrb[0].mxu0
          %v4207 = vpop.f32.mrb[0].mxu0
          %v4208 = vadd.f32 %v3871, %v4207
          %v4209 = vpop.f32.mrb[0].mxu0
          %4210 = vmatprep.mubr.bf16.mxu0 0
          %4211 = vmatmul.mubr.bf16.gmra.mrb[0].mxu0 %v3312
          %v4212 = vpop.f32.mrb[0].mxu0
          %v4213 = vadd.f32 %v3876, %v4212
          %v4214 = vpop.f32.mrb[0].mxu0
          %v4215 = vpop.f32.mrb[0].mxu0
          %v4216 = vadd.f32 %v3879, %v4215
          %v4217 = vpop.f32.mrb[0].mxu0
          %4218 = vmatprep.mubr.bf16.mxu0 0
          %4219 = vmatmul.mubr.bf16.gmra.mrb[0].mxu0 %v3313
          %v4220 = vpop.f32.mrb[0].mxu0
          %v4221 = vadd.f32 %v3884, %v4220
          %v4222 = vpop.f32.mrb[0].mxu0
          %v4223 = vpop.f32.mrb[0].mxu0
          %v4224 = vadd.f32 %v3887, %v4223
          %v4225 = vpop.f32.mrb[0].mxu0
          %4226 = vmatprep.mubr.bf16.mxu0 0
          %4227 = vmatmul.mubr.bf16.gmra.mrb[0].mxu0 %v3314
          %v4228 = vpop.f32.mrb[0].mxu0
          %v4229 = vadd.f32 %v3892, %v4228
          %v4230 = vpop.f32.mrb[0].mxu0
          %v4231 = vpop.f32.mrb[0].mxu0
          %v4232 = vadd.f32 %v3895, %v4231
          %v4233 = vpop.f32.mrb[0].mxu0
          %4234 = vmatprep.mubr.bf16.mxu0 0
          %4235 = vmatmul.mubr.bf16.gmra.mrb[0].mxu0 %v3315
          %v4236 = vpop.f32.mrb[0].mxu0
          %v4237 = vadd.f32 %v3900, %v4236
          %v4238 = vpop.f32.mrb[0].mxu0
          %v4239 = vpop.f32.mrb[0].mxu0
          %v4240 = vadd.f32 %v3903, %v4239
          %v4241 = vpop.f32.mrb[0].mxu0
          %4242 = vmatprep.mubr.bf16.mxu0 0
          %4243 = vmatmul.mubr.bf16.gmra.mrb[0].mxu0 %v3316
          %v4244 = vpop.f32.mrb[0].mxu0
          %v4245 = vadd.f32 %v3908, %v4244
          %v4246 = vpop.f32.mrb[0].mxu0
          %v4247 = vpop.f32.mrb[0].mxu0
          %v4248 = vadd.f32 %v3911, %v4247
          %v4249 = vpop.f32.mrb[0].mxu0
          %4250 = vmatprep.mubr.bf16.mxu0 0
          %4251 = vmatmul.mubr.bf16.gmra.mrb[0].mxu0 %v3317
          %v4252 = vpop.f32.mrb[0].mxu0
          %v4253 = vadd.f32 %v3916, %v4252
          %v4254 = vpop.f32.mrb[0].mxu0
          %v4255 = vpop.f32.mrb[0].mxu0
          %v4256 = vadd.f32 %v3919, %v4255
          %v4257 = vpop.f32.mrb[0].mxu0
          %4258 = vmatprep.mubr.bf16.mxu0 0
          %4259 = vmatmul.mubr.bf16.gmra.mrb[0].mxu0 %v3318
          %v4260 = vpop.f32.mrb[0].mxu0
          %v4261 = vadd.f32 %v3924, %v4260
          %v4262 = vpop.f32.mrb[0].mxu0
          %v4263 = vpop.f32.mrb[0].mxu0
          %v4264 = vadd.f32 %v3927, %v4263
          %v4265 = vpop.f32.mrb[0].mxu0
          %4266 = vmatprep.mubr.bf16.mxu0 0
          %4267 = vmatmul.mubr.bf16.gmra.mrb[0].mxu0 %v3319
          %v4268 = vpop.f32.mrb[0].mxu0
          %v4269 = vadd.f32 %v3932, %v4268
          %v4270 = vpop.f32.mrb[0].mxu0
          %v4271 = vpop.f32.mrb[0].mxu0
          %v4272 = vadd.f32 %v3935, %v4271
          %v4273 = vpop.f32.mrb[0].mxu0
          %4274 = vmatprep.mubr.bf16.mxu0 0
          %4275 = vmatmul.mubr.bf16.gmra.mrb[0].mxu0 %v3320
          %v4276 = vpop.f32.mrb[0].mxu0
          %v4277 = vadd.f32 %v3940, %v4276
          %v4278 = vpop.f32.mrb[0].mxu0
          %v4279 = vpop.f32.mrb[0].mxu0
          %v4280 = vadd.f32 %v3943, %v4279
          %v4281 = vpop.f32.mrb[0].mxu0
          %4282 = vdwg.mxu0
          %v4283 = vld [vmem:[#allocation12] sm:$0x1]
          %v4285 = vlaneseq
          %v4286 = vshrl.u32 %v4285, 7
          %v4287 = vsub.s32 0, %v4286
          %v4288 = vrot.slane %v4283, %v4287
          %v4290 = vadd.f32 %v4029, %v4288
          %v4291 = vadd.f32 %v4032, %v4288
          %v4292 = vadd.f32 %v4037, %v4288
          %v4293 = vadd.f32 %v4040, %v4288
          %v4294 = vadd.f32 %v4045, %v4288
          %v4295 = vadd.f32 %v4048, %v4288
          %v4296 = vadd.f32 %v4053, %v4288
          %v4297 = vadd.f32 %v4056, %v4288
          %v4298 = vadd.f32 %v4061, %v4288
          %v4299 = vadd.f32 %v4064, %v4288
          %v4300 = vadd.f32 %v4069, %v4288
          %v4301 = vadd.f32 %v4072, %v4288
          %v4302 = vadd.f32 %v4077, %v4288
          %v4303 = vadd.f32 %v4080, %v4288
          %v4304 = vadd.f32 %v4085, %v4288
          %v4305 = vadd.f32 %v4088, %v4288
          %v4306 = vadd.f32 %v4093, %v4288
          %v4307 = vadd.f32 %v4096, %v4288
          %v4308 = vadd.f32 %v4101, %v4288
          %v4309 = vadd.f32 %v4104, %v4288
          %v4310 = vadd.f32 %v4109, %v4288
          %v4311 = vadd.f32 %v4112, %v4288
          %v4312 = vadd.f32 %v4117, %v4288
          %v4313 = vadd.f32 %v4120, %v4288
          %v4314 = vadd.f32 %v4125, %v4288
          %v4315 = vadd.f32 %v4128, %v4288
          %v4316 = vadd.f32 %v4133, %v4288
          %v4317 = vadd.f32 %v4136, %v4288
          %v4318 = vadd.f32 %v4141, %v4288
          %v4319 = vadd.f32 %v4144, %v4288
          %v4320 = vadd.f32 %v4149, %v4288
          %v4321 = vadd.f32 %v4152, %v4288
          %v4322 = vadd.f32 %v4157, %v4288
          %v4323 = vadd.f32 %v4160, %v4288
          %v4324 = vadd.f32 %v4165, %v4288
          %v4325 = vadd.f32 %v4168, %v4288
          %v4326 = vadd.f32 %v4173, %v4288
          %v4327 = vadd.f32 %v4176, %v4288
          %v4328 = vadd.f32 %v4181, %v4288
          %v4329 = vadd.f32 %v4184, %v4288
          %v4330 = vadd.f32 %v4189, %v4288
          %v4331 = vadd.f32 %v4192, %v4288
          %v4332 = vadd.f32 %v4197, %v4288
          %v4333 = vadd.f32 %v4200, %v4288
          %v4334 = vadd.f32 %v4205, %v4288
          %v4335 = vadd.f32 %v4208, %v4288
          %v4336 = vadd.f32 %v4213, %v4288
          %v4337 = vadd.f32 %v4216, %v4288
          %v4338 = vadd.f32 %v4221, %v4288
          %v4339 = vadd.f32 %v4224, %v4288
          %v4340 = vadd.f32 %v4229, %v4288
          %v4341 = vadd.f32 %v4232, %v4288
          %v4342 = vadd.f32 %v4237, %v4288
          %v4343 = vadd.f32 %v4240, %v4288
          %v4344 = vadd.f32 %v4245, %v4288
          %v4345 = vadd.f32 %v4248, %v4288
          %v4346 = vadd.f32 %v4253, %v4288
          %v4347 = vadd.f32 %v4256, %v4288
          %v4348 = vadd.f32 %v4261, %v4288
          %v4349 = vadd.f32 %v4264, %v4288
          %v4350 = vadd.f32 %v4269, %v4288
          %v4351 = vadd.f32 %v4272, %v4288
          %v4352 = vadd.f32 %v4277, %v4288
          %v4353 = vadd.f32 %v4280, %v4288
          %v4354 = vmax.f32 %v4290, 0.0
          %v4355 = vmax.f32 %v4291, 0.0
          %v4356 = vmax.f32 %v4292, 0.0
          %v4357 = vmax.f32 %v4293, 0.0
          %v4358 = vmax.f32 %v4294, 0.0
          %v4359 = vmax.f32 %v4295, 0.0
          %v4360 = vmax.f32 %v4296, 0.0
          %v4361 = vmax.f32 %v4297, 0.0
          %v4362 = vmax.f32 %v4298, 0.0
          %v4363 = vmax.f32 %v4299, 0.0
          %v4364 = vmax.f32 %v4300, 0.0
          %v4365 = vmax.f32 %v4301, 0.0
          %v4366 = vmax.f32 %v4302, 0.0
          %v4367 = vmax.f32 %v4303, 0.0
          %v4368 = vmax.f32 %v4304, 0.0
          %v4369 = vmax.f32 %v4305, 0.0
          %v4370 = vmax.f32 %v4306, 0.0
          %v4371 = vmax.f32 %v4307, 0.0
          %v4372 = vmax.f32 %v4308, 0.0
          %v4373 = vmax.f32 %v4309, 0.0
          %v4374 = vmax.f32 %v4310, 0.0
          %v4375 = vmax.f32 %v4311, 0.0
          %v4376 = vmax.f32 %v4312, 0.0
          %v4377 = vmax.f32 %v4313, 0.0
          %v4378 = vmax.f32 %v4314, 0.0
          %v4379 = vmax.f32 %v4315, 0.0
          %v4380 = vmax.f32 %v4316, 0.0
          %v4381 = vmax.f32 %v4317, 0.0
          %v4382 = vmax.f32 %v4318, 0.0
          %v4383 = vmax.f32 %v4319, 0.0
          %v4384 = vmax.f32 %v4320, 0.0
          %v4385 = vmax.f32 %v4321, 0.0
          %v4386 = vmax.f32 %v4322, 0.0
          %v4387 = vmax.f32 %v4323, 0.0
          %v4388 = vmax.f32 %v4324, 0.0
          %v4389 = vmax.f32 %v4325, 0.0
          %v4390 = vmax.f32 %v4326, 0.0
          %v4391 = vmax.f32 %v4327, 0.0
          %v4392 = vmax.f32 %v4328, 0.0
          %v4393 = vmax.f32 %v4329, 0.0
          %v4394 = vmax.f32 %v4330, 0.0
          %v4395 = vmax.f32 %v4331, 0.0
          %v4396 = vmax.f32 %v4332, 0.0
          %v4397 = vmax.f32 %v4333, 0.0
          %v4398 = vmax.f32 %v4334, 0.0
          %v4399 = vmax.f32 %v4335, 0.0
          %v4400 = vmax.f32 %v4336, 0.0
          %v4401 = vmax.f32 %v4337, 0.0
          %v4402 = vmax.f32 %v4338, 0.0
          %v4403 = vmax.f32 %v4339, 0.0
          %v4404 = vmax.f32 %v4340, 0.0
          %v4405 = vmax.f32 %v4341, 0.0
          %v4406 = vmax.f32 %v4342, 0.0
          %v4407 = vmax.f32 %v4343, 0.0
          %v4408 = vmax.f32 %v4344, 0.0
          %v4409 = vmax.f32 %v4345, 0.0
          %v4410 = vmax.f32 %v4346, 0.0
          %v4411 = vmax.f32 %v4347, 0.0
          %v4412 = vmax.f32 %v4348, 0.0
          %v4413 = vmax.f32 %v4349, 0.0
          %v4414 = vmax.f32 %v4350, 0.0
          %v4415 = vmax.f32 %v4351, 0.0
          %v4416 = vmax.f32 %v4352, 0.0
          %v4417 = vmax.f32 %v4353, 0.0
          %v4418 = vpack.c.bf16 %v4355, %v4354
          %v4419 = vpack.c.bf16 %v4357, %v4356
          %v4420 = vpack.c.bf16 %v4359, %v4358
          %v4421 = vpack.c.bf16 %v4361, %v4360
          %v4422 = vpack.c.bf16 %v4363, %v4362
          %v4423 = vpack.c.bf16 %v4365, %v4364
          %v4424 = vpack.c.bf16 %v4367, %v4366
          %v4425 = vpack.c.bf16 %v4369, %v4368
          %v4426 = vpack.c.bf16 %v4371, %v4370
          %v4427 = vpack.c.bf16 %v4373, %v4372
          %v4428 = vpack.c.bf16 %v4375, %v4374
          %v4429 = vpack.c.bf16 %v4377, %v4376
          %v4430 = vpack.c.bf16 %v4379, %v4378
          %v4431 = vpack.c.bf16 %v4381, %v4380
          %v4432 = vpack.c.bf16 %v4383, %v4382
          %v4433 = vpack.c.bf16 %v4385, %v4384
          %v4434 = vpack.c.bf16 %v4387, %v4386
          %v4435 = vpack.c.bf16 %v4389, %v4388
          %v4436 = vpack.c.bf16 %v4391, %v4390
          %v4437 = vpack.c.bf16 %v4393, %v4392
          %v4438 = vpack.c.bf16 %v4395, %v4394
          %v4439 = vpack.c.bf16 %v4397, %v4396
          %v4440 = vpack.c.bf16 %v4399, %v4398
          %v4441 = vpack.c.bf16 %v4401, %v4400
          %v4442 = vpack.c.bf16 %v4403, %v4402
          %v4443 = vpack.c.bf16 %v4405, %v4404
          %v4444 = vpack.c.bf16 %v4407, %v4406
          %v4445 = vpack.c.bf16 %v4409, %v4408
          %v4446 = vpack.c.bf16 %v4411, %v4410
          %v4447 = vpack.c.bf16 %v4413, %v4412
          %v4448 = vpack.c.bf16 %v4415, %v4414
          %v4449 = vpack.c.bf16 %v4417, %v4416
          %v4482 = vunpack.c.l.b16 %v4418
          %v4483 = vunpack.c.h.b16 %v4418
          %v4484 = vunpack.c.l.b16 %v4419
          %v4485 = vunpack.c.h.b16 %v4419
          %v4486 = vunpack.c.l.b16 %v4420
          %v4487 = vunpack.c.h.b16 %v4420
          %v4488 = vunpack.c.l.b16 %v4421
          %v4489 = vunpack.c.h.b16 %v4421
          %v4490 = vunpack.c.l.b16 %v4422
          %v4491 = vunpack.c.h.b16 %v4422
          %v4492 = vunpack.c.l.b16 %v4423
          %v4493 = vunpack.c.h.b16 %v4423
          %v4494 = vunpack.c.l.b16 %v4424
          %v4495 = vunpack.c.h.b16 %v4424
          %v4496 = vunpack.c.l.b16 %v4425
          %v4497 = vunpack.c.h.b16 %v4425
          %v4498 = vunpack.c.l.b16 %v4426
          %v4499 = vunpack.c.h.b16 %v4426
          %v4500 = vunpack.c.l.b16 %v4427
          %v4501 = vunpack.c.h.b16 %v4427
          %v4502 = vunpack.c.l.b16 %v4428
          %v4503 = vunpack.c.h.b16 %v4428
          %v4504 = vunpack.c.l.b16 %v4429
          %v4505 = vunpack.c.h.b16 %v4429
          %v4506 = vunpack.c.l.b16 %v4430
          %v4507 = vunpack.c.h.b16 %v4430
          %v4508 = vunpack.c.l.b16 %v4431
          %v4509 = vunpack.c.h.b16 %v4431
          %v4510 = vunpack.c.l.b16 %v4432
          %v4511 = vunpack.c.h.b16 %v4432
          %v4512 = vunpack.c.l.b16 %v4433
          %v4513 = vunpack.c.h.b16 %v4433
          %v4514 = vunpack.c.l.b16 %v4434
          %v4515 = vunpack.c.h.b16 %v4434
          %v4516 = vunpack.c.l.b16 %v4435
          %v4517 = vunpack.c.h.b16 %v4435
          %v4518 = vunpack.c.l.b16 %v4436
          %v4519 = vunpack.c.h.b16 %v4436
          %v4520 = vunpack.c.l.b16 %v4437
          %v4521 = vunpack.c.h.b16 %v4437
          %v4522 = vunpack.c.l.b16 %v4438
          %v4523 = vunpack.c.h.b16 %v4438
          %v4524 = vunpack.c.l.b16 %v4439
          %v4525 = vunpack.c.h.b16 %v4439
          %v4526 = vunpack.c.l.b16 %v4440
          %v4527 = vunpack.c.h.b16 %v4440
          %v4528 = vunpack.c.l.b16 %v4441
          %v4529 = vunpack.c.h.b16 %v4441
          %v4530 = vunpack.c.l.b16 %v4442
          %v4531 = vunpack.c.h.b16 %v4442
          %v4532 = vunpack.c.l.b16 %v4443
          %v4533 = vunpack.c.h.b16 %v4443
          %v4534 = vunpack.c.l.b16 %v4444
          %v4535 = vunpack.c.h.b16 %v4444
          %v4536 = vunpack.c.l.b16 %v4445
          %v4537 = vunpack.c.h.b16 %v4445
          %v4538 = vunpack.c.l.b16 %v4446
          %v4539 = vunpack.c.h.b16 %v4446
          %v4540 = vunpack.c.l.b16 %v4447
          %v4541 = vunpack.c.h.b16 %v4447
          %v4542 = vunpack.c.l.b16 %v4448
          %v4543 = vunpack.c.h.b16 %v4448
          %v4544 = vunpack.c.l.b16 %v4449
          %v4545 = vunpack.c.h.b16 %v4449
          %v4546 = vpack.c.b16 %v4482, %v4482
          %v4547 = vpack.c.b16 %v4483, %v4483
          %v4548 = vpack.c.b16 %v4484, %v4484
          %v4549 = vpack.c.b16 %v4485, %v4485
          %v4550 = vpack.c.b16 %v4486, %v4486
          %v4551 = vpack.c.b16 %v4487, %v4487
          %v4552 = vpack.c.b16 %v4488, %v4488
          %v4553 = vpack.c.b16 %v4489, %v4489
          %v4554 = vpack.c.b16 %v4490, %v4490
          %v4555 = vpack.c.b16 %v4491, %v4491
          %v4556 = vpack.c.b16 %v4492, %v4492
          %v4557 = vpack.c.b16 %v4493, %v4493
          %v4558 = vpack.c.b16 %v4494, %v4494
          %v4559 = vpack.c.b16 %v4495, %v4495
          %v4560 = vpack.c.b16 %v4496, %v4496
          %v4561 = vpack.c.b16 %v4497, %v4497
          %v4562 = vpack.c.b16 %v4498, %v4498
          %v4563 = vpack.c.b16 %v4499, %v4499
          %v4564 = vpack.c.b16 %v4500, %v4500
          %v4565 = vpack.c.b16 %v4501, %v4501
          %v4566 = vpack.c.b16 %v4502, %v4502
          %v4567 = vpack.c.b16 %v4503, %v4503
          %v4568 = vpack.c.b16 %v4504, %v4504
          %v4569 = vpack.c.b16 %v4505, %v4505
          %v4570 = vpack.c.b16 %v4506, %v4506
          %v4571 = vpack.c.b16 %v4507, %v4507
          %v4572 = vpack.c.b16 %v4508, %v4508
          %v4573 = vpack.c.b16 %v4509, %v4509
          %v4574 = vpack.c.b16 %v4510, %v4510
          %v4575 = vpack.c.b16 %v4511, %v4511
          %v4576 = vpack.c.b16 %v4512, %v4512
          %v4577 = vpack.c.b16 %v4513, %v4513
          %v4578 = vpack.c.b16 %v4514, %v4514
          %v4579 = vpack.c.b16 %v4515, %v4515
          %v4580 = vpack.c.b16 %v4516, %v4516
          %v4581 = vpack.c.b16 %v4517, %v4517
          %v4582 = vpack.c.b16 %v4518, %v4518
          %v4583 = vpack.c.b16 %v4519, %v4519
          %v4584 = vpack.c.b16 %v4520, %v4520
          %v4585 = vpack.c.b16 %v4521, %v4521
          %v4586 = vpack.c.b16 %v4522, %v4522
          %v4587 = vpack.c.b16 %v4523, %v4523
          %v4588 = vpack.c.b16 %v4524, %v4524
          %v4589 = vpack.c.b16 %v4525, %v4525
          %v4590 = vpack.c.b16 %v4526, %v4526
          %v4591 = vpack.c.b16 %v4527, %v4527
          %v4592 = vpack.c.b16 %v4528, %v4528
          %v4593 = vpack.c.b16 %v4529, %v4529
          %v4594 = vpack.c.b16 %v4530, %v4530
          %v4595 = vpack.c.b16 %v4531, %v4531
          %v4596 = vpack.c.b16 %v4532, %v4532
          %v4597 = vpack.c.b16 %v4533, %v4533
          %v4598 = vpack.c.b16 %v4534, %v4534
          %v4599 = vpack.c.b16 %v4535, %v4535
          %v4600 = vpack.c.b16 %v4536, %v4536
          %v4601 = vpack.c.b16 %v4537, %v4537
          %v4602 = vpack.c.b16 %v4538, %v4538
          %v4603 = vpack.c.b16 %v4539, %v4539
          %v4604 = vpack.c.b16 %v4540, %v4540
          %v4605 = vpack.c.b16 %v4541, %v4541
          %v4606 = vpack.c.b16 %v4542, %v4542
          %v4607 = vpack.c.b16 %v4543, %v4543
          %v4608 = vpack.c.b16 %v4544, %v4544
          %v4609 = vpack.c.b16 %v4545, %v4545
          %4674 = vst [vmem:[%s448] sm:$0xf] %v4546
          %4675 = vst [vmem:[%s448 + $0x4] sm:$0xf] %v4547
          %4676 = vst [vmem:[%s448 + $0x8] sm:$0xf] %v4548
          %4677 = vst [vmem:[%s448 + $0xc] sm:$0xf] %v4549
          %4678 = vst [vmem:[%s448 + $0x10] sm:$0xf] %v4550
          %4679 = vst [vmem:[%s448 + $0x14] sm:$0xf] %v4551
          %4680 = vst [vmem:[%s448 + $0x18] sm:$0xf] %v4552
          %4681 = vst [vmem:[%s448 + $0x1c] sm:$0xf] %v4553
          %4682 = vst [vmem:[%s448 + $0x20] sm:$0xf] %v4554
          %4683 = vst [vmem:[%s448 + $0x24] sm:$0xf] %v4555
          %4684 = vst [vmem:[%s448 + $0x28] sm:$0xf] %v4556
          %4685 = vst [vmem:[%s448 + $0x2c] sm:$0xf] %v4557
          %4686 = vst [vmem:[%s448 + $0x30] sm:$0xf] %v4558
          %4687 = vst [vmem:[%s448 + $0x34] sm:$0xf] %v4559
          %4688 = vst [vmem:[%s448 + $0x38] sm:$0xf] %v4560
          %4689 = vst [vmem:[%s448 + $0x3c] sm:$0xf] %v4561
          %4690 = vst [vmem:[%s448 + $0x40] sm:$0xf] %v4562
          %4691 = vst [vmem:[%s448 + $0x44] sm:$0xf] %v4563
          %4692 = vst [vmem:[%s448 + $0x48] sm:$0xf] %v4564
          %4693 = vst [vmem:[%s448 + $0x4c] sm:$0xf] %v4565
          %4694 = vst [vmem:[%s448 + $0x50] sm:$0xf] %v4566
          %4695 = vst [vmem:[%s448 + $0x54] sm:$0xf] %v4567
          %4696 = vst [vmem:[%s448 + $0x58] sm:$0xf] %v4568
          %4697 = vst [vmem:[%s448 + $0x5c] sm:$0xf] %v4569
          %4698 = vst [vmem:[%s448 + $0x60] sm:$0xf] %v4570
          %4699 = vst [vmem:[%s448 + $0x64] sm:$0xf] %v4571
          %4700 = vst [vmem:[%s448 + $0x68] sm:$0xf] %v4572
          %4701 = vst [vmem:[%s448 + $0x6c] sm:$0xf] %v4573
          %4702 = vst [vmem:[%s448 + $0x70] sm:$0xf] %v4574
          %4703 = vst [vmem:[%s448 + $0x74] sm:$0xf] %v4575
          %4704 = vst [vmem:[%s448 + $0x78] sm:$0xf] %v4576
          %4705 = vst [vmem:[%s448 + $0x7c] sm:$0xf] %v4577
          %4706 = vst [vmem:[%s448 + $0x80] sm:$0xf] %v4578
          %4707 = vst [vmem:[%s448 + $0x84] sm:$0xf] %v4579
          %4708 = vst [vmem:[%s448 + $0x88] sm:$0xf] %v4580
          %4709 = vst [vmem:[%s448 + $0x8c] sm:$0xf] %v4581
          %4710 = vst [vmem:[%s448 + $0x90] sm:$0xf] %v4582
          %4711 = vst [vmem:[%s448 + $0x94] sm:$0xf] %v4583
          %4712 = vst [vmem:[%s448 + $0x98] sm:$0xf] %v4584
          %4713 = vst [vmem:[%s448 + $0x9c] sm:$0xf] %v4585
          %4714 = vst [vmem:[%s448 + $0xa0] sm:$0xf] %v4586
          %4715 = vst [vmem:[%s448 + $0xa4] sm:$0xf] %v4587
          %4716 = vst [vmem:[%s448 + $0xa8] sm:$0xf] %v4588
          %4717 = vst [vmem:[%s448 + $0xac] sm:$0xf] %v4589
          %4718 = vst [vmem:[%s448 + $0xb0] sm:$0xf] %v4590
          %4719 = vst [vmem:[%s448 + $0xb4] sm:$0xf] %v4591
          %4720 = vst [vmem:[%s448 + $0xb8] sm:$0xf] %v4592
          %4721 = vst [vmem:[%s448 + $0xbc] sm:$0xf] %v4593
          %4722 = vst [vmem:[%s448 + $0xc0] sm:$0xf] %v4594
          %4723 = vst [vmem:[%s448 + $0xc4] sm:$0xf] %v4595
          %4724 = vst [vmem:[%s448 + $0xc8] sm:$0xf] %v4596
          %4725 = vst [vmem:[%s448 + $0xcc] sm:$0xf] %v4597
          %4726 = vst [vmem:[%s448 + $0xd0] sm:$0xf] %v4598
          %4727 = vst [vmem:[%s448 + $0xd4] sm:$0xf] %v4599
          %4728 = vst [vmem:[%s448 + $0xd8] sm:$0xf] %v4600
          %4729 = vst [vmem:[%s448 + $0xdc] sm:$0xf] %v4601
          %4730 = vst [vmem:[%s448 + $0xe0] sm:$0xf] %v4602
          %4731 = vst [vmem:[%s448 + $0xe4] sm:$0xf] %v4603
          %4732 = vst [vmem:[%s448 + $0xe8] sm:$0xf] %v4604
          %4733 = vst [vmem:[%s448 + $0xec] sm:$0xf] %v4605
          %4734 = vst [vmem:[%s448 + $0xf0] sm:$0xf] %v4606
          %4735 = vst [vmem:[%s448 + $0xf4] sm:$0xf] %v4607
          %4736 = vst [vmem:[%s448 + $0xf8] sm:$0xf] %v4608
          %4737 = vst [vmem:[%s448 + $0xfc] sm:$0xf] %v4609
        $region80: #{tpu_custom_call.1} parent=47 // pred_fallthru
          _
        %s4738 = sand.u32 %s218, 1
        %s4739 = scalar_lea.sflag [#allocation5], %s4738
        %s4740 = sand.u32 %s218, 1
        %s4741 = smul.addr %s4740, 256
        %s4742 = scalar_lea.vmem [#allocation14], %s4741
        // Predicated region
        $region81: #{tpu_custom_call.1} parent=47 // pred_check
          %p4743 = pneg %p228
        $region82: #{tpu_custom_call.1} parent=47 // pred_check_branch
          %4745 = sbr.rel (%p4743) target = $region84
        $region83: #{tpu_custom_call.1} parent=47 // pred_region
          %s4746 = smul.u32 64, %s33
          %s4748 = ssub.s32 4096, 4096
          %4749 = vsyncadd %s4739, %s4748
          %s4750 = smul.addr %s4746, 64
          %s4751 = scalar_lea.hbm %s7, %s4750
          %s4752 = sshll.u32 %s4742, 4
          %s4753 = int_to_ptr.vmem [resolvable:$true] %s4752
          %4758 = dma.vmem_to_hbm [thread:$0]  %s4753, 4096, %s4751, %s4739, 64, 64, 4
        $region84: #{tpu_custom_call.1} parent=47 // pred_fallthru
          _
      $region48: #{tpu_custom_call.1} parent=5 // pred_fallthru
        _
      %p4759 = scmp.le.s32.totalorder 2, %s24
      // Predicated region
      $region85: #{tpu_custom_call.1} parent=5 // pred_check
        %p4760 = pneg %p4759
      $region86: #{tpu_custom_call.1} parent=5 // pred_check_branch
        %4762 = sbr.rel (%p4760) target = $region88
      $region87: #{tpu_custom_call.1} parent=5 // pred_region
        %s4763 = ssub.s32 %s24, 2
        // Predicated region
        $region89: #{tpu_custom_call.1} parent=87 // pred_check
          %p4764 = pneg %p234
        $region90: #{tpu_custom_call.1} parent=87 // pred_check_branch
          %4766 = sbr.rel (%p4764) target = $region92
        $region91: #{tpu_custom_call.1} parent=87 // pred_region
          %s4767 = sand.u32 %s219, 1
          %s4768 = scalar_lea.sflag [#allocation5], %s4767
          %s4769 = sand.u32 %s219, 1
          %s4770 = smul.addr %s4769, 256
          %s4771 = scalar_lea.vmem [#allocation14], %s4770
          %4772 = dma.done %s4768, 4096
        $region92: #{tpu_custom_call.1} parent=87 // pred_fallthru
          _
      $region88: #{tpu_custom_call.1} parent=5 // pred_fallthru
        _
    $region6: #{tpu_custom_call.1} parent=1 // loop_footer
      %s28 = sadd.s32 1, %s24
    $region7: #{tpu_custom_call.1} parent=1 // loop_footer_branch
      %23 = sbr.rel target = $region3
    $region8: #{tpu_custom_call.1} parent=1 // loop_exit
      _
    %4773 = vsyncpa [#allocation4], 1
    %s4774 = scalar_lea.sflag [#allocation4], 1
    %4775 = vsyncpa %s4774, 1
    %4776 = vsyncpa [#allocation7], 1
    %s4777 = scalar_lea.sflag [#allocation7], 1
    %4778 = vsyncpa %s4777, 1
    %4779 = vsyncpa [#allocation10], 1
    %4780 = vsyncpa [#allocation13], 1
    %4781 = vsyncpa [#allocation5], 1
    %s4782 = scalar_lea.sflag [#allocation5], 1
    %4783 = vsyncpa %s4782, 1

</llo_original>
